<compile_context>
chip_gen: v7x
topology: tpu7x:2x2x1
jax: 0.10.0
libtpu: 0.0.40
codegen_flags: <defaults>
</compile_context>

<pallas_src>
import numpy as np
import jax
import jax.numpy as jnp
from jax.experimental import pallas as pl
from jax.experimental.pallas import tpu as pltpu


# --------------------------------------------------------------------------
# Constant helpers (numpy, built at trace time -> no runtime ops)
# --------------------------------------------------------------------------

def _one_hot_band(kw, ow_len, w_len):
    # m[d, p, w] = 1 iff w == p + d   (maps padded-width index -> (out pos, tap))
    m = np.zeros((kw, ow_len, w_len), np.float32)
    for d in range(kw):
        for p_ in range(ow_len):
            m[d, p_, p_ + d] = 1.0
    return m


def _pool2_selectors():
    # MaxPool2d(2, stride 4) lane compaction + ZeroPad2d((2,1,4,3)) layout:
    # conv2 activations have lanes = oc*18 + ow ; conv3 input wants lanes =
    # oc*8 + (2 + pooled_w).  s0 picks column 4j, s1 picks column 4j+1.
    s0 = np.zeros((72, 32), np.float32)
    s1 = np.zeros((72, 32), np.float32)
    for oc in range(4):
        for j in range(5):
            s0[oc * 18 + 4 * j, oc * 8 + 2 + j] = 1.0
            s1[oc * 18 + 4 * j + 1, oc * 8 + 2 + j] = 1.0
    return s0, s1


_M2 = _one_hot_band(32, 18, 49)   # conv2: kernel w 32, out w 18, padded w 49
_M3 = _one_hot_band(4, 5, 8)      # conv3: kernel w 4,  out w 5,  padded w 8
_S0, _S1 = _pool2_selectors()


# --------------------------------------------------------------------------
# Fused Pallas kernel
# --------------------------------------------------------------------------

def _eegnet_kernel(xt_ref, w1_ref, ep1_ref, w2b_ref, ep2_ref, s0_ref, s1_ref,
                   w3b_ref, ep3_ref, fc_ref, o_ref, pad1_ref, pad2_ref):
    f32 = jnp.float32
    B = xt_ref.shape[0]

    def elu(a):  # F.elu, alpha = 1
        return jnp.where(a > 0.0, a, jnp.exp(a) - 1.0)

    # Zero-padded scratch feature maps (ZeroPad2d regions come from this init).
    pad1_ref[...] = jnp.zeros_like(pad1_ref)      # (B, 17, 49)
    pad2_ref[...] = jnp.zeros_like(pad2_ref)      # (B, 11, 32)  lanes = ic*8 + w

    w1 = w1_ref[...]          # (16, 30)
    s0 = s0_ref[...]          # (72, 32)
    s1 = s1_ref[...]          # (72, 32)

    for b in range(B):
        # ---- conv1 (1->16, (1,30)) + ELU + folded BN1; permute(0,3,1,2);
        #      ZeroPad2d((16,17,0,1)) -------------------------------------
        xb = xt_ref[b]                                          # (30, 16) = (W, H)
        z = jnp.dot(w1, xb, preferred_element_type=f32)         # (16 ch, 16 H)
        z = z + ep1_ref[0]                                      # conv1 bias (16,1)
        z = elu(z)
        z = z * ep1_ref[1] + ep1_ref[2]                         # BN1 (eps = 0.0)
        # TODO(synk): F.dropout(p=0.25) is stochastic; identity here (inference).
        pad1_ref[b, 0:16, 16:32] = z                            # -> padded (17, 49)

        # ---- conv2 (1->4, (2,32)) + ELU + folded BN2 ---------------------
        # Banded weight matmuls; output lanes = oc*18 + ow.
        y2 = (jnp.dot(pad1_ref[b, 0:16, :], w2b_ref[0], preferred_element_type=f32)
              + jnp.dot(pad1_ref[b, 1:17, :], w2b_ref[1], preferred_element_type=f32))
        y2 = y2 + ep2_ref[0]                                    # conv2 bias
        y2 = elu(y2)
        y2 = y2 * ep2_ref[1] + ep2_ref[2]                       # BN2   (16, 72)

        # ---- MaxPool2d(2, stride 4) + ZeroPad2d((2,1,4,3)) ---------------
        rows = [jnp.maximum(y2[4 * i:4 * i + 1, :], y2[4 * i + 1:4 * i + 2, :])
                for i in range(4)]
        hp = jnp.concatenate(rows, axis=0)                      # (4, 72)
        pooled = jnp.maximum(jnp.dot(hp, s0, preferred_element_type=f32),
                             jnp.dot(hp, s1, preferred_element_type=f32))  # (4, 32)
        pad2_ref[b, 4:8, :] = pooled                            # -> padded (11, 32)

        # ---- conv3 (4->4, (8,4)) + ELU + folded BN3 ----------------------
        # Banded weight matmuls over the channel-concatenated padded map;
        # output lanes = oc*5 + ow.
        acc3 = jnp.zeros((4, 20), f32)
        for dh in range(8):
            acc3 = acc3 + jnp.dot(pad2_ref[b, dh:dh + 4, :], w3b_ref[dh],
                                  preferred_element_type=f32)
        acc3 = acc3 + ep3_ref[0]                                # conv3 bias
        acc3 = elu(acc3)
        acc3 = acc3 * ep3_ref[1] + ep3_ref[2]                   # BN3   (4, 20)

        # ---- MaxPool2d((2,4)); flatten (oc, i); fc1; sigmoid -------------
        logit = jnp.zeros((1, 1), f32) + fc_ref[8]              # fc1 bias
        for oc in range(4):
            s3 = acc3[:, oc * 5:(oc + 1) * 5]                   # (4, 5)
            for i in range(2):
                rr = jnp.maximum(s3[2 * i:2 * i + 1, :],
                                 s3[2 * i + 1:2 * i + 2, :])    # (1, 5)
                feat = jnp.max(rr[:, 0:4], axis=1, keepdims=True)   # (1, 1)
                logit = logit + feat * fc_ref[2 * oc + i]       # flatten k = oc*2+i
        o_ref[b:b + 1, :] = 1.0 / (1.0 + jnp.exp(-logit))       # sigmoid


# --------------------------------------------------------------------------
# Wrapper: parameter folding (BN, banded conv matrices) + single pallas_call
# --------------------------------------------------------------------------

def eegnet_forward(x, p):
    B = x.shape[0]
    f32 = jnp.float32

    def bn_fold(g, be, m, v):
        # nn.BatchNorm2d(C, False) -> eps = 0.0, affine=True, running stats (eval)
        s = g / jnp.sqrt(v + 0.0)
        return s, be - m * s

    sc1, sh1 = bn_fold(p["g1"], p["be1"], p["m1"], p["v1"])
    sc2, sh2 = bn_fold(p["g2"], p["be2"], p["m2"], p["v2"])
    sc3, sh3 = bn_fold(p["g3"], p["be3"], p["m3"], p["v3"])

    x_t = jnp.transpose(x[:, 0], (0, 2, 1)).astype(f32)            # (B, 30, 16)
    w1m = p["w1"].reshape(16, 30).astype(f32)                      # (16, 30)
    ep1 = jnp.stack([p["b1"], sc1, sh1]).astype(f32).reshape(3, 16, 1)

    # conv2 banded matrices: w2b[dh][w, oc*18+ow] = w2[oc, 0, dh, w-ow]
    w2b = jnp.einsum("ohd,dpw->hwop", p["w2"][:, 0].astype(f32),
                     jnp.asarray(_M2)).reshape(2, 49, 72)
    ep2 = jnp.stack([jnp.repeat(p["b2"], 18), jnp.repeat(sc2, 18),
                     jnp.repeat(sh2, 18)]).astype(f32)             # (3, 72)

    # conv3 banded matrices: w3b[dh][ic*8+w, oc*5+ow] = w3[oc, ic, dh, w-ow]
    w3b = jnp.einsum("oihd,dpw->hiwop", p["w3"].astype(f32),
                     jnp.asarray(_M3)).reshape(8, 32, 20)
    ep3 = jnp.stack([jnp.repeat(p["b3"], 5), jnp.repeat(sc3, 5),
                     jnp.repeat(sh3, 5)]).astype(f32)              # (3, 20)

    fcv = jnp.concatenate([p["wf"].reshape(8), p["bf"]]).astype(f32)  # (9,) SMEM

    vmem = pl.BlockSpec(memory_space=pltpu.MemorySpace.VMEM)
    smem = pl.BlockSpec(memory_space=pltpu.MemorySpace.SMEM)

    return pl.pallas_call(
        _eegnet_kernel,
        out_shape=jax.ShapeDtypeStruct((B, 1), f32),
        in_specs=[vmem] * 9 + [smem],
        out_specs=vmem,
        scratch_shapes=[pltpu.VMEM((B, 17, 49), f32),   # padding1 feature map
                        pltpu.VMEM((B, 11, 32), f32)],  # padding2 feature map
    )(x_t, w1m, ep1, w2b, ep2, jnp.asarray(_S0), jnp.asarray(_S1), w3b, ep3, fcv)


# --------------------------------------------------------------------------
# Deterministic example parameters / input
# --------------------------------------------------------------------------

def init_params(key):
    ks = jax.random.split(key, 20)
    n = lambda k, s, sc=0.1: (sc * jax.random.normal(k, s)).astype(jnp.float32)
    u = lambda k, s: jax.random.uniform(k, s, minval=0.5, maxval=1.5).astype(jnp.float32)
    p = {}
    p["w1"], p["b1"] = n(ks[0], (16, 1, 1, 30)), n(ks[1], (16,))
    p["g1"], p["be1"] = 1.0 + n(ks[2], (16,)), n(ks[3], (16,))
    p["m1"], p["v1"] = n(ks[4], (16,)), u(ks[5], (16,))
    p["w2"], p["b2"] = n(ks[6], (4, 1, 2, 32)), n(ks[7], (4,))
    p["g2"], p["be2"] = 1.0 + n(ks[8], (4,)), n(ks[9], (4,))
    p["m2"], p["v2"] = n(ks[10], (4,)), u(ks[11], (4,))
    p["w3"], p["b3"] = n(ks[12], (4, 4, 8, 4)), n(ks[13], (4,))
    p["g3"], p["be3"] = 1.0 + n(ks[14], (4,)), n(ks[15], (4,))
    p["m3"], p["v3"] = n(ks[16], (4,)), u(ks[17], (4,))
    p["wf"], p["bf"] = n(ks[18], (1, 8)), n(ks[19], (1,))
    return p


if __name__ == "__main__":
    key = jax.random.PRNGKey(0)
    kx, kp = jax.random.split(key)
    # NCHW input: (batch=2, in_channels=1, time=16, width=30)
    x = jax.random.normal(kx, (2, 1, 16, 30), dtype=jnp.float32)
    params = init_params(kp)
    out = jax.jit(eegnet_forward)(x, params)
    out = jax.block_until_ready(out)
    assert out.shape == (2, 1) and out.dtype == jnp.float32
    assert bool(jnp.all(jnp.isfinite(out)))
    print("KERNEL_OK")
</pallas_src>

<mosaic_0001>
module attributes {stable_mosaic.version = 11 : i64} {
  func.func @_eegnet_kernel(%arg0: memref<2x30x16xf32, #tpu.memory_space<vmem>>, %arg1: memref<16x30xf32, #tpu.memory_space<vmem>>, %arg2: memref<3x16x1xf32, #tpu.memory_space<vmem>>, %arg3: memref<2x49x72xf32, #tpu.memory_space<vmem>>, %arg4: memref<3x72xf32, #tpu.memory_space<vmem>>, %arg5: memref<72x32xf32, #tpu.memory_space<vmem>>, %arg6: memref<72x32xf32, #tpu.memory_space<vmem>>, %arg7: memref<8x32x20xf32, #tpu.memory_space<vmem>>, %arg8: memref<3x20xf32, #tpu.memory_space<vmem>>, %arg9: memref<9xf32, #tpu.memory_space<smem>>, %arg10: memref<2x1xf32, #tpu.memory_space<vmem>>, %arg11: memref<2x17x49xf32, #tpu.memory_space<vmem>>, %arg12: memref<2x11x32xf32, #tpu.memory_space<vmem>>) attributes {dimension_semantics = [], scalar_prefetch = 0 : i64, scratch_operands = 2 : i64, tpu.core_type = #tpu.core_type<tc>} {
    %cst = arith.constant 0.000000e+00 : f32
    %0 = vector.broadcast %cst : f32 to vector<2x17x49xf32>
    %c0 = arith.constant 0 : index
    %c0_0 = arith.constant 0 : index
    %c0_1 = arith.constant 0 : index
    %1 = vector.load %arg11[%c0, %c0_0, %c0_1] : memref<2x17x49xf32, #tpu.memory_space<vmem>>, vector<2x17x49xf32>
    tpu.vector_store %arg11[%c0, %c0_0, %c0_1], %0 {strides = array<i32>} : memref<2x17x49xf32, #tpu.memory_space<vmem>>, vector<2x17x49xf32>,
    %cst_2 = arith.constant 0.000000e+00 : f32
    %2 = vector.broadcast %cst_2 : f32 to vector<2x11x32xf32>
    %c0_3 = arith.constant 0 : index
    %c0_4 = arith.constant 0 : index
    %c0_5 = arith.constant 0 : index
    %3 = vector.load %arg12[%c0_3, %c0_4, %c0_5] : memref<2x11x32xf32, #tpu.memory_space<vmem>>, vector<2x11x32xf32>
    tpu.vector_store %arg12[%c0_3, %c0_4, %c0_5], %2 {strides = array<i32>} : memref<2x11x32xf32, #tpu.memory_space<vmem>>, vector<2x11x32xf32>,
    %c0_6 = arith.constant 0 : index
    %c0_7 = arith.constant 0 : index
    %4 = vector.load %arg1[%c0_6, %c0_7] : memref<16x30xf32, #tpu.memory_space<vmem>>, vector<16x30xf32>
    %c0_8 = arith.constant 0 : index
    %c0_9 = arith.constant 0 : index
    %5 = vector.load %arg5[%c0_8, %c0_9] : memref<72x32xf32, #tpu.memory_space<vmem>>, vector<72x32xf32>
    %c0_10 = arith.constant 0 : index
    %c0_11 = arith.constant 0 : index
    %6 = vector.load %arg6[%c0_10, %c0_11] : memref<72x32xf32, #tpu.memory_space<vmem>>, vector<72x32xf32>
    %c0_12 = arith.constant 0 : index
    %c0_13 = arith.constant 0 : index
    %c0_14 = arith.constant 0 : index
    %7 = vector.load %arg0[%c0_12, %c0_13, %c0_14] : memref<2x30x16xf32, #tpu.memory_space<vmem>>, vector<1x30x16xf32>
    %8 = vector.shape_cast %7 : vector<1x30x16xf32> to vector<30x16xf32>
    %cst_15 = arith.constant dense<0.000000e+00> : vector<16x16xf32>
    %9 = tpu.matmul %4, %8, %cst_15 {dimension_numbers = #tpu.dot_dimension_numbers<[1], [0], [0], [1], [0, 0, 1, 1], [], []>} : vector<16x30xf32>, vector<30x16xf32>, vector<16x16xf32> -> vector<16x16xf32>
    %c0_16 = arith.constant 0 : index
    %c0_17 = arith.constant 0 : index
    %c0_18 = arith.constant 0 : index
    %10 = vector.load %arg2[%c0_16, %c0_17, %c0_18] : memref<3x16x1xf32, #tpu.memory_space<vmem>>, vector<1x16x1xf32>
    %11 = vector.shape_cast %10 : vector<1x16x1xf32> to vector<16x1xf32>
    %12 = vector.broadcast %11 : vector<16x1xf32> to vector<16x16xf32>
    %13 = arith.addf %9, %12 : vector<16x16xf32>
    %cst_19 = arith.constant 0.000000e+00 : f32
    %14 = vector.broadcast %cst_19 : f32 to vector<16x16xf32>
    %15 = arith.cmpf ogt, %13, %14 : vector<16x16xf32>
    %16 = math.exp %13 : vector<16x16xf32>
    %cst_20 = arith.constant 1.000000e+00 : f32
    %17 = vector.broadcast %cst_20 : f32 to vector<16x16xf32>
    %18 = arith.subf %16, %17 : vector<16x16xf32>
    %19 = arith.select %15, %13, %18 : vector<16x16xi1>, vector<16x16xf32>
    %c1 = arith.constant 1 : index
    %c0_21 = arith.constant 0 : index
    %c0_22 = arith.constant 0 : index
    %20 = vector.load %arg2[%c1, %c0_21, %c0_22] : memref<3x16x1xf32, #tpu.memory_space<vmem>>, vector<1x16x1xf32>
    %21 = vector.shape_cast %20 : vector<1x16x1xf32> to vector<16x1xf32>
    %22 = vector.broadcast %21 : vector<16x1xf32> to vector<16x16xf32>
    %23 = arith.mulf %19, %22 : vector<16x16xf32>
    %c2 = arith.constant 2 : index
    %c0_23 = arith.constant 0 : index
    %c0_24 = arith.constant 0 : index
    %24 = vector.load %arg2[%c2, %c0_23, %c0_24] : memref<3x16x1xf32, #tpu.memory_space<vmem>>, vector<1x16x1xf32>
    %25 = vector.shape_cast %24 : vector<1x16x1xf32> to vector<16x1xf32>
    %26 = vector.broadcast %25 : vector<16x1xf32> to vector<16x16xf32>
    %27 = arith.addf %23, %26 : vector<16x16xf32>
    %c0_25 = arith.constant 0 : index
    %c0_26 = arith.constant 0 : index
    %c16 = arith.constant 16 : index
    %28 = vector.load %arg11[%c0_25, %c0_26, %c16] : memref<2x17x49xf32, #tpu.memory_space<vmem>>, vector<1x16x16xf32>
    %29 = vector.shape_cast %28 : vector<1x16x16xf32> to vector<16x16xf32>
    %30 = vector.shape_cast %27 : vector<16x16xf32> to vector<1x16x16xf32>
    tpu.vector_store %arg11[%c0_25, %c0_26, %c16], %30 {strides = array<i32>} : memref<2x17x49xf32, #tpu.memory_space<vmem>>, vector<1x16x16xf32>,
    %c0_27 = arith.constant 0 : index
    %c0_28 = arith.constant 0 : index
    %c0_29 = arith.constant 0 : index
    %31 = vector.load %arg11[%c0_27, %c0_28, %c0_29] : memref<2x17x49xf32, #tpu.memory_space<vmem>>, vector<1x16x49xf32>
    %32 = vector.shape_cast %31 : vector<1x16x49xf32> to vector<16x49xf32>
    %c0_30 = arith.constant 0 : index
    %c0_31 = arith.constant 0 : index
    %c0_32 = arith.constant 0 : index
    %33 = vector.load %arg3[%c0_30, %c0_31, %c0_32] : memref<2x49x72xf32, #tpu.memory_space<vmem>>, vector<1x49x72xf32>
    %34 = vector.shape_cast %33 : vector<1x49x72xf32> to vector<49x72xf32>
    %cst_33 = arith.constant dense<0.000000e+00> : vector<16x72xf32>
    %35 = tpu.matmul %32, %34, %cst_33 {dimension_numbers = #tpu.dot_dimension_numbers<[1], [0], [0], [1], [0, 0, 1, 1], [], []>} : vector<16x49xf32>, vector<49x72xf32>, vector<16x72xf32> -> vector<16x72xf32>
    %c0_34 = arith.constant 0 : index
    %c1_35 = arith.constant 1 : index
    %c0_36 = arith.constant 0 : index
    %36 = vector.load %arg11[%c0_34, %c1_35, %c0_36] : memref<2x17x49xf32, #tpu.memory_space<vmem>>, vector<1x16x49xf32>
    %37 = vector.shape_cast %36 : vector<1x16x49xf32> to vector<16x49xf32>
    %c1_37 = arith.constant 1 : index
    %c0_38 = arith.constant 0 : index
    %c0_39 = arith.constant 0 : index
    %38 = vector.load %arg3[%c1_37, %c0_38, %c0_39] : memref<2x49x72xf32, #tpu.memory_space<vmem>>, vector<1x49x72xf32>
    %39 = vector.shape_cast %38 : vector<1x49x72xf32> to vector<49x72xf32>
    %cst_40 = arith.constant dense<0.000000e+00> : vector<16x72xf32>
    %40 = tpu.matmul %37, %39, %cst_40 {dimension_numbers = #tpu.dot_dimension_numbers<[1], [0], [0], [1], [0, 0, 1, 1], [], []>} : vector<16x49xf32>, vector<49x72xf32>, vector<16x72xf32> -> vector<16x72xf32>
    %41 = arith.addf %35, %40 : vector<16x72xf32>
    %c0_41 = arith.constant 0 : index
    %c0_42 = arith.constant 0 : index
    %42 = vector.load %arg4[%c0_41, %c0_42] : memref<3x72xf32, #tpu.memory_space<vmem>>, vector<1x72xf32>
    %43 = vector.shape_cast %42 : vector<1x72xf32> to vector<72xf32>
    %44 = vector.shape_cast %43 : vector<72xf32> to vector<1x72xf32>
    %45 = vector.broadcast %44 : vector<1x72xf32> to vector<16x72xf32>
    %46 = arith.addf %41, %45 : vector<16x72xf32>
    %cst_43 = arith.constant 0.000000e+00 : f32
    %47 = vector.broadcast %cst_43 : f32 to vector<16x72xf32>
    %48 = arith.cmpf ogt, %46, %47 : vector<16x72xf32>
    %49 = math.exp %46 : vector<16x72xf32>
    %cst_44 = arith.constant 1.000000e+00 : f32
    %50 = vector.broadcast %cst_44 : f32 to vector<16x72xf32>
    %51 = arith.subf %49, %50 : vector<16x72xf32>
    %52 = arith.select %48, %46, %51 : vector<16x72xi1>, vector<16x72xf32>
    %c1_45 = arith.constant 1 : index
    %c0_46 = arith.constant 0 : index
    %53 = vector.load %arg4[%c1_45, %c0_46] : memref<3x72xf32, #tpu.memory_space<vmem>>, vector<1x72xf32>
    %54 = vector.shape_cast %53 : vector<1x72xf32> to vector<72xf32>
    %55 = vector.shape_cast %54 : vector<72xf32> to vector<1x72xf32>
    %56 = vector.broadcast %55 : vector<1x72xf32> to vector<16x72xf32>
    %57 = arith.mulf %52, %56 : vector<16x72xf32>
    %c2_47 = arith.constant 2 : index
    %c0_48 = arith.constant 0 : index
    %58 = vector.load %arg4[%c2_47, %c0_48] : memref<3x72xf32, #tpu.memory_space<vmem>>, vector<1x72xf32>
    %59 = vector.shape_cast %58 : vector<1x72xf32> to vector<72xf32>
    %60 = vector.shape_cast %59 : vector<72xf32> to vector<1x72xf32>
    %61 = vector.broadcast %60 : vector<1x72xf32> to vector<16x72xf32>
    %62 = arith.addf %57, %61 : vector<16x72xf32>
    %63 = vector.extract_strided_slice %62 {offsets = [0, 0], sizes = [1, 72], strides = [1, 1]} : vector<16x72xf32> to vector<1x72xf32>
    %64 = vector.extract_strided_slice %62 {offsets = [1, 0], sizes = [1, 72], strides = [1, 1]} : vector<16x72xf32> to vector<1x72xf32>
    %65 = arith.maximumf %63, %64 : vector<1x72xf32>
    %66 = vector.extract_strided_slice %62 {offsets = [4, 0], sizes = [1, 72], strides = [1, 1]} : vector<16x72xf32> to vector<1x72xf32>
    %67 = vector.extract_strided_slice %62 {offsets = [5, 0], sizes = [1, 72], strides = [1, 1]} : vector<16x72xf32> to vector<1x72xf32>
    %68 = arith.maximumf %66, %67 : vector<1x72xf32>
    %69 = vector.extract_strided_slice %62 {offsets = [8, 0], sizes = [1, 72], strides = [1, 1]} : vector<16x72xf32> to vector<1x72xf32>
    %70 = vector.extract_strided_slice %62 {offsets = [9, 0], sizes = [1, 72], strides = [1, 1]} : vector<16x72xf32> to vector<1x72xf32>
    %71 = arith.maximumf %69, %70 : vector<1x72xf32>
    %72 = vector.extract_strided_slice %62 {offsets = [12, 0], sizes = [1, 72], strides = [1, 1]} : vector<16x72xf32> to vector<1x72xf32>
    %73 = vector.extract_strided_slice %62 {offsets = [13, 0], sizes = [1, 72], strides = [1, 1]} : vector<16x72xf32> to vector<1x72xf32>
    %74 = arith.maximumf %72, %73 : vector<1x72xf32>
    %75 = tpu.concatenate %65, %68, %71, %74 in 0 : vector<1x72xf32>, vector<1x72xf32>, vector<1x72xf32>, vector<1x72xf32> -> vector<4x72xf32>
    %cst_49 = arith.constant dense<0.000000e+00> : vector<4x32xf32>
    %76 = tpu.matmul %75, %5, %cst_49 {dimension_numbers = #tpu.dot_dimension_numbers<[1], [0], [0], [1], [0, 0, 1, 1], [], []>} : vector<4x72xf32>, vector<72x32xf32>, vector<4x32xf32> -> vector<4x32xf32>
    %cst_50 = arith.constant dense<0.000000e+00> : vector<4x32xf32>
    %77 = tpu.matmul %75, %6, %cst_50 {dimension_numbers = #tpu.dot_dimension_numbers<[1], [0], [0], [1], [0, 0, 1, 1], [], []>} : vector<4x72xf32>, vector<72x32xf32>, vector<4x32xf32> -> vector<4x32xf32>
    %78 = arith.maximumf %76, %77 : vector<4x32xf32>
    %c0_51 = arith.constant 0 : index
    %c4 = arith.constant 4 : index
    %c0_52 = arith.constant 0 : index
    %79 = vector.load %arg12[%c0_51, %c4, %c0_52] : memref<2x11x32xf32, #tpu.memory_space<vmem>>, vector<1x4x32xf32>
    %80 = vector.shape_cast %79 : vector<1x4x32xf32> to vector<4x32xf32>
    %81 = vector.shape_cast %78 : vector<4x32xf32> to vector<1x4x32xf32>
    tpu.vector_store %arg12[%c0_51, %c4, %c0_52], %81 {strides = array<i32>} : memref<2x11x32xf32, #tpu.memory_space<vmem>>, vector<1x4x32xf32>,
    %cst_53 = arith.constant 0.000000e+00 : f32
    %82 = vector.broadcast %cst_53 : f32 to vector<4x20xf32>
    %c0_54 = arith.constant 0 : index
    %c0_55 = arith.constant 0 : index
    %c0_56 = arith.constant 0 : index
    %83 = vector.load %arg12[%c0_54, %c0_55, %c0_56] : memref<2x11x32xf32, #tpu.memory_space<vmem>>, vector<1x4x32xf32>
    %84 = vector.shape_cast %83 : vector<1x4x32xf32> to vector<4x32xf32>
    %c0_57 = arith.constant 0 : index
    %c0_58 = arith.constant 0 : index
    %c0_59 = arith.constant 0 : index
    %85 = vector.load %arg7[%c0_57, %c0_58, %c0_59] : memref<8x32x20xf32, #tpu.memory_space<vmem>>, vector<1x32x20xf32>
    %86 = vector.shape_cast %85 : vector<1x32x20xf32> to vector<32x20xf32>
    %cst_60 = arith.constant dense<0.000000e+00> : vector<4x20xf32>
    %87 = tpu.matmul %84, %86, %cst_60 {dimension_numbers = #tpu.dot_dimension_numbers<[1], [0], [0], [1], [0, 0, 1, 1], [], []>} : vector<4x32xf32>, vector<32x20xf32>, vector<4x20xf32> -> vector<4x20xf32>
    %88 = arith.addf %82, %87 : vector<4x20xf32>
    %c0_61 = arith.constant 0 : index
    %c1_62 = arith.constant 1 : index
    %c0_63 = arith.constant 0 : index
    %89 = vector.load %arg12[%c0_61, %c1_62, %c0_63] : memref<2x11x32xf32, #tpu.memory_space<vmem>>, vector<1x4x32xf32>
    %90 = vector.shape_cast %89 : vector<1x4x32xf32> to vector<4x32xf32>
    %c1_64 = arith.constant 1 : index
    %c0_65 = arith.constant 0 : index
    %c0_66 = arith.constant 0 : index
    %91 = vector.load %arg7[%c1_64, %c0_65, %c0_66] : memref<8x32x20xf32, #tpu.memory_space<vmem>>, vector<1x32x20xf32>
    %92 = vector.shape_cast %91 : vector<1x32x20xf32> to vector<32x20xf32>
    %cst_67 = arith.constant dense<0.000000e+00> : vector<4x20xf32>
    %93 = tpu.matmul %90, %92, %cst_67 {dimension_numbers = #tpu.dot_dimension_numbers<[1], [0], [0], [1], [0, 0, 1, 1], [], []>} : vector<4x32xf32>, vector<32x20xf32>, vector<4x20xf32> -> vector<4x20xf32>
    %94 = arith.addf %88, %93 : vector<4x20xf32>
    %c0_68 = arith.constant 0 : index
    %c2_69 = arith.constant 2 : index
    %c0_70 = arith.constant 0 : index
    %95 = vector.load %arg12[%c0_68, %c2_69, %c0_70] : memref<2x11x32xf32, #tpu.memory_space<vmem>>, vector<1x4x32xf32>
    %96 = vector.shape_cast %95 : vector<1x4x32xf32> to vector<4x32xf32>
    %c2_71 = arith.constant 2 : index
    %c0_72 = arith.constant 0 : index
    %c0_73 = arith.constant 0 : index
    %97 = vector.load %arg7[%c2_71, %c0_72, %c0_73] : memref<8x32x20xf32, #tpu.memory_space<vmem>>, vector<1x32x20xf32>
    %98 = vector.shape_cast %97 : vector<1x32x20xf32> to vector<32x20xf32>
    %cst_74 = arith.constant dense<0.000000e+00> : vector<4x20xf32>
    %99 = tpu.matmul %96, %98, %cst_74 {dimension_numbers = #tpu.dot_dimension_numbers<[1], [0], [0], [1], [0, 0, 1, 1], [], []>} : vector<4x32xf32>, vector<32x20xf32>, vector<4x20xf32> -> vector<4x20xf32>
    %100 = arith.addf %94, %99 : vector<4x20xf32>
    %c0_75 = arith.constant 0 : index
    %c3 = arith.constant 3 : index
    %c0_76 = arith.constant 0 : index
    %101 = vector.load %arg12[%c0_75, %c3, %c0_76] : memref<2x11x32xf32, #tpu.memory_space<vmem>>, vector<1x4x32xf32>
    %102 = vector.shape_cast %101 : vector<1x4x32xf32> to vector<4x32xf32>
    %c3_77 = arith.constant 3 : index
    %c0_78 = arith.constant 0 : index
    %c0_79 = arith.constant 0 : index
    %103 = vector.load %arg7[%c3_77, %c0_78, %c0_79] : memref<8x32x20xf32, #tpu.memory_space<vmem>>, vector<1x32x20xf32>
    %104 = vector.shape_cast %103 : vector<1x32x20xf32> to vector<32x20xf32>
    %cst_80 = arith.constant dense<0.000000e+00> : vector<4x20xf32>
    %105 = tpu.matmul %102, %104, %cst_80 {dimension_numbers = #tpu.dot_dimension_numbers<[1], [0], [0], [1], [0, 0, 1, 1], [], []>} : vector<4x32xf32>, vector<32x20xf32>, vector<4x20xf32> -> vector<4x20xf32>
    %106 = arith.addf %100, %105 : vector<4x20xf32>
    %c0_81 = arith.constant 0 : index
    %c4_82 = arith.constant 4 : index
    %c0_83 = arith.constant 0 : index
    %107 = vector.load %arg12[%c0_81, %c4_82, %c0_83] : memref<2x11x32xf32, #tpu.memory_space<vmem>>, vector<1x4x32xf32>
    %108 = vector.shape_cast %107 : vector<1x4x32xf32> to vector<4x32xf32>
    %c4_84 = arith.constant 4 : index
    %c0_85 = arith.constant 0 : index
    %c0_86 = arith.constant 0 : index
    %109 = vector.load %arg7[%c4_84, %c0_85, %c0_86] : memref<8x32x20xf32, #tpu.memory_space<vmem>>, vector<1x32x20xf32>
    %110 = vector.shape_cast %109 : vector<1x32x20xf32> to vector<32x20xf32>
    %cst_87 = arith.constant dense<0.000000e+00> : vector<4x20xf32>
    %111 = tpu.matmul %108, %110, %cst_87 {dimension_numbers = #tpu.dot_dimension_numbers<[1], [0], [0], [1], [0, 0, 1, 1], [], []>} : vector<4x32xf32>, vector<32x20xf32>, vector<4x20xf32> -> vector<4x20xf32>
    %112 = arith.addf %106, %111 : vector<4x20xf32>
    %c0_88 = arith.constant 0 : index
    %c5 = arith.constant 5 : index
    %c0_89 = arith.constant 0 : index
    %113 = vector.load %arg12[%c0_88, %c5, %c0_89] : memref<2x11x32xf32, #tpu.memory_space<vmem>>, vector<1x4x32xf32>
    %114 = vector.shape_cast %113 : vector<1x4x32xf32> to vector<4x32xf32>
    %c5_90 = arith.constant 5 : index
    %c0_91 = arith.constant 0 : index
    %c0_92 = arith.constant 0 : index
    %115 = vector.load %arg7[%c5_90, %c0_91, %c0_92] : memref<8x32x20xf32, #tpu.memory_space<vmem>>, vector<1x32x20xf32>
    %116 = vector.shape_cast %115 : vector<1x32x20xf32> to vector<32x20xf32>
    %cst_93 = arith.constant dense<0.000000e+00> : vector<4x20xf32>
    %117 = tpu.matmul %114, %116, %cst_93 {dimension_numbers = #tpu.dot_dimension_numbers<[1], [0], [0], [1], [0, 0, 1, 1], [], []>} : vector<4x32xf32>, vector<32x20xf32>, vector<4x20xf32> -> vector<4x20xf32>
    %118 = arith.addf %112, %117 : vector<4x20xf32>
    %c0_94 = arith.constant 0 : index
    %c6 = arith.constant 6 : index
    %c0_95 = arith.constant 0 : index
    %119 = vector.load %arg12[%c0_94, %c6, %c0_95] : memref<2x11x32xf32, #tpu.memory_space<vmem>>, vector<1x4x32xf32>
    %120 = vector.shape_cast %119 : vector<1x4x32xf32> to vector<4x32xf32>
    %c6_96 = arith.constant 6 : index
    %c0_97 = arith.constant 0 : index
    %c0_98 = arith.constant 0 : index
    %121 = vector.load %arg7[%c6_96, %c0_97, %c0_98] : memref<8x32x20xf32, #tpu.memory_space<vmem>>, vector<1x32x20xf32>
    %122 = vector.shape_cast %121 : vector<1x32x20xf32> to vector<32x20xf32>
    %cst_99 = arith.constant dense<0.000000e+00> : vector<4x20xf32>
    %123 = tpu.matmul %120, %122, %cst_99 {dimension_numbers = #tpu.dot_dimension_numbers<[1], [0], [0], [1], [0, 0, 1, 1], [], []>} : vector<4x32xf32>, vector<32x20xf32>, vector<4x20xf32> -> vector<4x20xf32>
    %124 = arith.addf %118, %123 : vector<4x20xf32>
    %c0_100 = arith.constant 0 : index
    %c7 = arith.constant 7 : index
    %c0_101 = arith.constant 0 : index
    %125 = vector.load %arg12[%c0_100, %c7, %c0_101] : memref<2x11x32xf32, #tpu.memory_space<vmem>>, vector<1x4x32xf32>
    %126 = vector.shape_cast %125 : vector<1x4x32xf32> to vector<4x32xf32>
    %c7_102 = arith.constant 7 : index
    %c0_103 = arith.constant 0 : index
    %c0_104 = arith.constant 0 : index
    %127 = vector.load %arg7[%c7_102, %c0_103, %c0_104] : memref<8x32x20xf32, #tpu.memory_space<vmem>>, vector<1x32x20xf32>
    %128 = vector.shape_cast %127 : vector<1x32x20xf32> to vector<32x20xf32>
    %cst_105 = arith.constant dense<0.000000e+00> : vector<4x20xf32>
    %129 = tpu.matmul %126, %128, %cst_105 {dimension_numbers = #tpu.dot_dimension_numbers<[1], [0], [0], [1], [0, 0, 1, 1], [], []>} : vector<4x32xf32>, vector<32x20xf32>, vector<4x20xf32> -> vector<4x20xf32>
    %130 = arith.addf %124, %129 : vector<4x20xf32>
    %c0_106 = arith.constant 0 : index
    %c0_107 = arith.constant 0 : index
    %131 = vector.load %arg8[%c0_106, %c0_107] : memref<3x20xf32, #tpu.memory_space<vmem>>, vector<1x20xf32>
    %132 = vector.shape_cast %131 : vector<1x20xf32> to vector<20xf32>
    %133 = vector.shape_cast %132 : vector<20xf32> to vector<1x20xf32>
    %134 = vector.broadcast %133 : vector<1x20xf32> to vector<4x20xf32>
    %135 = arith.addf %130, %134 : vector<4x20xf32>
    %cst_108 = arith.constant 0.000000e+00 : f32
    %136 = vector.broadcast %cst_108 : f32 to vector<4x20xf32>
    %137 = arith.cmpf ogt, %135, %136 : vector<4x20xf32>
    %138 = math.exp %135 : vector<4x20xf32>
    %cst_109 = arith.constant 1.000000e+00 : f32
    %139 = vector.broadcast %cst_109 : f32 to vector<4x20xf32>
    %140 = arith.subf %138, %139 : vector<4x20xf32>
    %141 = arith.select %137, %135, %140 : vector<4x20xi1>, vector<4x20xf32>
    %c1_110 = arith.constant 1 : index
    %c0_111 = arith.constant 0 : index
    %142 = vector.load %arg8[%c1_110, %c0_111] : memref<3x20xf32, #tpu.memory_space<vmem>>, vector<1x20xf32>
    %143 = vector.shape_cast %142 : vector<1x20xf32> to vector<20xf32>
    %144 = vector.shape_cast %143 : vector<20xf32> to vector<1x20xf32>
    %145 = vector.broadcast %144 : vector<1x20xf32> to vector<4x20xf32>
    %146 = arith.mulf %141, %145 : vector<4x20xf32>
    %c2_112 = arith.constant 2 : index
    %c0_113 = arith.constant 0 : index
    %147 = vector.load %arg8[%c2_112, %c0_113] : memref<3x20xf32, #tpu.memory_space<vmem>>, vector<1x20xf32>
    %148 = vector.shape_cast %147 : vector<1x20xf32> to vector<20xf32>
    %149 = vector.shape_cast %148 : vector<20xf32> to vector<1x20xf32>
    %150 = vector.broadcast %149 : vector<1x20xf32> to vector<4x20xf32>
    %151 = arith.addf %146, %150 : vector<4x20xf32>
    %cst_114 = arith.constant 0.000000e+00 : f32
    %152 = vector.broadcast %cst_114 : f32 to vector<1x1xf32>
    %c8 = arith.constant 8 : index
    %153 = memref.load %arg9[%c8] : memref<9xf32, #tpu.memory_space<smem>>
    %154 = vector.broadcast %153 : f32 to vector<1x1xf32>
    %155 = arith.addf %152, %154 : vector<1x1xf32>
    %156 = vector.extract_strided_slice %151 {offsets = [0, 0], sizes = [4, 5], strides = [1, 1]} : vector<4x20xf32> to vector<4x5xf32>
    %157 = vector.extract_strided_slice %156 {offsets = [0, 0], sizes = [1, 5], strides = [1, 1]} : vector<4x5xf32> to vector<1x5xf32>
    %158 = vector.extract_strided_slice %156 {offsets = [1, 0], sizes = [1, 5], strides = [1, 1]} : vector<4x5xf32> to vector<1x5xf32>
    %159 = arith.maximumf %157, %158 : vector<1x5xf32>
    %160 = vector.extract_strided_slice %159 {offsets = [0, 0], sizes = [1, 4], strides = [1, 1]} : vector<1x5xf32> to vector<1x4xf32>
    %cst_115 = arith.constant dense<0xFF800000> : vector<1xf32>
    %161 = vector.multi_reduction <maximumf>, %160, %cst_115 [1] : vector<1x4xf32> to vector<1xf32>
    %162 = vector.shape_cast %161 : vector<1xf32> to vector<1x1xf32>
    %c0_116 = arith.constant 0 : index
    %163 = memref.load %arg9[%c0_116] : memref<9xf32, #tpu.memory_space<smem>>
    %164 = vector.broadcast %163 : f32 to vector<1x1xf32>
    %165 = arith.mulf %162, %164 : vector<1x1xf32>
    %166 = arith.addf %155, %165 : vector<1x1xf32>
    %167 = vector.extract_strided_slice %156 {offsets = [2, 0], sizes = [1, 5], strides = [1, 1]} : vector<4x5xf32> to vector<1x5xf32>
    %168 = vector.extract_strided_slice %156 {offsets = [3, 0], sizes = [1, 5], strides = [1, 1]} : vector<4x5xf32> to vector<1x5xf32>
    %169 = arith.maximumf %167, %168 : vector<1x5xf32>
    %170 = vector.extract_strided_slice %169 {offsets = [0, 0], sizes = [1, 4], strides = [1, 1]} : vector<1x5xf32> to vector<1x4xf32>
    %cst_117 = arith.constant dense<0xFF800000> : vector<1xf32>
    %171 = vector.multi_reduction <maximumf>, %170, %cst_117 [1] : vector<1x4xf32> to vector<1xf32>
    %172 = vector.shape_cast %171 : vector<1xf32> to vector<1x1xf32>
    %c1_118 = arith.constant 1 : index
    %173 = memref.load %arg9[%c1_118] : memref<9xf32, #tpu.memory_space<smem>>
    %174 = vector.broadcast %173 : f32 to vector<1x1xf32>
    %175 = arith.mulf %172, %174 : vector<1x1xf32>
    %176 = arith.addf %166, %175 : vector<1x1xf32>
    %177 = vector.extract_strided_slice %151 {offsets = [0, 5], sizes = [4, 5], strides = [1, 1]} : vector<4x20xf32> to vector<4x5xf32>
    %178 = vector.extract_strided_slice %177 {offsets = [0, 0], sizes = [1, 5], strides = [1, 1]} : vector<4x5xf32> to vector<1x5xf32>
    %179 = vector.extract_strided_slice %177 {offsets = [1, 0], sizes = [1, 5], strides = [1, 1]} : vector<4x5xf32> to vector<1x5xf32>
    %180 = arith.maximumf %178, %179 : vector<1x5xf32>
    %181 = vector.extract_strided_slice %180 {offsets = [0, 0], sizes = [1, 4], strides = [1, 1]} : vector<1x5xf32> to vector<1x4xf32>
    %cst_119 = arith.constant dense<0xFF800000> : vector<1xf32>
    %182 = vector.multi_reduction <maximumf>, %181, %cst_119 [1] : vector<1x4xf32> to vector<1xf32>
    %183 = vector.shape_cast %182 : vector<1xf32> to vector<1x1xf32>
    %c2_120 = arith.constant 2 : index
    %184 = memref.load %arg9[%c2_120] : memref<9xf32, #tpu.memory_space<smem>>
    %185 = vector.broadcast %184 : f32 to vector<1x1xf32>
    %186 = arith.mulf %183, %185 : vector<1x1xf32>
    %187 = arith.addf %176, %186 : vector<1x1xf32>
    %188 = vector.extract_strided_slice %177 {offsets = [2, 0], sizes = [1, 5], strides = [1, 1]} : vector<4x5xf32> to vector<1x5xf32>
    %189 = vector.extract_strided_slice %177 {offsets = [3, 0], sizes = [1, 5], strides = [1, 1]} : vector<4x5xf32> to vector<1x5xf32>
    %190 = arith.maximumf %188, %189 : vector<1x5xf32>
    %191 = vector.extract_strided_slice %190 {offsets = [0, 0], sizes = [1, 4], strides = [1, 1]} : vector<1x5xf32> to vector<1x4xf32>
    %cst_121 = arith.constant dense<0xFF800000> : vector<1xf32>
    %192 = vector.multi_reduction <maximumf>, %191, %cst_121 [1] : vector<1x4xf32> to vector<1xf32>
    %193 = vector.shape_cast %192 : vector<1xf32> to vector<1x1xf32>
    %c3_122 = arith.constant 3 : index
    %194 = memref.load %arg9[%c3_122] : memref<9xf32, #tpu.memory_space<smem>>
    %195 = vector.broadcast %194 : f32 to vector<1x1xf32>
    %196 = arith.mulf %193, %195 : vector<1x1xf32>
    %197 = arith.addf %187, %196 : vector<1x1xf32>
    %198 = vector.extract_strided_slice %151 {offsets = [0, 10], sizes = [4, 5], strides = [1, 1]} : vector<4x20xf32> to vector<4x5xf32>
    %199 = vector.extract_strided_slice %198 {offsets = [0, 0], sizes = [1, 5], strides = [1, 1]} : vector<4x5xf32> to vector<1x5xf32>
    %200 = vector.extract_strided_slice %198 {offsets = [1, 0], sizes = [1, 5], strides = [1, 1]} : vector<4x5xf32> to vector<1x5xf32>
    %201 = arith.maximumf %199, %200 : vector<1x5xf32>
    %202 = vector.extract_strided_slice %201 {offsets = [0, 0], sizes = [1, 4], strides = [1, 1]} : vector<1x5xf32> to vector<1x4xf32>
    %cst_123 = arith.constant dense<0xFF800000> : vector<1xf32>
    %203 = vector.multi_reduction <maximumf>, %202, %cst_123 [1] : vector<1x4xf32> to vector<1xf32>
    %204 = vector.shape_cast %203 : vector<1xf32> to vector<1x1xf32>
    %c4_124 = arith.constant 4 : index
    %205 = memref.load %arg9[%c4_124] : memref<9xf32, #tpu.memory_space<smem>>
    %206 = vector.broadcast %205 : f32 to vector<1x1xf32>
    %207 = arith.mulf %204, %206 : vector<1x1xf32>
    %208 = arith.addf %197, %207 : vector<1x1xf32>
    %209 = vector.extract_strided_slice %198 {offsets = [2, 0], sizes = [1, 5], strides = [1, 1]} : vector<4x5xf32> to vector<1x5xf32>
    %210 = vector.extract_strided_slice %198 {offsets = [3, 0], sizes = [1, 5], strides = [1, 1]} : vector<4x5xf32> to vector<1x5xf32>
    %211 = arith.maximumf %209, %210 : vector<1x5xf32>
    %212 = vector.extract_strided_slice %211 {offsets = [0, 0], sizes = [1, 4], strides = [1, 1]} : vector<1x5xf32> to vector<1x4xf32>
    %cst_125 = arith.constant dense<0xFF800000> : vector<1xf32>
    %213 = vector.multi_reduction <maximumf>, %212, %cst_125 [1] : vector<1x4xf32> to vector<1xf32>
    %214 = vector.shape_cast %213 : vector<1xf32> to vector<1x1xf32>
    %c5_126 = arith.constant 5 : index
    %215 = memref.load %arg9[%c5_126] : memref<9xf32, #tpu.memory_space<smem>>
    %216 = vector.broadcast %215 : f32 to vector<1x1xf32>
    %217 = arith.mulf %214, %216 : vector<1x1xf32>
    %218 = arith.addf %208, %217 : vector<1x1xf32>
    %219 = vector.extract_strided_slice %151 {offsets = [0, 15], sizes = [4, 5], strides = [1, 1]} : vector<4x20xf32> to vector<4x5xf32>
    %220 = vector.extract_strided_slice %219 {offsets = [0, 0], sizes = [1, 5], strides = [1, 1]} : vector<4x5xf32> to vector<1x5xf32>
    %221 = vector.extract_strided_slice %219 {offsets = [1, 0], sizes = [1, 5], strides = [1, 1]} : vector<4x5xf32> to vector<1x5xf32>
    %222 = arith.maximumf %220, %221 : vector<1x5xf32>
    %223 = vector.extract_strided_slice %222 {offsets = [0, 0], sizes = [1, 4], strides = [1, 1]} : vector<1x5xf32> to vector<1x4xf32>
    %cst_127 = arith.constant dense<0xFF800000> : vector<1xf32>
    %224 = vector.multi_reduction <maximumf>, %223, %cst_127 [1] : vector<1x4xf32> to vector<1xf32>
    %225 = vector.shape_cast %224 : vector<1xf32> to vector<1x1xf32>
    %c6_128 = arith.constant 6 : index
    %226 = memref.load %arg9[%c6_128] : memref<9xf32, #tpu.memory_space<smem>>
    %227 = vector.broadcast %226 : f32 to vector<1x1xf32>
    %228 = arith.mulf %225, %227 : vector<1x1xf32>
    %229 = arith.addf %218, %228 : vector<1x1xf32>
    %230 = vector.extract_strided_slice %219 {offsets = [2, 0], sizes = [1, 5], strides = [1, 1]} : vector<4x5xf32> to vector<1x5xf32>
    %231 = vector.extract_strided_slice %219 {offsets = [3, 0], sizes = [1, 5], strides = [1, 1]} : vector<4x5xf32> to vector<1x5xf32>
    %232 = arith.maximumf %230, %231 : vector<1x5xf32>
    %233 = vector.extract_strided_slice %232 {offsets = [0, 0], sizes = [1, 4], strides = [1, 1]} : vector<1x5xf32> to vector<1x4xf32>
    %cst_129 = arith.constant dense<0xFF800000> : vector<1xf32>
    %234 = vector.multi_reduction <maximumf>, %233, %cst_129 [1] : vector<1x4xf32> to vector<1xf32>
    %235 = vector.shape_cast %234 : vector<1xf32> to vector<1x1xf32>
    %c7_130 = arith.constant 7 : index
    %236 = memref.load %arg9[%c7_130] : memref<9xf32, #tpu.memory_space<smem>>
    %237 = vector.broadcast %236 : f32 to vector<1x1xf32>
    %238 = arith.mulf %235, %237 : vector<1x1xf32>
    %239 = arith.addf %229, %238 : vector<1x1xf32>
    %cst_131 = arith.constant 0.000000e+00 : f32
    %240 = vector.broadcast %cst_131 : f32 to vector<1x1xf32>
    %241 = arith.subf %240, %239 : vector<1x1xf32>
    %242 = math.exp %241 : vector<1x1xf32>
    %cst_132 = arith.constant 1.000000e+00 : f32
    %243 = vector.broadcast %cst_132 : f32 to vector<1x1xf32>
    %244 = arith.addf %243, %242 : vector<1x1xf32>
    %cst_133 = arith.constant 1.000000e+00 : f32
    %245 = vector.broadcast %cst_133 : f32 to vector<1x1xf32>
    %246 = arith.divf %245, %244 : vector<1x1xf32>
    %c0_134 = arith.constant 0 : index
    %c0_135 = arith.constant 0 : index
    %247 = vector.load %arg10[%c0_134, %c0_135] : memref<2x1xf32, #tpu.memory_space<vmem>>, vector<1x1xf32>
    tpu.vector_store %arg10[%c0_134, %c0_135], %246 {strides = array<i32>} : memref<2x1xf32, #tpu.memory_space<vmem>>, vector<1x1xf32>,
    %c1_136 = arith.constant 1 : index
    %c0_137 = arith.constant 0 : index
    %c0_138 = arith.constant 0 : index
    %248 = vector.load %arg0[%c1_136, %c0_137, %c0_138] : memref<2x30x16xf32, #tpu.memory_space<vmem>>, vector<1x30x16xf32>
    %249 = vector.shape_cast %248 : vector<1x30x16xf32> to vector<30x16xf32>
    %cst_139 = arith.constant dense<0.000000e+00> : vector<16x16xf32>
    %250 = tpu.matmul %4, %249, %cst_139 {dimension_numbers = #tpu.dot_dimension_numbers<[1], [0], [0], [1], [0, 0, 1, 1], [], []>} : vector<16x30xf32>, vector<30x16xf32>, vector<16x16xf32> -> vector<16x16xf32>
    %c0_140 = arith.constant 0 : index
    %c0_141 = arith.constant 0 : index
    %c0_142 = arith.constant 0 : index
    %251 = vector.load %arg2[%c0_140, %c0_141, %c0_142] : memref<3x16x1xf32, #tpu.memory_space<vmem>>, vector<1x16x1xf32>
    %252 = vector.shape_cast %251 : vector<1x16x1xf32> to vector<16x1xf32>
    %253 = vector.broadcast %252 : vector<16x1xf32> to vector<16x16xf32>
    %254 = arith.addf %250, %253 : vector<16x16xf32>
    %cst_143 = arith.constant 0.000000e+00 : f32
    %255 = vector.broadcast %cst_143 : f32 to vector<16x16xf32>
    %256 = arith.cmpf ogt, %254, %255 : vector<16x16xf32>
    %257 = math.exp %254 : vector<16x16xf32>
    %cst_144 = arith.constant 1.000000e+00 : f32
    %258 = vector.broadcast %cst_144 : f32 to vector<16x16xf32>
    %259 = arith.subf %257, %258 : vector<16x16xf32>
    %260 = arith.select %256, %254, %259 : vector<16x16xi1>, vector<16x16xf32>
    %c1_145 = arith.constant 1 : index
    %c0_146 = arith.constant 0 : index
    %c0_147 = arith.constant 0 : index
    %261 = vector.load %arg2[%c1_145, %c0_146, %c0_147] : memref<3x16x1xf32, #tpu.memory_space<vmem>>, vector<1x16x1xf32>
    %262 = vector.shape_cast %261 : vector<1x16x1xf32> to vector<16x1xf32>
    %263 = vector.broadcast %262 : vector<16x1xf32> to vector<16x16xf32>
    %264 = arith.mulf %260, %263 : vector<16x16xf32>
    %c2_148 = arith.constant 2 : index
    %c0_149 = arith.constant 0 : index
    %c0_150 = arith.constant 0 : index
    %265 = vector.load %arg2[%c2_148, %c0_149, %c0_150] : memref<3x16x1xf32, #tpu.memory_space<vmem>>, vector<1x16x1xf32>
    %266 = vector.shape_cast %265 : vector<1x16x1xf32> to vector<16x1xf32>
    %267 = vector.broadcast %266 : vector<16x1xf32> to vector<16x16xf32>
    %268 = arith.addf %264, %267 : vector<16x16xf32>
    %c1_151 = arith.constant 1 : index
    %c0_152 = arith.constant 0 : index
    %c16_153 = arith.constant 16 : index
    %269 = vector.load %arg11[%c1_151, %c0_152, %c16_153] : memref<2x17x49xf32, #tpu.memory_space<vmem>>, vector<1x16x16xf32>
    %270 = vector.shape_cast %269 : vector<1x16x16xf32> to vector<16x16xf32>
    %271 = vector.shape_cast %268 : vector<16x16xf32> to vector<1x16x16xf32>
    tpu.vector_store %arg11[%c1_151, %c0_152, %c16_153], %271 {strides = array<i32>} : memref<2x17x49xf32, #tpu.memory_space<vmem>>, vector<1x16x16xf32>,
    %c1_154 = arith.constant 1 : index
    %c0_155 = arith.constant 0 : index
    %c0_156 = arith.constant 0 : index
    %272 = vector.load %arg11[%c1_154, %c0_155, %c0_156] : memref<2x17x49xf32, #tpu.memory_space<vmem>>, vector<1x16x49xf32>
    %273 = vector.shape_cast %272 : vector<1x16x49xf32> to vector<16x49xf32>
    %c0_157 = arith.constant 0 : index
    %c0_158 = arith.constant 0 : index
    %c0_159 = arith.constant 0 : index
    %274 = vector.load %arg3[%c0_157, %c0_158, %c0_159] : memref<2x49x72xf32, #tpu.memory_space<vmem>>, vector<1x49x72xf32>
    %275 = vector.shape_cast %274 : vector<1x49x72xf32> to vector<49x72xf32>
    %cst_160 = arith.constant dense<0.000000e+00> : vector<16x72xf32>
    %276 = tpu.matmul %273, %275, %cst_160 {dimension_numbers = #tpu.dot_dimension_numbers<[1], [0], [0], [1], [0, 0, 1, 1], [], []>} : vector<16x49xf32>, vector<49x72xf32>, vector<16x72xf32> -> vector<16x72xf32>
    %c1_161 = arith.constant 1 : index
    %c1_162 = arith.constant 1 : index
    %c0_163 = arith.constant 0 : index
    %277 = vector.load %arg11[%c1_161, %c1_162, %c0_163] : memref<2x17x49xf32, #tpu.memory_space<vmem>>, vector<1x16x49xf32>
    %278 = vector.shape_cast %277 : vector<1x16x49xf32> to vector<16x49xf32>
    %c1_164 = arith.constant 1 : index
    %c0_165 = arith.constant 0 : index
    %c0_166 = arith.constant 0 : index
    %279 = vector.load %arg3[%c1_164, %c0_165, %c0_166] : memref<2x49x72xf32, #tpu.memory_space<vmem>>, vector<1x49x72xf32>
    %280 = vector.shape_cast %279 : vector<1x49x72xf32> to vector<49x72xf32>
    %cst_167 = arith.constant dense<0.000000e+00> : vector<16x72xf32>
    %281 = tpu.matmul %278, %280, %cst_167 {dimension_numbers = #tpu.dot_dimension_numbers<[1], [0], [0], [1], [0, 0, 1, 1], [], []>} : vector<16x49xf32>, vector<49x72xf32>, vector<16x72xf32> -> vector<16x72xf32>
    %282 = arith.addf %276, %281 : vector<16x72xf32>
    %c0_168 = arith.constant 0 : index
    %c0_169 = arith.constant 0 : index
    %283 = vector.load %arg4[%c0_168, %c0_169] : memref<3x72xf32, #tpu.memory_space<vmem>>, vector<1x72xf32>
    %284 = vector.shape_cast %283 : vector<1x72xf32> to vector<72xf32>
    %285 = vector.shape_cast %284 : vector<72xf32> to vector<1x72xf32>
    %286 = vector.broadcast %285 : vector<1x72xf32> to vector<16x72xf32>
    %287 = arith.addf %282, %286 : vector<16x72xf32>
    %cst_170 = arith.constant 0.000000e+00 : f32
    %288 = vector.broadcast %cst_170 : f32 to vector<16x72xf32>
    %289 = arith.cmpf ogt, %287, %288 : vector<16x72xf32>
    %290 = math.exp %287 : vector<16x72xf32>
    %cst_171 = arith.constant 1.000000e+00 : f32
    %291 = vector.broadcast %cst_171 : f32 to vector<16x72xf32>
    %292 = arith.subf %290, %291 : vector<16x72xf32>
    %293 = arith.select %289, %287, %292 : vector<16x72xi1>, vector<16x72xf32>
    %c1_172 = arith.constant 1 : index
    %c0_173 = arith.constant 0 : index
    %294 = vector.load %arg4[%c1_172, %c0_173] : memref<3x72xf32, #tpu.memory_space<vmem>>, vector<1x72xf32>
    %295 = vector.shape_cast %294 : vector<1x72xf32> to vector<72xf32>
    %296 = vector.shape_cast %295 : vector<72xf32> to vector<1x72xf32>
    %297 = vector.broadcast %296 : vector<1x72xf32> to vector<16x72xf32>
    %298 = arith.mulf %293, %297 : vector<16x72xf32>
    %c2_174 = arith.constant 2 : index
    %c0_175 = arith.constant 0 : index
    %299 = vector.load %arg4[%c2_174, %c0_175] : memref<3x72xf32, #tpu.memory_space<vmem>>, vector<1x72xf32>
    %300 = vector.shape_cast %299 : vector<1x72xf32> to vector<72xf32>
    %301 = vector.shape_cast %300 : vector<72xf32> to vector<1x72xf32>
    %302 = vector.broadcast %301 : vector<1x72xf32> to vector<16x72xf32>
    %303 = arith.addf %298, %302 : vector<16x72xf32>
    %304 = vector.extract_strided_slice %303 {offsets = [0, 0], sizes = [1, 72], strides = [1, 1]} : vector<16x72xf32> to vector<1x72xf32>
    %305 = vector.extract_strided_slice %303 {offsets = [1, 0], sizes = [1, 72], strides = [1, 1]} : vector<16x72xf32> to vector<1x72xf32>
    %306 = arith.maximumf %304, %305 : vector<1x72xf32>
    %307 = vector.extract_strided_slice %303 {offsets = [4, 0], sizes = [1, 72], strides = [1, 1]} : vector<16x72xf32> to vector<1x72xf32>
    %308 = vector.extract_strided_slice %303 {offsets = [5, 0], sizes = [1, 72], strides = [1, 1]} : vector<16x72xf32> to vector<1x72xf32>
    %309 = arith.maximumf %307, %308 : vector<1x72xf32>
    %310 = vector.extract_strided_slice %303 {offsets = [8, 0], sizes = [1, 72], strides = [1, 1]} : vector<16x72xf32> to vector<1x72xf32>
    %311 = vector.extract_strided_slice %303 {offsets = [9, 0], sizes = [1, 72], strides = [1, 1]} : vector<16x72xf32> to vector<1x72xf32>
    %312 = arith.maximumf %310, %311 : vector<1x72xf32>
    %313 = vector.extract_strided_slice %303 {offsets = [12, 0], sizes = [1, 72], strides = [1, 1]} : vector<16x72xf32> to vector<1x72xf32>
    %314 = vector.extract_strided_slice %303 {offsets = [13, 0], sizes = [1, 72], strides = [1, 1]} : vector<16x72xf32> to vector<1x72xf32>
    %315 = arith.maximumf %313, %314 : vector<1x72xf32>
    %316 = tpu.concatenate %306, %309, %312, %315 in 0 : vector<1x72xf32>, vector<1x72xf32>, vector<1x72xf32>, vector<1x72xf32> -> vector<4x72xf32>
    %cst_176 = arith.constant dense<0.000000e+00> : vector<4x32xf32>
    %317 = tpu.matmul %316, %5, %cst_176 {dimension_numbers = #tpu.dot_dimension_numbers<[1], [0], [0], [1], [0, 0, 1, 1], [], []>} : vector<4x72xf32>, vector<72x32xf32>, vector<4x32xf32> -> vector<4x32xf32>
    %cst_177 = arith.constant dense<0.000000e+00> : vector<4x32xf32>
    %318 = tpu.matmul %316, %6, %cst_177 {dimension_numbers = #tpu.dot_dimension_numbers<[1], [0], [0], [1], [0, 0, 1, 1], [], []>} : vector<4x72xf32>, vector<72x32xf32>, vector<4x32xf32> -> vector<4x32xf32>
    %319 = arith.maximumf %317, %318 : vector<4x32xf32>
    %c1_178 = arith.constant 1 : index
    %c4_179 = arith.constant 4 : index
    %c0_180 = arith.constant 0 : index
    %320 = vector.load %arg12[%c1_178, %c4_179, %c0_180] : memref<2x11x32xf32, #tpu.memory_space<vmem>>, vector<1x4x32xf32>
    %321 = vector.shape_cast %320 : vector<1x4x32xf32> to vector<4x32xf32>
    %322 = vector.shape_cast %319 : vector<4x32xf32> to vector<1x4x32xf32>
    tpu.vector_store %arg12[%c1_178, %c4_179, %c0_180], %322 {strides = array<i32>} : memref<2x11x32xf32, #tpu.memory_space<vmem>>, vector<1x4x32xf32>,
    %cst_181 = arith.constant 0.000000e+00 : f32
    %323 = vector.broadcast %cst_181 : f32 to vector<4x20xf32>
    %c1_182 = arith.constant 1 : index
    %c0_183 = arith.constant 0 : index
    %c0_184 = arith.constant 0 : index
    %324 = vector.load %arg12[%c1_182, %c0_183, %c0_184] : memref<2x11x32xf32, #tpu.memory_space<vmem>>, vector<1x4x32xf32>
    %325 = vector.shape_cast %324 : vector<1x4x32xf32> to vector<4x32xf32>
    %c0_185 = arith.constant 0 : index
    %c0_186 = arith.constant 0 : index
    %c0_187 = arith.constant 0 : index
    %326 = vector.load %arg7[%c0_185, %c0_186, %c0_187] : memref<8x32x20xf32, #tpu.memory_space<vmem>>, vector<1x32x20xf32>
    %327 = vector.shape_cast %326 : vector<1x32x20xf32> to vector<32x20xf32>
    %cst_188 = arith.constant dense<0.000000e+00> : vector<4x20xf32>
    %328 = tpu.matmul %325, %327, %cst_188 {dimension_numbers = #tpu.dot_dimension_numbers<[1], [0], [0], [1], [0, 0, 1, 1], [], []>} : vector<4x32xf32>, vector<32x20xf32>, vector<4x20xf32> -> vector<4x20xf32>
    %329 = arith.addf %323, %328 : vector<4x20xf32>
    %c1_189 = arith.constant 1 : index
    %c1_190 = arith.constant 1 : index
    %c0_191 = arith.constant 0 : index
    %330 = vector.load %arg12[%c1_189, %c1_190, %c0_191] : memref<2x11x32xf32, #tpu.memory_space<vmem>>, vector<1x4x32xf32>
    %331 = vector.shape_cast %330 : vector<1x4x32xf32> to vector<4x32xf32>
    %c1_192 = arith.constant 1 : index
    %c0_193 = arith.constant 0 : index
    %c0_194 = arith.constant 0 : index
    %332 = vector.load %arg7[%c1_192, %c0_193, %c0_194] : memref<8x32x20xf32, #tpu.memory_space<vmem>>, vector<1x32x20xf32>
    %333 = vector.shape_cast %332 : vector<1x32x20xf32> to vector<32x20xf32>
    %cst_195 = arith.constant dense<0.000000e+00> : vector<4x20xf32>
    %334 = tpu.matmul %331, %333, %cst_195 {dimension_numbers = #tpu.dot_dimension_numbers<[1], [0], [0], [1], [0, 0, 1, 1], [], []>} : vector<4x32xf32>, vector<32x20xf32>, vector<4x20xf32> -> vector<4x20xf32>
    %335 = arith.addf %329, %334 : vector<4x20xf32>
    %c1_196 = arith.constant 1 : index
    %c2_197 = arith.constant 2 : index
    %c0_198 = arith.constant 0 : index
    %336 = vector.load %arg12[%c1_196, %c2_197, %c0_198] : memref<2x11x32xf32, #tpu.memory_space<vmem>>, vector<1x4x32xf32>
    %337 = vector.shape_cast %336 : vector<1x4x32xf32> to vector<4x32xf32>
    %c2_199 = arith.constant 2 : index
    %c0_200 = arith.constant 0 : index
    %c0_201 = arith.constant 0 : index
    %338 = vector.load %arg7[%c2_199, %c0_200, %c0_201] : memref<8x32x20xf32, #tpu.memory_space<vmem>>, vector<1x32x20xf32>
    %339 = vector.shape_cast %338 : vector<1x32x20xf32> to vector<32x20xf32>
    %cst_202 = arith.constant dense<0.000000e+00> : vector<4x20xf32>
    %340 = tpu.matmul %337, %339, %cst_202 {dimension_numbers = #tpu.dot_dimension_numbers<[1], [0], [0], [1], [0, 0, 1, 1], [], []>} : vector<4x32xf32>, vector<32x20xf32>, vector<4x20xf32> -> vector<4x20xf32>
    %341 = arith.addf %335, %340 : vector<4x20xf32>
    %c1_203 = arith.constant 1 : index
    %c3_204 = arith.constant 3 : index
    %c0_205 = arith.constant 0 : index
    %342 = vector.load %arg12[%c1_203, %c3_204, %c0_205] : memref<2x11x32xf32, #tpu.memory_space<vmem>>, vector<1x4x32xf32>
    %343 = vector.shape_cast %342 : vector<1x4x32xf32> to vector<4x32xf32>
    %c3_206 = arith.constant 3 : index
    %c0_207 = arith.constant 0 : index
    %c0_208 = arith.constant 0 : index
    %344 = vector.load %arg7[%c3_206, %c0_207, %c0_208] : memref<8x32x20xf32, #tpu.memory_space<vmem>>, vector<1x32x20xf32>
    %345 = vector.shape_cast %344 : vector<1x32x20xf32> to vector<32x20xf32>
    %cst_209 = arith.constant dense<0.000000e+00> : vector<4x20xf32>
    %346 = tpu.matmul %343, %345, %cst_209 {dimension_numbers = #tpu.dot_dimension_numbers<[1], [0], [0], [1], [0, 0, 1, 1], [], []>} : vector<4x32xf32>, vector<32x20xf32>, vector<4x20xf32> -> vector<4x20xf32>
    %347 = arith.addf %341, %346 : vector<4x20xf32>
    %c1_210 = arith.constant 1 : index
    %c4_211 = arith.constant 4 : index
    %c0_212 = arith.constant 0 : index
    %348 = vector.load %arg12[%c1_210, %c4_211, %c0_212] : memref<2x11x32xf32, #tpu.memory_space<vmem>>, vector<1x4x32xf32>
    %349 = vector.shape_cast %348 : vector<1x4x32xf32> to vector<4x32xf32>
    %c4_213 = arith.constant 4 : index
    %c0_214 = arith.constant 0 : index
    %c0_215 = arith.constant 0 : index
    %350 = vector.load %arg7[%c4_213, %c0_214, %c0_215] : memref<8x32x20xf32, #tpu.memory_space<vmem>>, vector<1x32x20xf32>
    %351 = vector.shape_cast %350 : vector<1x32x20xf32> to vector<32x20xf32>
    %cst_216 = arith.constant dense<0.000000e+00> : vector<4x20xf32>
    %352 = tpu.matmul %349, %351, %cst_216 {dimension_numbers = #tpu.dot_dimension_numbers<[1], [0], [0], [1], [0, 0, 1, 1], [], []>} : vector<4x32xf32>, vector<32x20xf32>, vector<4x20xf32> -> vector<4x20xf32>
    %353 = arith.addf %347, %352 : vector<4x20xf32>
    %c1_217 = arith.constant 1 : index
    %c5_218 = arith.constant 5 : index
    %c0_219 = arith.constant 0 : index
    %354 = vector.load %arg12[%c1_217, %c5_218, %c0_219] : memref<2x11x32xf32, #tpu.memory_space<vmem>>, vector<1x4x32xf32>
    %355 = vector.shape_cast %354 : vector<1x4x32xf32> to vector<4x32xf32>
    %c5_220 = arith.constant 5 : index
    %c0_221 = arith.constant 0 : index
    %c0_222 = arith.constant 0 : index
    %356 = vector.load %arg7[%c5_220, %c0_221, %c0_222] : memref<8x32x20xf32, #tpu.memory_space<vmem>>, vector<1x32x20xf32>
    %357 = vector.shape_cast %356 : vector<1x32x20xf32> to vector<32x20xf32>
    %cst_223 = arith.constant dense<0.000000e+00> : vector<4x20xf32>
    %358 = tpu.matmul %355, %357, %cst_223 {dimension_numbers = #tpu.dot_dimension_numbers<[1], [0], [0], [1], [0, 0, 1, 1], [], []>} : vector<4x32xf32>, vector<32x20xf32>, vector<4x20xf32> -> vector<4x20xf32>
    %359 = arith.addf %353, %358 : vector<4x20xf32>
    %c1_224 = arith.constant 1 : index
    %c6_225 = arith.constant 6 : index
    %c0_226 = arith.constant 0 : index
    %360 = vector.load %arg12[%c1_224, %c6_225, %c0_226] : memref<2x11x32xf32, #tpu.memory_space<vmem>>, vector<1x4x32xf32>
    %361 = vector.shape_cast %360 : vector<1x4x32xf32> to vector<4x32xf32>
    %c6_227 = arith.constant 6 : index
    %c0_228 = arith.constant 0 : index
    %c0_229 = arith.constant 0 : index
    %362 = vector.load %arg7[%c6_227, %c0_228, %c0_229] : memref<8x32x20xf32, #tpu.memory_space<vmem>>, vector<1x32x20xf32>
    %363 = vector.shape_cast %362 : vector<1x32x20xf32> to vector<32x20xf32>
    %cst_230 = arith.constant dense<0.000000e+00> : vector<4x20xf32>
    %364 = tpu.matmul %361, %363, %cst_230 {dimension_numbers = #tpu.dot_dimension_numbers<[1], [0], [0], [1], [0, 0, 1, 1], [], []>} : vector<4x32xf32>, vector<32x20xf32>, vector<4x20xf32> -> vector<4x20xf32>
    %365 = arith.addf %359, %364 : vector<4x20xf32>
    %c1_231 = arith.constant 1 : index
    %c7_232 = arith.constant 7 : index
    %c0_233 = arith.constant 0 : index
    %366 = vector.load %arg12[%c1_231, %c7_232, %c0_233] : memref<2x11x32xf32, #tpu.memory_space<vmem>>, vector<1x4x32xf32>
    %367 = vector.shape_cast %366 : vector<1x4x32xf32> to vector<4x32xf32>
    %c7_234 = arith.constant 7 : index
    %c0_235 = arith.constant 0 : index
    %c0_236 = arith.constant 0 : index
    %368 = vector.load %arg7[%c7_234, %c0_235, %c0_236] : memref<8x32x20xf32, #tpu.memory_space<vmem>>, vector<1x32x20xf32>
    %369 = vector.shape_cast %368 : vector<1x32x20xf32> to vector<32x20xf32>
    %cst_237 = arith.constant dense<0.000000e+00> : vector<4x20xf32>
    %370 = tpu.matmul %367, %369, %cst_237 {dimension_numbers = #tpu.dot_dimension_numbers<[1], [0], [0], [1], [0, 0, 1, 1], [], []>} : vector<4x32xf32>, vector<32x20xf32>, vector<4x20xf32> -> vector<4x20xf32>
    %371 = arith.addf %365, %370 : vector<4x20xf32>
    %c0_238 = arith.constant 0 : index
    %c0_239 = arith.constant 0 : index
    %372 = vector.load %arg8[%c0_238, %c0_239] : memref<3x20xf32, #tpu.memory_space<vmem>>, vector<1x20xf32>
    %373 = vector.shape_cast %372 : vector<1x20xf32> to vector<20xf32>
    %374 = vector.shape_cast %373 : vector<20xf32> to vector<1x20xf32>
    %375 = vector.broadcast %374 : vector<1x20xf32> to vector<4x20xf32>
    %376 = arith.addf %371, %375 : vector<4x20xf32>
    %cst_240 = arith.constant 0.000000e+00 : f32
    %377 = vector.broadcast %cst_240 : f32 to vector<4x20xf32>
    %378 = arith.cmpf ogt, %376, %377 : vector<4x20xf32>
    %379 = math.exp %376 : vector<4x20xf32>
    %cst_241 = arith.constant 1.000000e+00 : f32
    %380 = vector.broadcast %cst_241 : f32 to vector<4x20xf32>
    %381 = arith.subf %379, %380 : vector<4x20xf32>
    %382 = arith.select %378, %376, %381 : vector<4x20xi1>, vector<4x20xf32>
    %c1_242 = arith.constant 1 : index
    %c0_243 = arith.constant 0 : index
    %383 = vector.load %arg8[%c1_242, %c0_243] : memref<3x20xf32, #tpu.memory_space<vmem>>, vector<1x20xf32>
    %384 = vector.shape_cast %383 : vector<1x20xf32> to vector<20xf32>
    %385 = vector.shape_cast %384 : vector<20xf32> to vector<1x20xf32>
    %386 = vector.broadcast %385 : vector<1x20xf32> to vector<4x20xf32>
    %387 = arith.mulf %382, %386 : vector<4x20xf32>
    %c2_244 = arith.constant 2 : index
    %c0_245 = arith.constant 0 : index
    %388 = vector.load %arg8[%c2_244, %c0_245] : memref<3x20xf32, #tpu.memory_space<vmem>>, vector<1x20xf32>
    %389 = vector.shape_cast %388 : vector<1x20xf32> to vector<20xf32>
    %390 = vector.shape_cast %389 : vector<20xf32> to vector<1x20xf32>
    %391 = vector.broadcast %390 : vector<1x20xf32> to vector<4x20xf32>
    %392 = arith.addf %387, %391 : vector<4x20xf32>
    %cst_246 = arith.constant 0.000000e+00 : f32
    %393 = vector.broadcast %cst_246 : f32 to vector<1x1xf32>
    %c8_247 = arith.constant 8 : index
    %394 = memref.load %arg9[%c8_247] : memref<9xf32, #tpu.memory_space<smem>>
    %395 = vector.broadcast %394 : f32 to vector<1x1xf32>
    %396 = arith.addf %393, %395 : vector<1x1xf32>
    %397 = vector.extract_strided_slice %392 {offsets = [0, 0], sizes = [4, 5], strides = [1, 1]} : vector<4x20xf32> to vector<4x5xf32>
    %398 = vector.extract_strided_slice %397 {offsets = [0, 0], sizes = [1, 5], strides = [1, 1]} : vector<4x5xf32> to vector<1x5xf32>
    %399 = vector.extract_strided_slice %397 {offsets = [1, 0], sizes = [1, 5], strides = [1, 1]} : vector<4x5xf32> to vector<1x5xf32>
    %400 = arith.maximumf %398, %399 : vector<1x5xf32>
    %401 = vector.extract_strided_slice %400 {offsets = [0, 0], sizes = [1, 4], strides = [1, 1]} : vector<1x5xf32> to vector<1x4xf32>
    %cst_248 = arith.constant dense<0xFF800000> : vector<1xf32>
    %402 = vector.multi_reduction <maximumf>, %401, %cst_248 [1] : vector<1x4xf32> to vector<1xf32>
    %403 = vector.shape_cast %402 : vector<1xf32> to vector<1x1xf32>
    %c0_249 = arith.constant 0 : index
    %404 = memref.load %arg9[%c0_249] : memref<9xf32, #tpu.memory_space<smem>>
    %405 = vector.broadcast %404 : f32 to vector<1x1xf32>
    %406 = arith.mulf %403, %405 : vector<1x1xf32>
    %407 = arith.addf %396, %406 : vector<1x1xf32>
    %408 = vector.extract_strided_slice %397 {offsets = [2, 0], sizes = [1, 5], strides = [1, 1]} : vector<4x5xf32> to vector<1x5xf32>
    %409 = vector.extract_strided_slice %397 {offsets = [3, 0], sizes = [1, 5], strides = [1, 1]} : vector<4x5xf32> to vector<1x5xf32>
    %410 = arith.maximumf %408, %409 : vector<1x5xf32>
    %411 = vector.extract_strided_slice %410 {offsets = [0, 0], sizes = [1, 4], strides = [1, 1]} : vector<1x5xf32> to vector<1x4xf32>
    %cst_250 = arith.constant dense<0xFF800000> : vector<1xf32>
    %412 = vector.multi_reduction <maximumf>, %411, %cst_250 [1] : vector<1x4xf32> to vector<1xf32>
    %413 = vector.shape_cast %412 : vector<1xf32> to vector<1x1xf32>
    %c1_251 = arith.constant 1 : index
    %414 = memref.load %arg9[%c1_251] : memref<9xf32, #tpu.memory_space<smem>>
    %415 = vector.broadcast %414 : f32 to vector<1x1xf32>
    %416 = arith.mulf %413, %415 : vector<1x1xf32>
    %417 = arith.addf %407, %416 : vector<1x1xf32>
    %418 = vector.extract_strided_slice %392 {offsets = [0, 5], sizes = [4, 5], strides = [1, 1]} : vector<4x20xf32> to vector<4x5xf32>
    %419 = vector.extract_strided_slice %418 {offsets = [0, 0], sizes = [1, 5], strides = [1, 1]} : vector<4x5xf32> to vector<1x5xf32>
    %420 = vector.extract_strided_slice %418 {offsets = [1, 0], sizes = [1, 5], strides = [1, 1]} : vector<4x5xf32> to vector<1x5xf32>
    %421 = arith.maximumf %419, %420 : vector<1x5xf32>
    %422 = vector.extract_strided_slice %421 {offsets = [0, 0], sizes = [1, 4], strides = [1, 1]} : vector<1x5xf32> to vector<1x4xf32>
    %cst_252 = arith.constant dense<0xFF800000> : vector<1xf32>
    %423 = vector.multi_reduction <maximumf>, %422, %cst_252 [1] : vector<1x4xf32> to vector<1xf32>
    %424 = vector.shape_cast %423 : vector<1xf32> to vector<1x1xf32>
    %c2_253 = arith.constant 2 : index
    %425 = memref.load %arg9[%c2_253] : memref<9xf32, #tpu.memory_space<smem>>
    %426 = vector.broadcast %425 : f32 to vector<1x1xf32>
    %427 = arith.mulf %424, %426 : vector<1x1xf32>
    %428 = arith.addf %417, %427 : vector<1x1xf32>
    %429 = vector.extract_strided_slice %418 {offsets = [2, 0], sizes = [1, 5], strides = [1, 1]} : vector<4x5xf32> to vector<1x5xf32>
    %430 = vector.extract_strided_slice %418 {offsets = [3, 0], sizes = [1, 5], strides = [1, 1]} : vector<4x5xf32> to vector<1x5xf32>
    %431 = arith.maximumf %429, %430 : vector<1x5xf32>
    %432 = vector.extract_strided_slice %431 {offsets = [0, 0], sizes = [1, 4], strides = [1, 1]} : vector<1x5xf32> to vector<1x4xf32>
    %cst_254 = arith.constant dense<0xFF800000> : vector<1xf32>
    %433 = vector.multi_reduction <maximumf>, %432, %cst_254 [1] : vector<1x4xf32> to vector<1xf32>
    %434 = vector.shape_cast %433 : vector<1xf32> to vector<1x1xf32>
    %c3_255 = arith.constant 3 : index
    %435 = memref.load %arg9[%c3_255] : memref<9xf32, #tpu.memory_space<smem>>
    %436 = vector.broadcast %435 : f32 to vector<1x1xf32>
    %437 = arith.mulf %434, %436 : vector<1x1xf32>
    %438 = arith.addf %428, %437 : vector<1x1xf32>
    %439 = vector.extract_strided_slice %392 {offsets = [0, 10], sizes = [4, 5], strides = [1, 1]} : vector<4x20xf32> to vector<4x5xf32>
    %440 = vector.extract_strided_slice %439 {offsets = [0, 0], sizes = [1, 5], strides = [1, 1]} : vector<4x5xf32> to vector<1x5xf32>
    %441 = vector.extract_strided_slice %439 {offsets = [1, 0], sizes = [1, 5], strides = [1, 1]} : vector<4x5xf32> to vector<1x5xf32>
    %442 = arith.maximumf %440, %441 : vector<1x5xf32>
    %443 = vector.extract_strided_slice %442 {offsets = [0, 0], sizes = [1, 4], strides = [1, 1]} : vector<1x5xf32> to vector<1x4xf32>
    %cst_256 = arith.constant dense<0xFF800000> : vector<1xf32>
    %444 = vector.multi_reduction <maximumf>, %443, %cst_256 [1] : vector<1x4xf32> to vector<1xf32>
    %445 = vector.shape_cast %444 : vector<1xf32> to vector<1x1xf32>
    %c4_257 = arith.constant 4 : index
    %446 = memref.load %arg9[%c4_257] : memref<9xf32, #tpu.memory_space<smem>>
    %447 = vector.broadcast %446 : f32 to vector<1x1xf32>
    %448 = arith.mulf %445, %447 : vector<1x1xf32>
    %449 = arith.addf %438, %448 : vector<1x1xf32>
    %450 = vector.extract_strided_slice %439 {offsets = [2, 0], sizes = [1, 5], strides = [1, 1]} : vector<4x5xf32> to vector<1x5xf32>
    %451 = vector.extract_strided_slice %439 {offsets = [3, 0], sizes = [1, 5], strides = [1, 1]} : vector<4x5xf32> to vector<1x5xf32>
    %452 = arith.maximumf %450, %451 : vector<1x5xf32>
    %453 = vector.extract_strided_slice %452 {offsets = [0, 0], sizes = [1, 4], strides = [1, 1]} : vector<1x5xf32> to vector<1x4xf32>
    %cst_258 = arith.constant dense<0xFF800000> : vector<1xf32>
    %454 = vector.multi_reduction <maximumf>, %453, %cst_258 [1] : vector<1x4xf32> to vector<1xf32>
    %455 = vector.shape_cast %454 : vector<1xf32> to vector<1x1xf32>
    %c5_259 = arith.constant 5 : index
    %456 = memref.load %arg9[%c5_259] : memref<9xf32, #tpu.memory_space<smem>>
    %457 = vector.broadcast %456 : f32 to vector<1x1xf32>
    %458 = arith.mulf %455, %457 : vector<1x1xf32>
    %459 = arith.addf %449, %458 : vector<1x1xf32>
    %460 = vector.extract_strided_slice %392 {offsets = [0, 15], sizes = [4, 5], strides = [1, 1]} : vector<4x20xf32> to vector<4x5xf32>
    %461 = vector.extract_strided_slice %460 {offsets = [0, 0], sizes = [1, 5], strides = [1, 1]} : vector<4x5xf32> to vector<1x5xf32>
    %462 = vector.extract_strided_slice %460 {offsets = [1, 0], sizes = [1, 5], strides = [1, 1]} : vector<4x5xf32> to vector<1x5xf32>
    %463 = arith.maximumf %461, %462 : vector<1x5xf32>
    %464 = vector.extract_strided_slice %463 {offsets = [0, 0], sizes = [1, 4], strides = [1, 1]} : vector<1x5xf32> to vector<1x4xf32>
    %cst_260 = arith.constant dense<0xFF800000> : vector<1xf32>
    %465 = vector.multi_reduction <maximumf>, %464, %cst_260 [1] : vector<1x4xf32> to vector<1xf32>
    %466 = vector.shape_cast %465 : vector<1xf32> to vector<1x1xf32>
    %c6_261 = arith.constant 6 : index
    %467 = memref.load %arg9[%c6_261] : memref<9xf32, #tpu.memory_space<smem>>
    %468 = vector.broadcast %467 : f32 to vector<1x1xf32>
    %469 = arith.mulf %466, %468 : vector<1x1xf32>
    %470 = arith.addf %459, %469 : vector<1x1xf32>
    %471 = vector.extract_strided_slice %460 {offsets = [2, 0], sizes = [1, 5], strides = [1, 1]} : vector<4x5xf32> to vector<1x5xf32>
    %472 = vector.extract_strided_slice %460 {offsets = [3, 0], sizes = [1, 5], strides = [1, 1]} : vector<4x5xf32> to vector<1x5xf32>
    %473 = arith.maximumf %471, %472 : vector<1x5xf32>
    %474 = vector.extract_strided_slice %473 {offsets = [0, 0], sizes = [1, 4], strides = [1, 1]} : vector<1x5xf32> to vector<1x4xf32>
    %cst_262 = arith.constant dense<0xFF800000> : vector<1xf32>
    %475 = vector.multi_reduction <maximumf>, %474, %cst_262 [1] : vector<1x4xf32> to vector<1xf32>
    %476 = vector.shape_cast %475 : vector<1xf32> to vector<1x1xf32>
    %c7_263 = arith.constant 7 : index
    %477 = memref.load %arg9[%c7_263] : memref<9xf32, #tpu.memory_space<smem>>
    %478 = vector.broadcast %477 : f32 to vector<1x1xf32>
    %479 = arith.mulf %476, %478 : vector<1x1xf32>
    %480 = arith.addf %470, %479 : vector<1x1xf32>
    %cst_264 = arith.constant 0.000000e+00 : f32
    %481 = vector.broadcast %cst_264 : f32 to vector<1x1xf32>
    %482 = arith.subf %481, %480 : vector<1x1xf32>
    %483 = math.exp %482 : vector<1x1xf32>
    %cst_265 = arith.constant 1.000000e+00 : f32
    %484 = vector.broadcast %cst_265 : f32 to vector<1x1xf32>
    %485 = arith.addf %484, %483 : vector<1x1xf32>
    %cst_266 = arith.constant 1.000000e+00 : f32
    %486 = vector.broadcast %cst_266 : f32 to vector<1x1xf32>
    %487 = arith.divf %486, %485 : vector<1x1xf32>
    %c1_267 = arith.constant 1 : index
    %c0_268 = arith.constant 0 : index
    %488 = vector.load %arg10[%c1_267, %c0_268] : memref<2x1xf32, #tpu.memory_space<vmem>>, vector<1x1xf32>
    tpu.vector_store %arg10[%c1_267, %c0_268], %487 {strides = array<i32>} : memref<2x1xf32, #tpu.memory_space<vmem>>, vector<1x1xf32>,
    return
  }
}

</mosaic_0001>

<llo_original>
// kernel: eegnet_forward.1
$region0: #{eegnet_forward.1}
  #allocation0 [shape = 'u32[]', space=smem, size = 0x4, offset = 0x4, fixed_abs, tag = 'smem constant byte address 0x4 - core index']
  #allocation1 [shape = 'u32[144,128]{1,0:T(1,128)}', space=vmem, size = 0x12000, scoped, tag = 'internal scratch']
  #allocation2 [shape = 'f32[2,17,49]{2,1,0:T(8,128)}', space=vmem, size = 0x6000, scoped, tag = 'scratch operand']
  #allocation3 [shape = 'f32[2,11,32]{2,1,0:T(8,128)}', space=vmem, size = 0x4000, scoped, tag = 'scratch operand']
  %s0 = inlined_call_operand.vmem [shape: f32[2,30,16], index: 0, kind: input, shape index: {}]
  %s1 = inlined_call_operand.vmem [shape: f32[16,30], index: 1, kind: input, shape index: {}]
  %s2 = inlined_call_operand.vmem [shape: f32[3,16,1], index: 2, kind: input, shape index: {}]
  %s3 = inlined_call_operand.vmem [shape: f32[2,49,72], index: 3, kind: input, shape index: {}]
  %s4 = inlined_call_operand.vmem [shape: f32[3,72], index: 4, kind: input, shape index: {}]
  %s5 = inlined_call_operand.vmem [shape: f32[72,32], index: 5, kind: input, shape index: {}]
  %s6 = inlined_call_operand.vmem [shape: f32[72,32], index: 6, kind: input, shape index: {}]
  %s7 = inlined_call_operand.vmem [shape: f32[8,32,20], index: 7, kind: input, shape index: {}]
  %s8 = inlined_call_operand.vmem [shape: f32[3,20], index: 8, kind: input, shape index: {}]
  %s9 = inlined_call_operand.vmem [shape: f32[9], index: 9, kind: input, shape index: {}]
  %s10 = inlined_call_operand.vmem [shape: f32[2,1], index: 10, kind: output, shape index: {}]
  %s11 = sld [smem:[#allocation0]]
  $region54: #{eegnet_forward.1} parent=0
    _
  %s13 = ssub.s32 1, %s11
  %s14 = scalar_select 0, %s13, %s11
  $region1: #{eegnet_forward.1} parent=0
    #allocation4 [shape = 'u8[512]{0}', space=smem, size = 0x200, scoped, tag = 'input window, operand 9, single buffered']
    #allocation5 [shape = 's32[1]{0}', space=sflag, size = 0x4, scoped, tag = 'scoped memory for eegnet_forward.1']
    %15 = vsyncpa [#allocation5], 0
    // Predicated region
    $region2: #{eegnet_forward.1} parent=1 // pred_check
      _
    $region3: #{eegnet_forward.1} parent=1 // pred_check_branch
      %17 = sbr.rel (0) target = $region5
    $region4: #{eegnet_forward.1} parent=1 // pred_region
      _
    $region5: #{eegnet_forward.1} parent=1 // pred_fallthru
      _
    // Predicated region
    $region6: #{eegnet_forward.1} parent=1 // pred_check
      _
    $region7: #{eegnet_forward.1} parent=1 // pred_check_branch
      %19 = sbr.rel (0) target = $region9
    $region8: #{eegnet_forward.1} parent=1 // pred_region
      _
    $region9: #{eegnet_forward.1} parent=1 // pred_fallthru
      _
    // Predicated region
    $region10: #{eegnet_forward.1} parent=1 // pred_check
      _
    $region11: #{eegnet_forward.1} parent=1 // pred_check_branch
      %21 = sbr.rel (0) target = $region13
    $region12: #{eegnet_forward.1} parent=1 // pred_region
      _
    $region13: #{eegnet_forward.1} parent=1 // pred_fallthru
      _
    // Predicated region
    $region14: #{eegnet_forward.1} parent=1 // pred_check
      _
    $region15: #{eegnet_forward.1} parent=1 // pred_check_branch
      %23 = sbr.rel (0) target = $region17
    $region16: #{eegnet_forward.1} parent=1 // pred_region
      _
    $region17: #{eegnet_forward.1} parent=1 // pred_fallthru
      _
    // Predicated region
    $region18: #{eegnet_forward.1} parent=1 // pred_check
      _
    $region19: #{eegnet_forward.1} parent=1 // pred_check_branch
      %25 = sbr.rel (0) target = $region21
    $region20: #{eegnet_forward.1} parent=1 // pred_region
      _
    $region21: #{eegnet_forward.1} parent=1 // pred_fallthru
      _
    // Predicated region
    $region22: #{eegnet_forward.1} parent=1 // pred_check
      _
    $region23: #{eegnet_forward.1} parent=1 // pred_check_branch
      %27 = sbr.rel (0) target = $region25
    $region24: #{eegnet_forward.1} parent=1 // pred_region
      _
    $region25: #{eegnet_forward.1} parent=1 // pred_fallthru
      _
    // Predicated region
    $region26: #{eegnet_forward.1} parent=1 // pred_check
      _
    $region27: #{eegnet_forward.1} parent=1 // pred_check_branch
      %29 = sbr.rel (0) target = $region29
    $region28: #{eegnet_forward.1} parent=1 // pred_region
      _
    $region29: #{eegnet_forward.1} parent=1 // pred_fallthru
      _
    // Predicated region
    $region30: #{eegnet_forward.1} parent=1 // pred_check
      _
    $region31: #{eegnet_forward.1} parent=1 // pred_check_branch
      %31 = sbr.rel (0) target = $region33
    $region32: #{eegnet_forward.1} parent=1 // pred_region
      _
    $region33: #{eegnet_forward.1} parent=1 // pred_fallthru
      _
    // Predicated region
    $region34: #{eegnet_forward.1} parent=1 // pred_check
      _
    $region35: #{eegnet_forward.1} parent=1 // pred_check_branch
      %33 = sbr.rel (0) target = $region37
    $region36: #{eegnet_forward.1} parent=1 // pred_region
      _
    $region37: #{eegnet_forward.1} parent=1 // pred_fallthru
      _
    // Predicated region
    $region38: #{eegnet_forward.1} parent=1 // pred_check
      _
    $region39: #{eegnet_forward.1} parent=1 // pred_check_branch
      %35 = sbr.rel (0) target = $region41
    $region40: #{eegnet_forward.1} parent=1 // pred_region
      %s37 = ssub.s32 16, 16
      %38 = vsyncadd [#allocation5], %s37
      %s40 = sshll.u32 %s9, 4
      %s41 = int_to_ptr.vmem [resolvable:$true] %s40
      %43 = dma.vmem_to_smem %s41, 16, [#allocation4], [#allocation5]
    $region41: #{eegnet_forward.1} parent=1 // pred_fallthru
      _
    // Predicated region
    $region42: #{eegnet_forward.1} parent=1 // pred_check
      _
    $region43: #{eegnet_forward.1} parent=1 // pred_check_branch
      %45 = sbr.rel (0) target = $region45
    $region44: #{eegnet_forward.1} parent=1 // pred_region
      %46 = dma.done [#allocation5], 16
    $region45: #{eegnet_forward.1} parent=1 // pred_fallthru
      _
    %47 = sfence
    %vm48 = vcmask 400384
    %49 = vst.msk [vmem:[#allocation2] sm:$0xff] %vm48, 0.0
    %50 = vst.msk [vmem:[#allocation2 + $0x8] sm:$0xff] %vm48, 0.0
    %vm51 = vcmask 393216
    %52 = vst.msk [vmem:[#allocation2 + $0x10] sm:$0x1] %vm51, 0.0
    %53 = vst.msk [vmem:[#allocation2 + $0x18] sm:$0xff] %vm48, 0.0
    %54 = vst.msk [vmem:[#allocation2 + $0x20] sm:$0xff] %vm48, 0.0
    %55 = vst.msk [vmem:[#allocation2 + $0x28] sm:$0x1] %vm51, 0.0
    %vm56 = vcmask 261120
    %57 = vst.msk [vmem:[#allocation3] sm:$0xff] %vm56, 0.0
    %vm58 = vcmask 256000
    %59 = vst.msk [vmem:[#allocation3 + $0x8] sm:$0x7] %vm58, 0.0
    %60 = vst.msk [vmem:[#allocation3 + $0x10] sm:$0xff] %vm56, 0.0
    %61 = vst.msk [vmem:[#allocation3 + $0x18] sm:$0x7] %vm58, 0.0
    %v62 = vld [vmem:[%s1] sm:$0xff]
    %v63 = vld [vmem:[%s1 + $0x8] sm:$0xff]
    %v64 = vld [vmem:[%s5] sm:$0xff]
    %v65 = vld [vmem:[%s5 + $0x8] sm:$0xff]
    %v66 = vld [vmem:[%s5 + $0x10] sm:$0xff]
    %v67 = vld [vmem:[%s5 + $0x18] sm:$0xff]
    %v68 = vld [vmem:[%s5 + $0x20] sm:$0xff]
    %v69 = vld [vmem:[%s5 + $0x28] sm:$0xff]
    %v70 = vld [vmem:[%s5 + $0x30] sm:$0xff]
    %v71 = vld [vmem:[%s5 + $0x38] sm:$0xff]
    %v72 = vld [vmem:[%s5 + $0x40] sm:$0xff]
    %v73 = vld [vmem:[%s6] sm:$0xff]
    %v74 = vld [vmem:[%s6 + $0x8] sm:$0xff]
    %v75 = vld [vmem:[%s6 + $0x10] sm:$0xff]
    %v76 = vld [vmem:[%s6 + $0x18] sm:$0xff]
    %v77 = vld [vmem:[%s6 + $0x20] sm:$0xff]
    %v78 = vld [vmem:[%s6 + $0x28] sm:$0xff]
    %v79 = vld [vmem:[%s6 + $0x30] sm:$0xff]
    %v80 = vld [vmem:[%s6 + $0x38] sm:$0xff]
    %v81 = vld [vmem:[%s6 + $0x40] sm:$0xff]
    %v82 = vld [vmem:[%s0] sm:$0xff]
    %v83 = vld [vmem:[%s0 + $0x8] sm:$0xff]
    %v84 = vld [vmem:[%s0 + $0x10] sm:$0xff]
    %v85 = vld [vmem:[%s0 + $0x18] sm:$0x3f]
    %v86 = vld [vmem:[%s2] sm:$0xff]
    %v87 = vld [vmem:[%s2 + $0x8] sm:$0xff]
    %89 = vset.pattern.permute.xlu0 0
    %90 = vperm.xlu0 %89, %v86
    %v91 = vpop.permute.xlu0 %90
    %94 = vset.pattern.permute.xlu0 0
    %95 = vperm.xlu0 %94, %v87
    %v96 = vpop.permute.xlu0 %95
    %vm98 = vcmask 244736
    %v100 = vsel %vm98, %v62, 0
    %v103 = vsel %vm98, %v63, 0
    %vm105 = vcmask 1045504
    %v107 = vsel %vm105, %v85, 0
    %109 = vmatprep.subr.mxu0 0.0
    %110 = vmatpush1.msra.mxu0 %v82
    %111 = vmatprep.subr.mxu0 0.0
    %112 = vmatpush1.msra.mxu0 %v83
    %113 = vmatprep.subr.mxu0 0.0
    %114 = vmatpush1.msra.mxu0 %v84
    %115 = vmatprep.subr.mxu0 0.0
    %116 = vmatpush1.msra.mxu0 %v107
    %117 = vmatprep.subr.mxu0 0.0
    %118 = vmatpush1.msra.mxu0 0.0
    %119 = vmatprep.subr.mxu0 0.0
    %120 = vmatpush1.msra.mxu0 0.0
    %121 = vmatprep.subr.mxu0 0.0
    %122 = vmatpush1.msra.mxu0 0.0
    %123 = vmatprep.subr.mxu0 0.0
    %124 = vmatpush1.msra.mxu0 0.0
    %125 = vmatprep.subr.mxu0 0.0
    %126 = vmatpush1.msra.mxu0 0.0
    %127 = vmatprep.subr.mxu0 0.0
    %128 = vmatpush1.msra.mxu0 0.0
    %129 = vmatprep.subr.mxu0 0.0
    %130 = vmatpush1.msra.mxu0 0.0
    %131 = vmatprep.subr.mxu0 0.0
    %132 = vmatpush1.msra.mxu0 0.0
    %133 = vmatprep.subr.mxu0 0.0
    %134 = vmatpush1.msra.mxu0 0.0
    %135 = vmatprep.subr.mxu0 0.0
    %136 = vmatpush1.msra.mxu0 0.0
    %137 = vmatprep.subr.mxu0 0.0
    %138 = vmatpush1.msra.mxu0 0.0
    %139 = vmatprep.subr.mxu0 0.0
    %140 = vmatpush1.msra.mxu0 0.0
    %141 = vmatprep.subr.mxu0 0.0
    %142 = vmatpush1.msra.mxu0 0.0
    %143 = vmatprep.subr.mxu0 0.0
    %144 = vmatpush1.msra.mxu0 0.0
    %145 = vmatprep.subr.mxu0 0.0
    %146 = vmatpush1.msra.mxu0 0.0
    %147 = vmatprep.subr.mxu0 0.0
    %148 = vmatpush1.msra.mxu0 0.0
    %149 = vmatprep.subr.mxu0 0.0
    %150 = vmatpush1.msra.mxu0 0.0
    %151 = vmatprep.subr.mxu0 0.0
    %152 = vmatpush1.msra.mxu0 0.0
    %153 = vmatprep.subr.mxu0 0.0
    %154 = vmatpush1.msra.mxu0 0.0
    %155 = vmatprep.subr.mxu0 0.0
    %156 = vmatpush1.msra.mxu0 0.0
    %157 = vmatprep.subr.mxu0 0.0
    %158 = vmatpush1.msra.mxu0 0.0
    %159 = vmatprep.subr.mxu0 0.0
    %160 = vmatpush1.msra.mxu0 0.0
    %161 = vmatprep.subr.mxu0 0.0
    %162 = vmatpush1.msra.mxu0 0.0
    %163 = vmatprep.subr.mxu0 0.0
    %164 = vmatpush1.msra.mxu0 0.0
    %165 = vmatprep.subr.mxu0 0.0
    %166 = vmatpush1.msra.mxu0 0.0
    %167 = vmatprep.subr.mxu0 0.0
    %168 = vmatpush1.msra.mxu0 0.0
    %169 = vmatprep.subr.mxu0 0.0
    %170 = vmatpush1.msra.mxu0 0.0
    %171 = vmatprep.subr.mxu0 0.0
    %172 = vmatpush1.msra.mxu0 0.0
    %173 = vmatprep.mubr.f32.mxu0 0.0
    %174 = vmatmul.mubr.f32.gmra.mrb[0].mxu0 %v100
    %v175 = vpop.f32.mrb[0].mxu0
    %v176 = vadd.f32 %v91, %v175
    %v177 = vpop.f32.mrb[0].mxu0
    %178 = vmatprep.mubr.f32.mxu0 0.0
    %179 = vmatmul.mubr.f32.gmra.mrb[0].mxu0 %v103
    %v180 = vpop.f32.mrb[0].mxu0
    %v181 = vadd.f32 %v96, %v180
    %v182 = vpop.f32.mrb[0].mxu0
    %183 = vdwg.mxu0
    %vm184 = vcmp.gt.f32.partialorder %v176, 0.0
    %vm185 = vcmp.gt.f32.partialorder %v181, 0.0
    %v186 = vmul.f32 %v176, 1.442695
    %v187 = vpow.pop %v186
    %v188 = vmul.f32 %v181, 1.442695
    %v189 = vpow.pop %v188
    %v190 = vsub.f32 %v187, 1.0
    %v191 = vsub.f32 %v189, 1.0
    %v192 = vsel %vm184, %v176, %v190
    %v193 = vsel %vm185, %v181, %v191
    %s194 = scalar_lea.vmem %s2, 16
    %v195 = vld [vmem:[%s194] sm:$0xff]
    %v196 = vld [vmem:[%s194 + $0x8] sm:$0xff]
    %198 = vset.pattern.permute.xlu0 0
    %199 = vperm.xlu0 %198, %v195
    %v200 = vpop.permute.xlu0 %199
    %203 = vset.pattern.permute.xlu0 0
    %204 = vperm.xlu0 %203, %v196
    %v205 = vpop.permute.xlu0 %204
    %v207 = vmul.f32 %v192, %v200
    %v208 = vmul.f32 %v193, %v205
    %s209 = scalar_lea.vmem %s2, 32
    %v210 = vld [vmem:[%s209] sm:$0xff]
    %v211 = vld [vmem:[%s209 + $0x8] sm:$0xff]
    %213 = vset.pattern.permute.xlu0 0
    %214 = vperm.xlu0 %213, %v210
    %v215 = vpop.permute.xlu0 %214
    %218 = vset.pattern.permute.xlu0 0
    %219 = vperm.xlu0 %218, %v211
    %v220 = vpop.permute.xlu0 %219
    %v222 = vadd.f32 %v207, %v215
    %v223 = vadd.f32 %v208, %v220
    %226 = vrot.lane.b32.xlu0 %v222, 16
    %v227 = vpop.permute.xlu0 %226
    %228 = vrot.lane.b32.xlu0 %v223, 16
    %v229 = vpop.permute.xlu0 %228
    %vm232 = vcmask 261248
    %233 = vst.msk [vmem:[#allocation2] sm:$0xff] %vm232, %v227
    %234 = vst.msk [vmem:[#allocation2 + $0x8] sm:$0xff] %vm232, %v229
    %v235 = vld [vmem:[#allocation2] sm:$0xff]
    %v236 = vld [vmem:[#allocation2 + $0x8] sm:$0xff]
    %v237 = vld [vmem:[%s3] sm:$0xff]
    %v238 = vld [vmem:[%s3 + $0x8] sm:$0xff]
    %v239 = vld [vmem:[%s3 + $0x10] sm:$0xff]
    %v240 = vld [vmem:[%s3 + $0x18] sm:$0xff]
    %v241 = vld [vmem:[%s3 + $0x20] sm:$0xff]
    %v242 = vld [vmem:[%s3 + $0x28] sm:$0xff]
    %v243 = vld [vmem:[%s3 + $0x30] sm:$0x1]
    %v244 = vld [vmem:[#allocation2 + $0x1] sm:$0xff]
    %v245 = vld [vmem:[#allocation2 + $0x9] sm:$0xff]
    %s246 = scalar_lea.vmem %s3, 56
    %v247 = vld [vmem:[%s246] sm:$0xff]
    %v248 = vld [vmem:[%s246 + $0x8] sm:$0xff]
    %v249 = vld [vmem:[%s246 + $0x10] sm:$0xff]
    %v250 = vld [vmem:[%s246 + $0x18] sm:$0xff]
    %v251 = vld [vmem:[%s246 + $0x20] sm:$0xff]
    %v252 = vld [vmem:[%s246 + $0x28] sm:$0xff]
    %v253 = vld [vmem:[%s246 + $0x30] sm:$0x1]
    %v255 = vsel %vm48, %v244, 0
    %v258 = vsel %vm48, %v245, 0
    %vm260 = vcmask 1040384
    %v262 = vsel %vm260, %v253, 0
    %264 = vmatprep.subr.mxu0 0.0
    %265 = vmatpush1.msra.mxu0 %v247
    %266 = vmatprep.subr.mxu0 0.0
    %267 = vmatpush1.msra.mxu0 %v248
    %268 = vmatprep.subr.mxu0 0.0
    %269 = vmatpush1.msra.mxu0 %v249
    %270 = vmatprep.subr.mxu0 0.0
    %271 = vmatpush1.msra.mxu0 %v250
    %272 = vmatprep.subr.mxu0 0.0
    %273 = vmatpush1.msra.mxu0 %v251
    %274 = vmatprep.subr.mxu0 0.0
    %275 = vmatpush1.msra.mxu0 %v252
    %276 = vmatprep.subr.mxu0 0.0
    %277 = vmatpush1.msra.mxu0 %v262
    %278 = vmatprep.subr.mxu0 0.0
    %279 = vmatpush1.msra.mxu0 0.0
    %280 = vmatprep.subr.mxu0 0.0
    %281 = vmatpush1.msra.mxu0 0.0
    %282 = vmatprep.subr.mxu0 0.0
    %283 = vmatpush1.msra.mxu0 0.0
    %284 = vmatprep.subr.mxu0 0.0
    %285 = vmatpush1.msra.mxu0 0.0
    %286 = vmatprep.subr.mxu0 0.0
    %287 = vmatpush1.msra.mxu0 0.0
    %288 = vmatprep.subr.mxu0 0.0
    %289 = vmatpush1.msra.mxu0 0.0
    %290 = vmatprep.subr.mxu0 0.0
    %291 = vmatpush1.msra.mxu0 0.0
    %292 = vmatprep.subr.mxu0 0.0
    %293 = vmatpush1.msra.mxu0 0.0
    %294 = vmatprep.subr.mxu0 0.0
    %295 = vmatpush1.msra.mxu0 0.0
    %296 = vmatprep.subr.mxu0 0.0
    %297 = vmatpush1.msra.mxu0 0.0
    %298 = vmatprep.subr.mxu0 0.0
    %299 = vmatpush1.msra.mxu0 0.0
    %300 = vmatprep.subr.mxu0 0.0
    %301 = vmatpush1.msra.mxu0 0.0
    %302 = vmatprep.subr.mxu0 0.0
    %303 = vmatpush1.msra.mxu0 0.0
    %304 = vmatprep.subr.mxu0 0.0
    %305 = vmatpush1.msra.mxu0 0.0
    %306 = vmatprep.subr.mxu0 0.0
    %307 = vmatpush1.msra.mxu0 0.0
    %308 = vmatprep.subr.mxu0 0.0
    %309 = vmatpush1.msra.mxu0 0.0
    %310 = vmatprep.subr.mxu0 0.0
    %311 = vmatpush1.msra.mxu0 0.0
    %312 = vmatprep.subr.mxu0 0.0
    %313 = vmatpush1.msra.mxu0 0.0
    %314 = vmatprep.subr.mxu0 0.0
    %315 = vmatpush1.msra.mxu0 0.0
    %316 = vmatprep.subr.mxu0 0.0
    %317 = vmatpush1.msra.mxu0 0.0
    %318 = vmatprep.subr.mxu0 0.0
    %319 = vmatpush1.msra.mxu0 0.0
    %320 = vmatprep.subr.mxu0 0.0
    %321 = vmatpush1.msra.mxu0 0.0
    %322 = vmatprep.subr.mxu0 0.0
    %323 = vmatpush1.msra.mxu0 0.0
    %324 = vmatprep.subr.mxu0 0.0
    %325 = vmatpush1.msra.mxu0 0.0
    %326 = vmatprep.subr.mxu0 0.0
    %327 = vmatpush1.msra.mxu0 0.0
    %328 = vmatprep.mubr.f32.mxu0 0.0
    %329 = vmatmul.mubr.f32.gmra.mrb[0].mxu0 %v255
    %v330 = vpop.f32.mrb[0].mxu0
    %v331 = vadd.f32 0.0, %v330
    %v332 = vpop.f32.mrb[0].mxu0
    %333 = vmatprep.mubr.f32.mxu0 0.0
    %334 = vmatmul.mubr.f32.gmra.mrb[0].mxu0 %v258
    %v335 = vpop.f32.mrb[0].mxu0
    %v336 = vadd.f32 0.0, %v335
    %v337 = vpop.f32.mrb[0].mxu0
    %338 = vdwg.mxu0
    %v340 = vsel %vm48, %v235, 0
    %v343 = vsel %vm48, %v236, 0
    %v346 = vsel %vm260, %v243, 0
    %348 = vmatprep.subr.mxu0 0.0
    %349 = vmatpush1.msra.mxu0 %v237
    %350 = vmatprep.subr.mxu0 0.0
    %351 = vmatpush1.msra.mxu0 %v238
    %352 = vmatprep.subr.mxu0 0.0
    %353 = vmatpush1.msra.mxu0 %v239
    %354 = vmatprep.subr.mxu0 0.0
    %355 = vmatpush1.msra.mxu0 %v240
    %356 = vmatprep.subr.mxu0 0.0
    %357 = vmatpush1.msra.mxu0 %v241
    %358 = vmatprep.subr.mxu0 0.0
    %359 = vmatpush1.msra.mxu0 %v242
    %360 = vmatprep.subr.mxu0 0.0
    %361 = vmatpush1.msra.mxu0 %v346
    %362 = vmatprep.subr.mxu0 0.0
    %363 = vmatpush1.msra.mxu0 0.0
    %364 = vmatprep.subr.mxu0 0.0
    %365 = vmatpush1.msra.mxu0 0.0
    %366 = vmatprep.subr.mxu0 0.0
    %367 = vmatpush1.msra.mxu0 0.0
    %368 = vmatprep.subr.mxu0 0.0
    %369 = vmatpush1.msra.mxu0 0.0
    %370 = vmatprep.subr.mxu0 0.0
    %371 = vmatpush1.msra.mxu0 0.0
    %372 = vmatprep.subr.mxu0 0.0
    %373 = vmatpush1.msra.mxu0 0.0
    %374 = vmatprep.subr.mxu0 0.0
    %375 = vmatpush1.msra.mxu0 0.0
    %376 = vmatprep.subr.mxu0 0.0
    %377 = vmatpush1.msra.mxu0 0.0
    %378 = vmatprep.subr.mxu0 0.0
    %379 = vmatpush1.msra.mxu0 0.0
    %380 = vmatprep.subr.mxu0 0.0
    %381 = vmatpush1.msra.mxu0 0.0
    %382 = vmatprep.subr.mxu0 0.0
    %383 = vmatpush1.msra.mxu0 0.0
    %384 = vmatprep.subr.mxu0 0.0
    %385 = vmatpush1.msra.mxu0 0.0
    %386 = vmatprep.subr.mxu0 0.0
    %387 = vmatpush1.msra.mxu0 0.0
    %388 = vmatprep.subr.mxu0 0.0
    %389 = vmatpush1.msra.mxu0 0.0
    %390 = vmatprep.subr.mxu0 0.0
    %391 = vmatpush1.msra.mxu0 0.0
    %392 = vmatprep.subr.mxu0 0.0
    %393 = vmatpush1.msra.mxu0 0.0
    %394 = vmatprep.subr.mxu0 0.0
    %395 = vmatpush1.msra.mxu0 0.0
    %396 = vmatprep.subr.mxu0 0.0
    %397 = vmatpush1.msra.mxu0 0.0
    %398 = vmatprep.subr.mxu0 0.0
    %399 = vmatpush1.msra.mxu0 0.0
    %400 = vmatprep.subr.mxu0 0.0
    %401 = vmatpush1.msra.mxu0 0.0
    %402 = vmatprep.subr.mxu0 0.0
    %403 = vmatpush1.msra.mxu0 0.0
    %404 = vmatprep.subr.mxu0 0.0
    %405 = vmatpush1.msra.mxu0 0.0
    %406 = vmatprep.subr.mxu0 0.0
    %407 = vmatpush1.msra.mxu0 0.0
    %408 = vmatprep.subr.mxu0 0.0
    %409 = vmatpush1.msra.mxu0 0.0
    %410 = vmatprep.subr.mxu0 0.0
    %411 = vmatpush1.msra.mxu0 0.0
    %412 = vmatprep.mubr.f32.mxu0 0.0
    %413 = vmatmul.mubr.f32.gmra.mrb[0].mxu0 %v340
    %v414 = vpop.f32.mrb[0].mxu0
    %v415 = vadd.f32 %v331, %v414
    %v416 = vpop.f32.mrb[0].mxu0
    %417 = vmatprep.mubr.f32.mxu0 0.0
    %418 = vmatmul.mubr.f32.gmra.mrb[0].mxu0 %v343
    %v419 = vpop.f32.mrb[0].mxu0
    %v420 = vadd.f32 %v336, %v419
    %v421 = vpop.f32.mrb[0].mxu0
    %422 = vdwg.mxu0
    %v423 = vld [vmem:[%s4] sm:$0x1]
    %v424 = vlaneseq
    %v425 = vshrl.u32 %v424, 7
    %v426 = vsub.s32 0, %v425
    %v427 = vrot.slane %v423, %v426
    %v428 = vadd.f32 %v415, %v427
    %v429 = vadd.f32 %v420, %v427
    %vm430 = vcmp.gt.f32.partialorder %v428, 0.0
    %vm431 = vcmp.gt.f32.partialorder %v429, 0.0
    %v432 = vmul.f32 %v428, 1.442695
    %v433 = vpow.pop %v432
    %v434 = vmul.f32 %v429, 1.442695
    %v435 = vpow.pop %v434
    %v436 = vsub.f32 %v433, 1.0
    %v437 = vsub.f32 %v435, 1.0
    %v438 = vsel %vm430, %v428, %v436
    %v439 = vsel %vm431, %v429, %v437
    %v440 = vld [vmem:[%s4 + $0x1] sm:$0x1]
    %v441 = vlaneseq
    %v442 = vshrl.u32 %v441, 7
    %v443 = vsub.s32 0, %v442
    %v444 = vrot.slane %v440, %v443
    %v445 = vmul.f32 %v438, %v444
    %v446 = vmul.f32 %v439, %v444
    %v447 = vld [vmem:[%s4 + $0x2] sm:$0x1]
    %v448 = vlaneseq
    %v449 = vshrl.u32 %v448, 7
    %v450 = vsub.s32 0, %v449
    %v451 = vrot.slane %v447, %v450
    %v452 = vadd.f32 %v445, %v451
    %v453 = vadd.f32 %v446, %v451
    %v455 = vrot.slane %v452, 1
    %v457 = vmax.f32 %v452, %v455
    %v459 = vrot.slane %v453, 1
    %v461 = vmax.f32 %v453, %v459
    %v463 = vrot.slane %v457, 3
    %v466 = vrot.slane %v461, 6
    %v468 = vrot.slane %v461, 1
    %v470 = vsel %vm260, %v457, %v463
    %vm471 = vcmask 1041408
    %v472 = vsel %vm471, %v470, %v466
    %vm473 = vcmask 1042432
    %v474 = vsel %vm473, %v472, %v468
    %vm475 = vcmask 588800
    %v477 = vsel %vm475, %v474, 0
    %479 = vmatprep.subr.mxu0 0.0
    %480 = vmatpush1.msra.mxu0 %v64
    %481 = vmatprep.subr.mxu0 0.0
    %482 = vmatpush1.msra.mxu0 %v65
    %483 = vmatprep.subr.mxu0 0.0
    %484 = vmatpush1.msra.mxu0 %v66
    %485 = vmatprep.subr.mxu0 0.0
    %486 = vmatpush1.msra.mxu0 %v67
    %487 = vmatprep.subr.mxu0 0.0
    %488 = vmatpush1.msra.mxu0 %v68
    %489 = vmatprep.subr.mxu0 0.0
    %490 = vmatpush1.msra.mxu0 %v69
    %491 = vmatprep.subr.mxu0 0.0
    %492 = vmatpush1.msra.mxu0 %v70
    %493 = vmatprep.subr.mxu0 0.0
    %494 = vmatpush1.msra.mxu0 %v71
    %495 = vmatprep.subr.mxu0 0.0
    %496 = vmatpush1.msra.mxu0 %v72
    %497 = vmatprep.subr.mxu0 0.0
    %498 = vmatpush1.msra.mxu0 0.0
    %499 = vmatprep.subr.mxu0 0.0
    %500 = vmatpush1.msra.mxu0 0.0
    %501 = vmatprep.subr.mxu0 0.0
    %502 = vmatpush1.msra.mxu0 0.0
    %503 = vmatprep.subr.mxu0 0.0
    %504 = vmatpush1.msra.mxu0 0.0
    %505 = vmatprep.subr.mxu0 0.0
    %506 = vmatpush1.msra.mxu0 0.0
    %507 = vmatprep.subr.mxu0 0.0
    %508 = vmatpush1.msra.mxu0 0.0
    %509 = vmatprep.subr.mxu0 0.0
    %510 = vmatpush1.msra.mxu0 0.0
    %511 = vmatprep.subr.mxu0 0.0
    %512 = vmatpush1.msra.mxu0 0.0
    %513 = vmatprep.subr.mxu0 0.0
    %514 = vmatpush1.msra.mxu0 0.0
    %515 = vmatprep.subr.mxu0 0.0
    %516 = vmatpush1.msra.mxu0 0.0
    %517 = vmatprep.subr.mxu0 0.0
    %518 = vmatpush1.msra.mxu0 0.0
    %519 = vmatprep.subr.mxu0 0.0
    %520 = vmatpush1.msra.mxu0 0.0
    %521 = vmatprep.subr.mxu0 0.0
    %522 = vmatpush1.msra.mxu0 0.0
    %523 = vmatprep.subr.mxu0 0.0
    %524 = vmatpush1.msra.mxu0 0.0
    %525 = vmatprep.subr.mxu0 0.0
    %526 = vmatpush1.msra.mxu0 0.0
    %527 = vmatprep.subr.mxu0 0.0
    %528 = vmatpush1.msra.mxu0 0.0
    %529 = vmatprep.subr.mxu0 0.0
    %530 = vmatpush1.msra.mxu0 0.0
    %531 = vmatprep.subr.mxu0 0.0
    %532 = vmatpush1.msra.mxu0 0.0
    %533 = vmatprep.subr.mxu0 0.0
    %534 = vmatpush1.msra.mxu0 0.0
    %535 = vmatprep.subr.mxu0 0.0
    %536 = vmatpush1.msra.mxu0 0.0
    %537 = vmatprep.subr.mxu0 0.0
    %538 = vmatpush1.msra.mxu0 0.0
    %539 = vmatprep.subr.mxu0 0.0
    %540 = vmatpush1.msra.mxu0 0.0
    %541 = vmatprep.subr.mxu0 0.0
    %542 = vmatpush1.msra.mxu0 0.0
    %543 = vmatprep.mubr.f32.mxu0 0.0
    %544 = vmatmul.mubr.f32.gmra.mrb[0].mxu0 %v477
    %v545 = vpop.f32.mrb[0].mxu0
    %v546 = vadd.f32 0.0, %v545
    %v547 = vpop.f32.mrb[0].mxu0
    %548 = vdwg.mxu0
    %549 = vmatprep.subr.mxu0 0.0
    %550 = vmatpush1.msra.mxu0 %v73
    %551 = vmatprep.subr.mxu0 0.0
    %552 = vmatpush1.msra.mxu0 %v74
    %553 = vmatprep.subr.mxu0 0.0
    %554 = vmatpush1.msra.mxu0 %v75
    %555 = vmatprep.subr.mxu0 0.0
    %556 = vmatpush1.msra.mxu0 %v76
    %557 = vmatprep.subr.mxu0 0.0
    %558 = vmatpush1.msra.mxu0 %v77
    %559 = vmatprep.subr.mxu0 0.0
    %560 = vmatpush1.msra.mxu0 %v78
    %561 = vmatprep.subr.mxu0 0.0
    %562 = vmatpush1.msra.mxu0 %v79
    %563 = vmatprep.subr.mxu0 0.0
    %564 = vmatpush1.msra.mxu0 %v80
    %565 = vmatprep.subr.mxu0 0.0
    %566 = vmatpush1.msra.mxu0 %v81
    %567 = vmatprep.subr.mxu0 0.0
    %568 = vmatpush1.msra.mxu0 0.0
    %569 = vmatprep.subr.mxu0 0.0
    %570 = vmatpush1.msra.mxu0 0.0
    %571 = vmatprep.subr.mxu0 0.0
    %572 = vmatpush1.msra.mxu0 0.0
    %573 = vmatprep.subr.mxu0 0.0
    %574 = vmatpush1.msra.mxu0 0.0
    %575 = vmatprep.subr.mxu0 0.0
    %576 = vmatpush1.msra.mxu0 0.0
    %577 = vmatprep.subr.mxu0 0.0
    %578 = vmatpush1.msra.mxu0 0.0
    %579 = vmatprep.subr.mxu0 0.0
    %580 = vmatpush1.msra.mxu0 0.0
    %581 = vmatprep.subr.mxu0 0.0
    %582 = vmatpush1.msra.mxu0 0.0
    %583 = vmatprep.subr.mxu0 0.0
    %584 = vmatpush1.msra.mxu0 0.0
    %585 = vmatprep.subr.mxu0 0.0
    %586 = vmatpush1.msra.mxu0 0.0
    %587 = vmatprep.subr.mxu0 0.0
    %588 = vmatpush1.msra.mxu0 0.0
    %589 = vmatprep.subr.mxu0 0.0
    %590 = vmatpush1.msra.mxu0 0.0
    %591 = vmatprep.subr.mxu0 0.0
    %592 = vmatpush1.msra.mxu0 0.0
    %593 = vmatprep.subr.mxu0 0.0
    %594 = vmatpush1.msra.mxu0 0.0
    %595 = vmatprep.subr.mxu0 0.0
    %596 = vmatpush1.msra.mxu0 0.0
    %597 = vmatprep.subr.mxu0 0.0
    %598 = vmatpush1.msra.mxu0 0.0
    %599 = vmatprep.subr.mxu0 0.0
    %600 = vmatpush1.msra.mxu0 0.0
    %601 = vmatprep.subr.mxu0 0.0
    %602 = vmatpush1.msra.mxu0 0.0
    %603 = vmatprep.subr.mxu0 0.0
    %604 = vmatpush1.msra.mxu0 0.0
    %605 = vmatprep.subr.mxu0 0.0
    %606 = vmatpush1.msra.mxu0 0.0
    %607 = vmatprep.subr.mxu0 0.0
    %608 = vmatpush1.msra.mxu0 0.0
    %609 = vmatprep.subr.mxu0 0.0
    %610 = vmatpush1.msra.mxu0 0.0
    %611 = vmatprep.subr.mxu0 0.0
    %612 = vmatpush1.msra.mxu0 0.0
    %613 = vmatprep.mubr.f32.mxu0 0.0
    %614 = vmatmul.mubr.f32.gmra.mrb[0].mxu0 %v477
    %v615 = vpop.f32.mrb[0].mxu0
    %v616 = vadd.f32 0.0, %v615
    %v617 = vpop.f32.mrb[0].mxu0
    %618 = vdwg.mxu0
    %v619 = vmax.f32 %v546, %v616
    %vm620 = vcmask 257024
    %621 = vst.msk [vmem:[#allocation3 + $0x4] sm:$0xf] %vm620, %v619
    %v622 = vld [vmem:[#allocation3] sm:$0xf]
    %v623 = vld [vmem:[%s7] sm:$0xff]
    %v624 = vld [vmem:[%s7 + $0x8] sm:$0xff]
    %v625 = vld [vmem:[%s7 + $0x10] sm:$0xff]
    %v626 = vld [vmem:[%s7 + $0x18] sm:$0xff]
    %v627 = vld [vmem:[#allocation3 + $0x1] sm:$0xf]
    %s628 = scalar_lea.vmem %s7, 32
    %v629 = vld [vmem:[%s628] sm:$0xff]
    %v630 = vld [vmem:[%s628 + $0x8] sm:$0xff]
    %v631 = vld [vmem:[%s628 + $0x10] sm:$0xff]
    %v632 = vld [vmem:[%s628 + $0x18] sm:$0xff]
    %v634 = vsel %vm56, %v627, 0
    %636 = vmatprep.subr.mxu0 0.0
    %637 = vmatpush1.msra.mxu0 %v629
    %638 = vmatprep.subr.mxu0 0.0
    %639 = vmatpush1.msra.mxu0 %v630
    %640 = vmatprep.subr.mxu0 0.0
    %641 = vmatpush1.msra.mxu0 %v631
    %642 = vmatprep.subr.mxu0 0.0
    %643 = vmatpush1.msra.mxu0 %v632
    %644 = vmatprep.subr.mxu0 0.0
    %645 = vmatpush1.msra.mxu0 0.0
    %646 = vmatprep.subr.mxu0 0.0
    %647 = vmatpush1.msra.mxu0 0.0
    %648 = vmatprep.subr.mxu0 0.0
    %649 = vmatpush1.msra.mxu0 0.0
    %650 = vmatprep.subr.mxu0 0.0
    %651 = vmatpush1.msra.mxu0 0.0
    %652 = vmatprep.subr.mxu0 0.0
    %653 = vmatpush1.msra.mxu0 0.0
    %654 = vmatprep.subr.mxu0 0.0
    %655 = vmatpush1.msra.mxu0 0.0
    %656 = vmatprep.subr.mxu0 0.0
    %657 = vmatpush1.msra.mxu0 0.0
    %658 = vmatprep.subr.mxu0 0.0
    %659 = vmatpush1.msra.mxu0 0.0
    %660 = vmatprep.subr.mxu0 0.0
    %661 = vmatpush1.msra.mxu0 0.0
    %662 = vmatprep.subr.mxu0 0.0
    %663 = vmatpush1.msra.mxu0 0.0
    %664 = vmatprep.subr.mxu0 0.0
    %665 = vmatpush1.msra.mxu0 0.0
    %666 = vmatprep.subr.mxu0 0.0
    %667 = vmatpush1.msra.mxu0 0.0
    %668 = vmatprep.subr.mxu0 0.0
    %669 = vmatpush1.msra.mxu0 0.0
    %670 = vmatprep.subr.mxu0 0.0
    %671 = vmatpush1.msra.mxu0 0.0
    %672 = vmatprep.subr.mxu0 0.0
    %673 = vmatpush1.msra.mxu0 0.0
    %674 = vmatprep.subr.mxu0 0.0
    %675 = vmatpush1.msra.mxu0 0.0
    %676 = vmatprep.subr.mxu0 0.0
    %677 = vmatpush1.msra.mxu0 0.0
    %678 = vmatprep.subr.mxu0 0.0
    %679 = vmatpush1.msra.mxu0 0.0
    %680 = vmatprep.subr.mxu0 0.0
    %681 = vmatpush1.msra.mxu0 0.0
    %682 = vmatprep.subr.mxu0 0.0
    %683 = vmatpush1.msra.mxu0 0.0
    %684 = vmatprep.subr.mxu0 0.0
    %685 = vmatpush1.msra.mxu0 0.0
    %686 = vmatprep.subr.mxu0 0.0
    %687 = vmatpush1.msra.mxu0 0.0
    %688 = vmatprep.subr.mxu0 0.0
    %689 = vmatpush1.msra.mxu0 0.0
    %690 = vmatprep.subr.mxu0 0.0
    %691 = vmatpush1.msra.mxu0 0.0
    %692 = vmatprep.subr.mxu0 0.0
    %693 = vmatpush1.msra.mxu0 0.0
    %694 = vmatprep.subr.mxu0 0.0
    %695 = vmatpush1.msra.mxu0 0.0
    %696 = vmatprep.subr.mxu0 0.0
    %697 = vmatpush1.msra.mxu0 0.0
    %698 = vmatprep.subr.mxu0 0.0
    %699 = vmatpush1.msra.mxu0 0.0
    %700 = vmatprep.mubr.f32.mxu0 0.0
    %701 = vmatmul.mubr.f32.gmra.mrb[0].mxu0 %v634
    %v702 = vpop.f32.mrb[0].mxu0
    %v703 = vadd.f32 0.0, %v702
    %v704 = vpop.f32.mrb[0].mxu0
    %705 = vdwg.mxu0
    %v707 = vsel %vm56, %v622, 0
    %709 = vmatprep.subr.mxu0 0.0
    %710 = vmatpush1.msra.mxu0 %v623
    %711 = vmatprep.subr.mxu0 0.0
    %712 = vmatpush1.msra.mxu0 %v624
    %713 = vmatprep.subr.mxu0 0.0
    %714 = vmatpush1.msra.mxu0 %v625
    %715 = vmatprep.subr.mxu0 0.0
    %716 = vmatpush1.msra.mxu0 %v626
    %717 = vmatprep.subr.mxu0 0.0
    %718 = vmatpush1.msra.mxu0 0.0
    %719 = vmatprep.subr.mxu0 0.0
    %720 = vmatpush1.msra.mxu0 0.0
    %721 = vmatprep.subr.mxu0 0.0
    %722 = vmatpush1.msra.mxu0 0.0
    %723 = vmatprep.subr.mxu0 0.0
    %724 = vmatpush1.msra.mxu0 0.0
    %725 = vmatprep.subr.mxu0 0.0
    %726 = vmatpush1.msra.mxu0 0.0
    %727 = vmatprep.subr.mxu0 0.0
    %728 = vmatpush1.msra.mxu0 0.0
    %729 = vmatprep.subr.mxu0 0.0
    %730 = vmatpush1.msra.mxu0 0.0
    %731 = vmatprep.subr.mxu0 0.0
    %732 = vmatpush1.msra.mxu0 0.0
    %733 = vmatprep.subr.mxu0 0.0
    %734 = vmatpush1.msra.mxu0 0.0
    %735 = vmatprep.subr.mxu0 0.0
    %736 = vmatpush1.msra.mxu0 0.0
    %737 = vmatprep.subr.mxu0 0.0
    %738 = vmatpush1.msra.mxu0 0.0
    %739 = vmatprep.subr.mxu0 0.0
    %740 = vmatpush1.msra.mxu0 0.0
    %741 = vmatprep.subr.mxu0 0.0
    %742 = vmatpush1.msra.mxu0 0.0
    %743 = vmatprep.subr.mxu0 0.0
    %744 = vmatpush1.msra.mxu0 0.0
    %745 = vmatprep.subr.mxu0 0.0
    %746 = vmatpush1.msra.mxu0 0.0
    %747 = vmatprep.subr.mxu0 0.0
    %748 = vmatpush1.msra.mxu0 0.0
    %749 = vmatprep.subr.mxu0 0.0
    %750 = vmatpush1.msra.mxu0 0.0
    %751 = vmatprep.subr.mxu0 0.0
    %752 = vmatpush1.msra.mxu0 0.0
    %753 = vmatprep.subr.mxu0 0.0
    %754 = vmatpush1.msra.mxu0 0.0
    %755 = vmatprep.subr.mxu0 0.0
    %756 = vmatpush1.msra.mxu0 0.0
    %757 = vmatprep.subr.mxu0 0.0
    %758 = vmatpush1.msra.mxu0 0.0
    %759 = vmatprep.subr.mxu0 0.0
    %760 = vmatpush1.msra.mxu0 0.0
    %761 = vmatprep.subr.mxu0 0.0
    %762 = vmatpush1.msra.mxu0 0.0
    %763 = vmatprep.subr.mxu0 0.0
    %764 = vmatpush1.msra.mxu0 0.0
    %765 = vmatprep.subr.mxu0 0.0
    %766 = vmatpush1.msra.mxu0 0.0
    %767 = vmatprep.subr.mxu0 0.0
    %768 = vmatpush1.msra.mxu0 0.0
    %769 = vmatprep.subr.mxu0 0.0
    %770 = vmatpush1.msra.mxu0 0.0
    %771 = vmatprep.subr.mxu0 0.0
    %772 = vmatpush1.msra.mxu0 0.0
    %773 = vmatprep.mubr.f32.mxu0 0.0
    %774 = vmatmul.mubr.f32.gmra.mrb[0].mxu0 %v707
    %v775 = vpop.f32.mrb[0].mxu0
    %v776 = vadd.f32 %v703, %v775
    %v777 = vpop.f32.mrb[0].mxu0
    %778 = vdwg.mxu0
    %v779 = vld [vmem:[#allocation3 + $0x2] sm:$0xf]
    %s780 = scalar_lea.vmem %s7, 64
    %v781 = vld [vmem:[%s780] sm:$0xff]
    %v782 = vld [vmem:[%s780 + $0x8] sm:$0xff]
    %v783 = vld [vmem:[%s780 + $0x10] sm:$0xff]
    %v784 = vld [vmem:[%s780 + $0x18] sm:$0xff]
    %v786 = vsel %vm56, %v779, 0
    %788 = vmatprep.subr.mxu0 0.0
    %789 = vmatpush1.msra.mxu0 %v781
    %790 = vmatprep.subr.mxu0 0.0
    %791 = vmatpush1.msra.mxu0 %v782
    %792 = vmatprep.subr.mxu0 0.0
    %793 = vmatpush1.msra.mxu0 %v783
    %794 = vmatprep.subr.mxu0 0.0
    %795 = vmatpush1.msra.mxu0 %v784
    %796 = vmatprep.subr.mxu0 0.0
    %797 = vmatpush1.msra.mxu0 0.0
    %798 = vmatprep.subr.mxu0 0.0
    %799 = vmatpush1.msra.mxu0 0.0
    %800 = vmatprep.subr.mxu0 0.0
    %801 = vmatpush1.msra.mxu0 0.0
    %802 = vmatprep.subr.mxu0 0.0
    %803 = vmatpush1.msra.mxu0 0.0
    %804 = vmatprep.subr.mxu0 0.0
    %805 = vmatpush1.msra.mxu0 0.0
    %806 = vmatprep.subr.mxu0 0.0
    %807 = vmatpush1.msra.mxu0 0.0
    %808 = vmatprep.subr.mxu0 0.0
    %809 = vmatpush1.msra.mxu0 0.0
    %810 = vmatprep.subr.mxu0 0.0
    %811 = vmatpush1.msra.mxu0 0.0
    %812 = vmatprep.subr.mxu0 0.0
    %813 = vmatpush1.msra.mxu0 0.0
    %814 = vmatprep.subr.mxu0 0.0
    %815 = vmatpush1.msra.mxu0 0.0
    %816 = vmatprep.subr.mxu0 0.0
    %817 = vmatpush1.msra.mxu0 0.0
    %818 = vmatprep.subr.mxu0 0.0
    %819 = vmatpush1.msra.mxu0 0.0
    %820 = vmatprep.subr.mxu0 0.0
    %821 = vmatpush1.msra.mxu0 0.0
    %822 = vmatprep.subr.mxu0 0.0
    %823 = vmatpush1.msra.mxu0 0.0
    %824 = vmatprep.subr.mxu0 0.0
    %825 = vmatpush1.msra.mxu0 0.0
    %826 = vmatprep.subr.mxu0 0.0
    %827 = vmatpush1.msra.mxu0 0.0
    %828 = vmatprep.subr.mxu0 0.0
    %829 = vmatpush1.msra.mxu0 0.0
    %830 = vmatprep.subr.mxu0 0.0
    %831 = vmatpush1.msra.mxu0 0.0
    %832 = vmatprep.subr.mxu0 0.0
    %833 = vmatpush1.msra.mxu0 0.0
    %834 = vmatprep.subr.mxu0 0.0
    %835 = vmatpush1.msra.mxu0 0.0
    %836 = vmatprep.subr.mxu0 0.0
    %837 = vmatpush1.msra.mxu0 0.0
    %838 = vmatprep.subr.mxu0 0.0
    %839 = vmatpush1.msra.mxu0 0.0
    %840 = vmatprep.subr.mxu0 0.0
    %841 = vmatpush1.msra.mxu0 0.0
    %842 = vmatprep.subr.mxu0 0.0
    %843 = vmatpush1.msra.mxu0 0.0
    %844 = vmatprep.subr.mxu0 0.0
    %845 = vmatpush1.msra.mxu0 0.0
    %846 = vmatprep.subr.mxu0 0.0
    %847 = vmatpush1.msra.mxu0 0.0
    %848 = vmatprep.subr.mxu0 0.0
    %849 = vmatpush1.msra.mxu0 0.0
    %850 = vmatprep.subr.mxu0 0.0
    %851 = vmatpush1.msra.mxu0 0.0
    %852 = vmatprep.mubr.f32.mxu0 0.0
    %853 = vmatmul.mubr.f32.gmra.mrb[0].mxu0 %v786
    %v854 = vpop.f32.mrb[0].mxu0
    %v855 = vadd.f32 0.0, %v854
    %v856 = vpop.f32.mrb[0].mxu0
    %857 = vdwg.mxu0
    %v858 = vadd.f32 %v776, %v855
    %v859 = vld [vmem:[#allocation3 + $0x3] sm:$0xf]
    %s860 = scalar_lea.vmem %s7, 96
    %v861 = vld [vmem:[%s860] sm:$0xff]
    %v862 = vld [vmem:[%s860 + $0x8] sm:$0xff]
    %v863 = vld [vmem:[%s860 + $0x10] sm:$0xff]
    %v864 = vld [vmem:[%s860 + $0x18] sm:$0xff]
    %v866 = vsel %vm56, %v859, 0
    %868 = vmatprep.subr.mxu0 0.0
    %869 = vmatpush1.msra.mxu0 %v861
    %870 = vmatprep.subr.mxu0 0.0
    %871 = vmatpush1.msra.mxu0 %v862
    %872 = vmatprep.subr.mxu0 0.0
    %873 = vmatpush1.msra.mxu0 %v863
    %874 = vmatprep.subr.mxu0 0.0
    %875 = vmatpush1.msra.mxu0 %v864
    %876 = vmatprep.subr.mxu0 0.0
    %877 = vmatpush1.msra.mxu0 0.0
    %878 = vmatprep.subr.mxu0 0.0
    %879 = vmatpush1.msra.mxu0 0.0
    %880 = vmatprep.subr.mxu0 0.0
    %881 = vmatpush1.msra.mxu0 0.0
    %882 = vmatprep.subr.mxu0 0.0
    %883 = vmatpush1.msra.mxu0 0.0
    %884 = vmatprep.subr.mxu0 0.0
    %885 = vmatpush1.msra.mxu0 0.0
    %886 = vmatprep.subr.mxu0 0.0
    %887 = vmatpush1.msra.mxu0 0.0
    %888 = vmatprep.subr.mxu0 0.0
    %889 = vmatpush1.msra.mxu0 0.0
    %890 = vmatprep.subr.mxu0 0.0
    %891 = vmatpush1.msra.mxu0 0.0
    %892 = vmatprep.subr.mxu0 0.0
    %893 = vmatpush1.msra.mxu0 0.0
    %894 = vmatprep.subr.mxu0 0.0
    %895 = vmatpush1.msra.mxu0 0.0
    %896 = vmatprep.subr.mxu0 0.0
    %897 = vmatpush1.msra.mxu0 0.0
    %898 = vmatprep.subr.mxu0 0.0
    %899 = vmatpush1.msra.mxu0 0.0
    %900 = vmatprep.subr.mxu0 0.0
    %901 = vmatpush1.msra.mxu0 0.0
    %902 = vmatprep.subr.mxu0 0.0
    %903 = vmatpush1.msra.mxu0 0.0
    %904 = vmatprep.subr.mxu0 0.0
    %905 = vmatpush1.msra.mxu0 0.0
    %906 = vmatprep.subr.mxu0 0.0
    %907 = vmatpush1.msra.mxu0 0.0
    %908 = vmatprep.subr.mxu0 0.0
    %909 = vmatpush1.msra.mxu0 0.0
    %910 = vmatprep.subr.mxu0 0.0
    %911 = vmatpush1.msra.mxu0 0.0
    %912 = vmatprep.subr.mxu0 0.0
    %913 = vmatpush1.msra.mxu0 0.0
    %914 = vmatprep.subr.mxu0 0.0
    %915 = vmatpush1.msra.mxu0 0.0
    %916 = vmatprep.subr.mxu0 0.0
    %917 = vmatpush1.msra.mxu0 0.0
    %918 = vmatprep.subr.mxu0 0.0
    %919 = vmatpush1.msra.mxu0 0.0
    %920 = vmatprep.subr.mxu0 0.0
    %921 = vmatpush1.msra.mxu0 0.0
    %922 = vmatprep.subr.mxu0 0.0
    %923 = vmatpush1.msra.mxu0 0.0
    %924 = vmatprep.subr.mxu0 0.0
    %925 = vmatpush1.msra.mxu0 0.0
    %926 = vmatprep.subr.mxu0 0.0
    %927 = vmatpush1.msra.mxu0 0.0
    %928 = vmatprep.subr.mxu0 0.0
    %929 = vmatpush1.msra.mxu0 0.0
    %930 = vmatprep.subr.mxu0 0.0
    %931 = vmatpush1.msra.mxu0 0.0
    %932 = vmatprep.mubr.f32.mxu0 0.0
    %933 = vmatmul.mubr.f32.gmra.mrb[0].mxu0 %v866
    %v934 = vpop.f32.mrb[0].mxu0
    %v935 = vadd.f32 0.0, %v934
    %v936 = vpop.f32.mrb[0].mxu0
    %937 = vdwg.mxu0
    %v938 = vadd.f32 %v858, %v935
    %v939 = vld [vmem:[#allocation3 + $0x4] sm:$0xf]
    %s940 = scalar_lea.vmem %s7, 128
    %v941 = vld [vmem:[%s940] sm:$0xff]
    %v942 = vld [vmem:[%s940 + $0x8] sm:$0xff]
    %v943 = vld [vmem:[%s940 + $0x10] sm:$0xff]
    %v944 = vld [vmem:[%s940 + $0x18] sm:$0xff]
    %v946 = vsel %vm56, %v939, 0
    %948 = vmatprep.subr.mxu0 0.0
    %949 = vmatpush1.msra.mxu0 %v941
    %950 = vmatprep.subr.mxu0 0.0
    %951 = vmatpush1.msra.mxu0 %v942
    %952 = vmatprep.subr.mxu0 0.0
    %953 = vmatpush1.msra.mxu0 %v943
    %954 = vmatprep.subr.mxu0 0.0
    %955 = vmatpush1.msra.mxu0 %v944
    %956 = vmatprep.subr.mxu0 0.0
    %957 = vmatpush1.msra.mxu0 0.0
    %958 = vmatprep.subr.mxu0 0.0
    %959 = vmatpush1.msra.mxu0 0.0
    %960 = vmatprep.subr.mxu0 0.0
    %961 = vmatpush1.msra.mxu0 0.0
    %962 = vmatprep.subr.mxu0 0.0
    %963 = vmatpush1.msra.mxu0 0.0
    %964 = vmatprep.subr.mxu0 0.0
    %965 = vmatpush1.msra.mxu0 0.0
    %966 = vmatprep.subr.mxu0 0.0
    %967 = vmatpush1.msra.mxu0 0.0
    %968 = vmatprep.subr.mxu0 0.0
    %969 = vmatpush1.msra.mxu0 0.0
    %970 = vmatprep.subr.mxu0 0.0
    %971 = vmatpush1.msra.mxu0 0.0
    %972 = vmatprep.subr.mxu0 0.0
    %973 = vmatpush1.msra.mxu0 0.0
    %974 = vmatprep.subr.mxu0 0.0
    %975 = vmatpush1.msra.mxu0 0.0
    %976 = vmatprep.subr.mxu0 0.0
    %977 = vmatpush1.msra.mxu0 0.0
    %978 = vmatprep.subr.mxu0 0.0
    %979 = vmatpush1.msra.mxu0 0.0
    %980 = vmatprep.subr.mxu0 0.0
    %981 = vmatpush1.msra.mxu0 0.0
    %982 = vmatprep.subr.mxu0 0.0
    %983 = vmatpush1.msra.mxu0 0.0
    %984 = vmatprep.subr.mxu0 0.0
    %985 = vmatpush1.msra.mxu0 0.0
    %986 = vmatprep.subr.mxu0 0.0
    %987 = vmatpush1.msra.mxu0 0.0
    %988 = vmatprep.subr.mxu0 0.0
    %989 = vmatpush1.msra.mxu0 0.0
    %990 = vmatprep.subr.mxu0 0.0
    %991 = vmatpush1.msra.mxu0 0.0
    %992 = vmatprep.subr.mxu0 0.0
    %993 = vmatpush1.msra.mxu0 0.0
    %994 = vmatprep.subr.mxu0 0.0
    %995 = vmatpush1.msra.mxu0 0.0
    %996 = vmatprep.subr.mxu0 0.0
    %997 = vmatpush1.msra.mxu0 0.0
    %998 = vmatprep.subr.mxu0 0.0
    %999 = vmatpush1.msra.mxu0 0.0
    %1000 = vmatprep.subr.mxu0 0.0
    %1001 = vmatpush1.msra.mxu0 0.0
    %1002 = vmatprep.subr.mxu0 0.0
    %1003 = vmatpush1.msra.mxu0 0.0
    %1004 = vmatprep.subr.mxu0 0.0
    %1005 = vmatpush1.msra.mxu0 0.0
    %1006 = vmatprep.subr.mxu0 0.0
    %1007 = vmatpush1.msra.mxu0 0.0
    %1008 = vmatprep.subr.mxu0 0.0
    %1009 = vmatpush1.msra.mxu0 0.0
    %1010 = vmatprep.subr.mxu0 0.0
    %1011 = vmatpush1.msra.mxu0 0.0
    %1012 = vmatprep.mubr.f32.mxu0 0.0
    %1013 = vmatmul.mubr.f32.gmra.mrb[0].mxu0 %v946
    %v1014 = vpop.f32.mrb[0].mxu0
    %v1015 = vadd.f32 0.0, %v1014
    %v1016 = vpop.f32.mrb[0].mxu0
    %1017 = vdwg.mxu0
    %v1018 = vadd.f32 %v938, %v1015
    %v1019 = vld [vmem:[#allocation3 + $0x5] sm:$0xf]
    %s1020 = scalar_lea.vmem %s7, 160
    %v1021 = vld [vmem:[%s1020] sm:$0xff]
    %v1022 = vld [vmem:[%s1020 + $0x8] sm:$0xff]
    %v1023 = vld [vmem:[%s1020 + $0x10] sm:$0xff]
    %v1024 = vld [vmem:[%s1020 + $0x18] sm:$0xff]
    %v1026 = vsel %vm56, %v1019, 0
    %1028 = vmatprep.subr.mxu0 0.0
    %1029 = vmatpush1.msra.mxu0 %v1021
    %1030 = vmatprep.subr.mxu0 0.0
    %1031 = vmatpush1.msra.mxu0 %v1022
    %1032 = vmatprep.subr.mxu0 0.0
    %1033 = vmatpush1.msra.mxu0 %v1023
    %1034 = vmatprep.subr.mxu0 0.0
    %1035 = vmatpush1.msra.mxu0 %v1024
    %1036 = vmatprep.subr.mxu0 0.0
    %1037 = vmatpush1.msra.mxu0 0.0
    %1038 = vmatprep.subr.mxu0 0.0
    %1039 = vmatpush1.msra.mxu0 0.0
    %1040 = vmatprep.subr.mxu0 0.0
    %1041 = vmatpush1.msra.mxu0 0.0
    %1042 = vmatprep.subr.mxu0 0.0
    %1043 = vmatpush1.msra.mxu0 0.0
    %1044 = vmatprep.subr.mxu0 0.0
    %1045 = vmatpush1.msra.mxu0 0.0
    %1046 = vmatprep.subr.mxu0 0.0
    %1047 = vmatpush1.msra.mxu0 0.0
    %1048 = vmatprep.subr.mxu0 0.0
    %1049 = vmatpush1.msra.mxu0 0.0
    %1050 = vmatprep.subr.mxu0 0.0
    %1051 = vmatpush1.msra.mxu0 0.0
    %1052 = vmatprep.subr.mxu0 0.0
    %1053 = vmatpush1.msra.mxu0 0.0
    %1054 = vmatprep.subr.mxu0 0.0
    %1055 = vmatpush1.msra.mxu0 0.0
    %1056 = vmatprep.subr.mxu0 0.0
    %1057 = vmatpush1.msra.mxu0 0.0
    %1058 = vmatprep.subr.mxu0 0.0
    %1059 = vmatpush1.msra.mxu0 0.0
    %1060 = vmatprep.subr.mxu0 0.0
    %1061 = vmatpush1.msra.mxu0 0.0
    %1062 = vmatprep.subr.mxu0 0.0
    %1063 = vmatpush1.msra.mxu0 0.0
    %1064 = vmatprep.subr.mxu0 0.0
    %1065 = vmatpush1.msra.mxu0 0.0
    %1066 = vmatprep.subr.mxu0 0.0
    %1067 = vmatpush1.msra.mxu0 0.0
    %1068 = vmatprep.subr.mxu0 0.0
    %1069 = vmatpush1.msra.mxu0 0.0
    %1070 = vmatprep.subr.mxu0 0.0
    %1071 = vmatpush1.msra.mxu0 0.0
    %1072 = vmatprep.subr.mxu0 0.0
    %1073 = vmatpush1.msra.mxu0 0.0
    %1074 = vmatprep.subr.mxu0 0.0
    %1075 = vmatpush1.msra.mxu0 0.0
    %1076 = vmatprep.subr.mxu0 0.0
    %1077 = vmatpush1.msra.mxu0 0.0
    %1078 = vmatprep.subr.mxu0 0.0
    %1079 = vmatpush1.msra.mxu0 0.0
    %1080 = vmatprep.subr.mxu0 0.0
    %1081 = vmatpush1.msra.mxu0 0.0
    %1082 = vmatprep.subr.mxu0 0.0
    %1083 = vmatpush1.msra.mxu0 0.0
    %1084 = vmatprep.subr.mxu0 0.0
    %1085 = vmatpush1.msra.mxu0 0.0
    %1086 = vmatprep.subr.mxu0 0.0
    %1087 = vmatpush1.msra.mxu0 0.0
    %1088 = vmatprep.subr.mxu0 0.0
    %1089 = vmatpush1.msra.mxu0 0.0
    %1090 = vmatprep.subr.mxu0 0.0
    %1091 = vmatpush1.msra.mxu0 0.0
    %1092 = vmatprep.mubr.f32.mxu0 0.0
    %1093 = vmatmul.mubr.f32.gmra.mrb[0].mxu0 %v1026
    %v1094 = vpop.f32.mrb[0].mxu0
    %v1095 = vadd.f32 0.0, %v1094
    %v1096 = vpop.f32.mrb[0].mxu0
    %1097 = vdwg.mxu0
    %v1098 = vadd.f32 %v1018, %v1095
    %v1099 = vld [vmem:[#allocation3 + $0x6] sm:$0xf]
    %s1100 = scalar_lea.vmem %s7, 192
    %v1101 = vld [vmem:[%s1100] sm:$0xff]
    %v1102 = vld [vmem:[%s1100 + $0x8] sm:$0xff]
    %v1103 = vld [vmem:[%s1100 + $0x10] sm:$0xff]
    %v1104 = vld [vmem:[%s1100 + $0x18] sm:$0xff]
    %v1106 = vsel %vm56, %v1099, 0
    %1108 = vmatprep.subr.mxu0 0.0
    %1109 = vmatpush1.msra.mxu0 %v1101
    %1110 = vmatprep.subr.mxu0 0.0
    %1111 = vmatpush1.msra.mxu0 %v1102
    %1112 = vmatprep.subr.mxu0 0.0
    %1113 = vmatpush1.msra.mxu0 %v1103
    %1114 = vmatprep.subr.mxu0 0.0
    %1115 = vmatpush1.msra.mxu0 %v1104
    %1116 = vmatprep.subr.mxu0 0.0
    %1117 = vmatpush1.msra.mxu0 0.0
    %1118 = vmatprep.subr.mxu0 0.0
    %1119 = vmatpush1.msra.mxu0 0.0
    %1120 = vmatprep.subr.mxu0 0.0
    %1121 = vmatpush1.msra.mxu0 0.0
    %1122 = vmatprep.subr.mxu0 0.0
    %1123 = vmatpush1.msra.mxu0 0.0
    %1124 = vmatprep.subr.mxu0 0.0
    %1125 = vmatpush1.msra.mxu0 0.0
    %1126 = vmatprep.subr.mxu0 0.0
    %1127 = vmatpush1.msra.mxu0 0.0
    %1128 = vmatprep.subr.mxu0 0.0
    %1129 = vmatpush1.msra.mxu0 0.0
    %1130 = vmatprep.subr.mxu0 0.0
    %1131 = vmatpush1.msra.mxu0 0.0
    %1132 = vmatprep.subr.mxu0 0.0
    %1133 = vmatpush1.msra.mxu0 0.0
    %1134 = vmatprep.subr.mxu0 0.0
    %1135 = vmatpush1.msra.mxu0 0.0
    %1136 = vmatprep.subr.mxu0 0.0
    %1137 = vmatpush1.msra.mxu0 0.0
    %1138 = vmatprep.subr.mxu0 0.0
    %1139 = vmatpush1.msra.mxu0 0.0
    %1140 = vmatprep.subr.mxu0 0.0
    %1141 = vmatpush1.msra.mxu0 0.0
    %1142 = vmatprep.subr.mxu0 0.0
    %1143 = vmatpush1.msra.mxu0 0.0
    %1144 = vmatprep.subr.mxu0 0.0
    %1145 = vmatpush1.msra.mxu0 0.0
    %1146 = vmatprep.subr.mxu0 0.0
    %1147 = vmatpush1.msra.mxu0 0.0
    %1148 = vmatprep.subr.mxu0 0.0
    %1149 = vmatpush1.msra.mxu0 0.0
    %1150 = vmatprep.subr.mxu0 0.0
    %1151 = vmatpush1.msra.mxu0 0.0
    %1152 = vmatprep.subr.mxu0 0.0
    %1153 = vmatpush1.msra.mxu0 0.0
    %1154 = vmatprep.subr.mxu0 0.0
    %1155 = vmatpush1.msra.mxu0 0.0
    %1156 = vmatprep.subr.mxu0 0.0
    %1157 = vmatpush1.msra.mxu0 0.0
    %1158 = vmatprep.subr.mxu0 0.0
    %1159 = vmatpush1.msra.mxu0 0.0
    %1160 = vmatprep.subr.mxu0 0.0
    %1161 = vmatpush1.msra.mxu0 0.0
    %1162 = vmatprep.subr.mxu0 0.0
    %1163 = vmatpush1.msra.mxu0 0.0
    %1164 = vmatprep.subr.mxu0 0.0
    %1165 = vmatpush1.msra.mxu0 0.0
    %1166 = vmatprep.subr.mxu0 0.0
    %1167 = vmatpush1.msra.mxu0 0.0
    %1168 = vmatprep.subr.mxu0 0.0
    %1169 = vmatpush1.msra.mxu0 0.0
    %1170 = vmatprep.subr.mxu0 0.0
    %1171 = vmatpush1.msra.mxu0 0.0
    %1172 = vmatprep.mubr.f32.mxu0 0.0
    %1173 = vmatmul.mubr.f32.gmra.mrb[0].mxu0 %v1106
    %v1174 = vpop.f32.mrb[0].mxu0
    %v1175 = vadd.f32 0.0, %v1174
    %v1176 = vpop.f32.mrb[0].mxu0
    %1177 = vdwg.mxu0
    %v1178 = vadd.f32 %v1098, %v1175
    %v1179 = vld [vmem:[#allocation3 + $0x7] sm:$0xf]
    %s1180 = scalar_lea.vmem %s7, 224
    %v1181 = vld [vmem:[%s1180] sm:$0xff]
    %v1182 = vld [vmem:[%s1180 + $0x8] sm:$0xff]
    %v1183 = vld [vmem:[%s1180 + $0x10] sm:$0xff]
    %v1184 = vld [vmem:[%s1180 + $0x18] sm:$0xff]
    %v1186 = vsel %vm56, %v1179, 0
    %1188 = vmatprep.subr.mxu0 0.0
    %1189 = vmatpush1.msra.mxu0 %v1181
    %1190 = vmatprep.subr.mxu0 0.0
    %1191 = vmatpush1.msra.mxu0 %v1182
    %1192 = vmatprep.subr.mxu0 0.0
    %1193 = vmatpush1.msra.mxu0 %v1183
    %1194 = vmatprep.subr.mxu0 0.0
    %1195 = vmatpush1.msra.mxu0 %v1184
    %1196 = vmatprep.subr.mxu0 0.0
    %1197 = vmatpush1.msra.mxu0 0.0
    %1198 = vmatprep.subr.mxu0 0.0
    %1199 = vmatpush1.msra.mxu0 0.0
    %1200 = vmatprep.subr.mxu0 0.0
    %1201 = vmatpush1.msra.mxu0 0.0
    %1202 = vmatprep.subr.mxu0 0.0
    %1203 = vmatpush1.msra.mxu0 0.0
    %1204 = vmatprep.subr.mxu0 0.0
    %1205 = vmatpush1.msra.mxu0 0.0
    %1206 = vmatprep.subr.mxu0 0.0
    %1207 = vmatpush1.msra.mxu0 0.0
    %1208 = vmatprep.subr.mxu0 0.0
    %1209 = vmatpush1.msra.mxu0 0.0
    %1210 = vmatprep.subr.mxu0 0.0
    %1211 = vmatpush1.msra.mxu0 0.0
    %1212 = vmatprep.subr.mxu0 0.0
    %1213 = vmatpush1.msra.mxu0 0.0
    %1214 = vmatprep.subr.mxu0 0.0
    %1215 = vmatpush1.msra.mxu0 0.0
    %1216 = vmatprep.subr.mxu0 0.0
    %1217 = vmatpush1.msra.mxu0 0.0
    %1218 = vmatprep.subr.mxu0 0.0
    %1219 = vmatpush1.msra.mxu0 0.0
    %1220 = vmatprep.subr.mxu0 0.0
    %1221 = vmatpush1.msra.mxu0 0.0
    %1222 = vmatprep.subr.mxu0 0.0
    %1223 = vmatpush1.msra.mxu0 0.0
    %1224 = vmatprep.subr.mxu0 0.0
    %1225 = vmatpush1.msra.mxu0 0.0
    %1226 = vmatprep.subr.mxu0 0.0
    %1227 = vmatpush1.msra.mxu0 0.0
    %1228 = vmatprep.subr.mxu0 0.0
    %1229 = vmatpush1.msra.mxu0 0.0
    %1230 = vmatprep.subr.mxu0 0.0
    %1231 = vmatpush1.msra.mxu0 0.0
    %1232 = vmatprep.subr.mxu0 0.0
    %1233 = vmatpush1.msra.mxu0 0.0
    %1234 = vmatprep.subr.mxu0 0.0
    %1235 = vmatpush1.msra.mxu0 0.0
    %1236 = vmatprep.subr.mxu0 0.0
    %1237 = vmatpush1.msra.mxu0 0.0
    %1238 = vmatprep.subr.mxu0 0.0
    %1239 = vmatpush1.msra.mxu0 0.0
    %1240 = vmatprep.subr.mxu0 0.0
    %1241 = vmatpush1.msra.mxu0 0.0
    %1242 = vmatprep.subr.mxu0 0.0
    %1243 = vmatpush1.msra.mxu0 0.0
    %1244 = vmatprep.subr.mxu0 0.0
    %1245 = vmatpush1.msra.mxu0 0.0
    %1246 = vmatprep.subr.mxu0 0.0
    %1247 = vmatpush1.msra.mxu0 0.0
    %1248 = vmatprep.subr.mxu0 0.0
    %1249 = vmatpush1.msra.mxu0 0.0
    %1250 = vmatprep.subr.mxu0 0.0
    %1251 = vmatpush1.msra.mxu0 0.0
    %1252 = vmatprep.mubr.f32.mxu0 0.0
    %1253 = vmatmul.mubr.f32.gmra.mrb[0].mxu0 %v1186
    %v1254 = vpop.f32.mrb[0].mxu0
    %v1255 = vadd.f32 0.0, %v1254
    %v1256 = vpop.f32.mrb[0].mxu0
    %1257 = vdwg.mxu0
    %v1258 = vadd.f32 %v1178, %v1255
    %v1259 = vld [vmem:[%s8] sm:$0x1]
    %v1260 = vlaneseq
    %v1261 = vshrl.u32 %v1260, 7
    %v1262 = vsub.s32 0, %v1261
    %v1263 = vrot.slane %v1259, %v1262
    %v1264 = vadd.f32 %v1258, %v1263
    %vm1265 = vcmp.gt.f32.partialorder %v1264, 0.0
    %v1266 = vmul.f32 %v1264, 1.442695
    %v1267 = vpow.pop %v1266
    %v1268 = vsub.f32 %v1267, 1.0
    %v1269 = vsel %vm1265, %v1264, %v1268
    %v1270 = vld [vmem:[%s8 + $0x1] sm:$0x1]
    %v1271 = vlaneseq
    %v1272 = vshrl.u32 %v1271, 7
    %v1273 = vsub.s32 0, %v1272
    %v1274 = vrot.slane %v1270, %v1273
    %v1275 = vmul.f32 %v1269, %v1274
    %v1276 = vld [vmem:[%s8 + $0x2] sm:$0x1]
    %v1277 = vlaneseq
    %v1278 = vshrl.u32 %v1277, 7
    %v1279 = vsub.s32 0, %v1278
    %v1280 = vrot.slane %v1276, %v1279
    %v1281 = vadd.f32 %v1275, %v1280
    %s1282 = sld [smem:[#allocation4 + $0x8]]
    %v1283 = vstv %s1282
    %v1284 = vadd.f32 %v1283, 0.0
    %v1286 = vrot.slane %v1281, 1
    %v1288 = vmax.f32 %v1281, %v1286
    %vm1289 = vcmask 24576
    %v1290 = vsel %vm1289, %v1288, -inf
    %1291 = vmax.xlane.f32.xlu0 %v1290
    %v1292 = vpop.xlane.xlu0 %1291
    %s1293 = sld [smem:[#allocation4]]
    %v1294 = vstv %s1293
    %v1295 = vmul.f32 %v1292, %v1294
    %v1296 = vadd.f32 %v1284, %v1295
    %vm1297 = vcmask 26626
    %v1298 = vsel %vm1297, %v1288, -inf
    %1299 = vmax.xlane.f32.xlu0 %v1298
    %v1300 = vpop.xlane.xlu0 %1299
    %s1301 = sld [smem:[#allocation4 + $0x1]]
    %v1302 = vstv %s1301
    %v1303 = vmul.f32 %v1300, %v1302
    %v1305 = vrot.slane %v1303, 2
    %v1307 = vadd.f32 %v1296, %v1305
    %vm1308 = vcmask 65576
    %v1309 = vsel %vm1308, %v1288, -inf
    %1310 = vmax.xlane.f32.xlu0 %v1309
    %v1311 = vpop.xlane.xlu0 %1310
    %s1312 = sld [smem:[#allocation4 + $0x2]]
    %v1313 = vstv %s1312
    %v1314 = vmul.f32 %v1311, %v1313
    %v1315 = vadd.f32 %v1307, %v1314
    %vm1316 = vcmask 67626
    %v1317 = vsel %vm1316, %v1288, -inf
    %1318 = vmax.xlane.f32.xlu0 %v1317
    %v1319 = vpop.xlane.xlu0 %1318
    %s1320 = sld [smem:[#allocation4 + $0x3]]
    %v1321 = vstv %s1320
    %v1322 = vmul.f32 %v1319, %v1321
    %v1324 = vrot.slane %v1322, 2
    %v1326 = vadd.f32 %v1315, %v1324
    %vm1327 = vcmask 106576
    %v1328 = vsel %vm1327, %v1288, -inf
    %1329 = vmax.xlane.f32.xlu0 %v1328
    %v1330 = vpop.xlane.xlu0 %1329
    %s1331 = sld [smem:[#allocation4 + $0x4]]
    %v1332 = vstv %s1331
    %v1333 = vmul.f32 %v1330, %v1332
    %v1334 = vadd.f32 %v1326, %v1333
    %vm1335 = vcmask 108626
    %v1336 = vsel %vm1335, %v1288, -inf
    %1337 = vmax.xlane.f32.xlu0 %v1336
    %v1338 = vpop.xlane.xlu0 %1337
    %s1339 = sld [smem:[#allocation4 + $0x5]]
    %v1340 = vstv %s1339
    %v1341 = vmul.f32 %v1338, %v1340
    %v1343 = vrot.slane %v1341, 2
    %v1345 = vadd.f32 %v1334, %v1343
    %vm1346 = vcmask 147576
    %v1347 = vsel %vm1346, %v1288, -inf
    %1348 = vmax.xlane.f32.xlu0 %v1347
    %v1349 = vpop.xlane.xlu0 %1348
    %s1350 = sld [smem:[#allocation4 + $0x6]]
    %v1351 = vstv %s1350
    %v1352 = vmul.f32 %v1349, %v1351
    %v1353 = vadd.f32 %v1345, %v1352
    %vm1354 = vcmask 149626
    %v1355 = vsel %vm1354, %v1288, -inf
    %1356 = vmax.xlane.f32.xlu0 %v1355
    %v1357 = vpop.xlane.xlu0 %1356
    %s1358 = sld [smem:[#allocation4 + $0x7]]
    %v1359 = vstv %s1358
    %v1360 = vmul.f32 %v1357, %v1359
    %v1362 = vrot.slane %v1360, 2
    %v1364 = vadd.f32 %v1353, %v1362
    %v1365 = vsub.f32 0.0, %v1364
    %v1366 = vmul.f32 %v1365, 1.442695
    %v1367 = vpow.pop %v1366
    %v1368 = vadd.f32 %v1367, 1.0
    %v1369 = vrcp.pop %v1368
    %v1370 = vmul.f32 1.0, %v1369
    %vm1371 = vcmask 0
    %1372 = vst.msk [vmem:[%s10] sm:$0x1] %vm1371, %v1370
    %s1373 = scalar_lea.vmem %s0, 32
    %v1374 = vld [vmem:[%s1373] sm:$0xff]
    %v1375 = vld [vmem:[%s1373 + $0x8] sm:$0xff]
    %v1376 = vld [vmem:[%s1373 + $0x10] sm:$0xff]
    %v1377 = vld [vmem:[%s1373 + $0x18] sm:$0x3f]
    %v1378 = vld [vmem:[%s2] sm:$0xff]
    %v1379 = vld [vmem:[%s2 + $0x8] sm:$0xff]
    %1381 = vset.pattern.permute.xlu0 0
    %1382 = vperm.xlu0 %1381, %v1378
    %v1383 = vpop.permute.xlu0 %1382
    %1386 = vset.pattern.permute.xlu0 0
    %1387 = vperm.xlu0 %1386, %v1379
    %v1388 = vpop.permute.xlu0 %1387
    %v1391 = vsel %vm105, %v1377, 0
    %1393 = vmatprep.subr.mxu0 0.0
    %1394 = vmatpush1.msra.mxu0 %v1374
    %1395 = vmatprep.subr.mxu0 0.0
    %1396 = vmatpush1.msra.mxu0 %v1375
    %1397 = vmatprep.subr.mxu0 0.0
    %1398 = vmatpush1.msra.mxu0 %v1376
    %1399 = vmatprep.subr.mxu0 0.0
    %1400 = vmatpush1.msra.mxu0 %v1391
    %1401 = vmatprep.subr.mxu0 0.0
    %1402 = vmatpush1.msra.mxu0 0.0
    %1403 = vmatprep.subr.mxu0 0.0
    %1404 = vmatpush1.msra.mxu0 0.0
    %1405 = vmatprep.subr.mxu0 0.0
    %1406 = vmatpush1.msra.mxu0 0.0
    %1407 = vmatprep.subr.mxu0 0.0
    %1408 = vmatpush1.msra.mxu0 0.0
    %1409 = vmatprep.subr.mxu0 0.0
    %1410 = vmatpush1.msra.mxu0 0.0
    %1411 = vmatprep.subr.mxu0 0.0
    %1412 = vmatpush1.msra.mxu0 0.0
    %1413 = vmatprep.subr.mxu0 0.0
    %1414 = vmatpush1.msra.mxu0 0.0
    %1415 = vmatprep.subr.mxu0 0.0
    %1416 = vmatpush1.msra.mxu0 0.0
    %1417 = vmatprep.subr.mxu0 0.0
    %1418 = vmatpush1.msra.mxu0 0.0
    %1419 = vmatprep.subr.mxu0 0.0
    %1420 = vmatpush1.msra.mxu0 0.0
    %1421 = vmatprep.subr.mxu0 0.0
    %1422 = vmatpush1.msra.mxu0 0.0
    %1423 = vmatprep.subr.mxu0 0.0
    %1424 = vmatpush1.msra.mxu0 0.0
    %1425 = vmatprep.subr.mxu0 0.0
    %1426 = vmatpush1.msra.mxu0 0.0
    %1427 = vmatprep.subr.mxu0 0.0
    %1428 = vmatpush1.msra.mxu0 0.0
    %1429 = vmatprep.subr.mxu0 0.0
    %1430 = vmatpush1.msra.mxu0 0.0
    %1431 = vmatprep.subr.mxu0 0.0
    %1432 = vmatpush1.msra.mxu0 0.0
    %1433 = vmatprep.subr.mxu0 0.0
    %1434 = vmatpush1.msra.mxu0 0.0
    %1435 = vmatprep.subr.mxu0 0.0
    %1436 = vmatpush1.msra.mxu0 0.0
    %1437 = vmatprep.subr.mxu0 0.0
    %1438 = vmatpush1.msra.mxu0 0.0
    %1439 = vmatprep.subr.mxu0 0.0
    %1440 = vmatpush1.msra.mxu0 0.0
    %1441 = vmatprep.subr.mxu0 0.0
    %1442 = vmatpush1.msra.mxu0 0.0
    %1443 = vmatprep.subr.mxu0 0.0
    %1444 = vmatpush1.msra.mxu0 0.0
    %1445 = vmatprep.subr.mxu0 0.0
    %1446 = vmatpush1.msra.mxu0 0.0
    %1447 = vmatprep.subr.mxu0 0.0
    %1448 = vmatpush1.msra.mxu0 0.0
    %1449 = vmatprep.subr.mxu0 0.0
    %1450 = vmatpush1.msra.mxu0 0.0
    %1451 = vmatprep.subr.mxu0 0.0
    %1452 = vmatpush1.msra.mxu0 0.0
    %1453 = vmatprep.subr.mxu0 0.0
    %1454 = vmatpush1.msra.mxu0 0.0
    %1455 = vmatprep.subr.mxu0 0.0
    %1456 = vmatpush1.msra.mxu0 0.0
    %1457 = vmatprep.mubr.f32.mxu0 0.0
    %1458 = vmatmul.mubr.f32.gmra.mrb[0].mxu0 %v100
    %v1459 = vpop.f32.mrb[0].mxu0
    %v1460 = vadd.f32 %v1383, %v1459
    %v1461 = vpop.f32.mrb[0].mxu0
    %1462 = vmatprep.mubr.f32.mxu0 0.0
    %1463 = vmatmul.mubr.f32.gmra.mrb[0].mxu0 %v103
    %v1464 = vpop.f32.mrb[0].mxu0
    %v1465 = vadd.f32 %v1388, %v1464
    %v1466 = vpop.f32.mrb[0].mxu0
    %1467 = vdwg.mxu0
    %vm1468 = vcmp.gt.f32.partialorder %v1460, 0.0
    %vm1469 = vcmp.gt.f32.partialorder %v1465, 0.0
    %v1470 = vmul.f32 %v1460, 1.442695
    %v1471 = vpow.pop %v1470
    %v1472 = vmul.f32 %v1465, 1.442695
    %v1473 = vpow.pop %v1472
    %v1474 = vsub.f32 %v1471, 1.0
    %v1475 = vsub.f32 %v1473, 1.0
    %v1476 = vsel %vm1468, %v1460, %v1474
    %v1477 = vsel %vm1469, %v1465, %v1475
    %v1478 = vld [vmem:[%s194] sm:$0xff]
    %v1479 = vld [vmem:[%s194 + $0x8] sm:$0xff]
    %1481 = vset.pattern.permute.xlu0 0
    %1482 = vperm.xlu0 %1481, %v1478
    %v1483 = vpop.permute.xlu0 %1482
    %1486 = vset.pattern.permute.xlu0 0
    %1487 = vperm.xlu0 %1486, %v1479
    %v1488 = vpop.permute.xlu0 %1487
    %v1490 = vmul.f32 %v1476, %v1483
    %v1491 = vmul.f32 %v1477, %v1488
    %v1492 = vld [vmem:[%s209] sm:$0xff]
    %v1493 = vld [vmem:[%s209 + $0x8] sm:$0xff]
    %1495 = vset.pattern.permute.xlu0 0
    %1496 = vperm.xlu0 %1495, %v1492
    %v1497 = vpop.permute.xlu0 %1496
    %1500 = vset.pattern.permute.xlu0 0
    %1501 = vperm.xlu0 %1500, %v1493
    %v1502 = vpop.permute.xlu0 %1501
    %v1504 = vadd.f32 %v1490, %v1497
    %v1505 = vadd.f32 %v1491, %v1502
    %1508 = vrot.lane.b32.xlu0 %v1504, 16
    %v1509 = vpop.permute.xlu0 %1508
    %1510 = vrot.lane.b32.xlu0 %v1505, 16
    %v1511 = vpop.permute.xlu0 %1510
    %s1514 = scalar_lea.vmem [#allocation2], 24
    %1515 = vst.msk [vmem:[%s1514] sm:$0xff] %vm232, %v1509
    %1516 = vst.msk [vmem:[%s1514 + $0x8] sm:$0xff] %vm232, %v1511
    %v1517 = vld [vmem:[%s1514] sm:$0xff]
    %v1518 = vld [vmem:[%s1514 + $0x8] sm:$0xff]
    %v1519 = vld [vmem:[%s3] sm:$0xff]
    %v1520 = vld [vmem:[%s3 + $0x8] sm:$0xff]
    %v1521 = vld [vmem:[%s3 + $0x10] sm:$0xff]
    %v1522 = vld [vmem:[%s3 + $0x18] sm:$0xff]
    %v1523 = vld [vmem:[%s3 + $0x20] sm:$0xff]
    %v1524 = vld [vmem:[%s3 + $0x28] sm:$0xff]
    %v1525 = vld [vmem:[%s3 + $0x30] sm:$0x1]
    %v1526 = vld [vmem:[%s1514 + $0x1] sm:$0xff]
    %v1527 = vld [vmem:[%s1514 + $0x9] sm:$0xff]
    %v1528 = vld [vmem:[%s246] sm:$0xff]
    %v1529 = vld [vmem:[%s246 + $0x8] sm:$0xff]
    %v1530 = vld [vmem:[%s246 + $0x10] sm:$0xff]
    %v1531 = vld [vmem:[%s246 + $0x18] sm:$0xff]
    %v1532 = vld [vmem:[%s246 + $0x20] sm:$0xff]
    %v1533 = vld [vmem:[%s246 + $0x28] sm:$0xff]
    %v1534 = vld [vmem:[%s246 + $0x30] sm:$0x1]
    %v1536 = vsel %vm48, %v1526, 0
    %v1539 = vsel %vm48, %v1527, 0
    %v1542 = vsel %vm260, %v1534, 0
    %1544 = vmatprep.subr.mxu0 0.0
    %1545 = vmatpush1.msra.mxu0 %v1528
    %1546 = vmatprep.subr.mxu0 0.0
    %1547 = vmatpush1.msra.mxu0 %v1529
    %1548 = vmatprep.subr.mxu0 0.0
    %1549 = vmatpush1.msra.mxu0 %v1530
    %1550 = vmatprep.subr.mxu0 0.0
    %1551 = vmatpush1.msra.mxu0 %v1531
    %1552 = vmatprep.subr.mxu0 0.0
    %1553 = vmatpush1.msra.mxu0 %v1532
    %1554 = vmatprep.subr.mxu0 0.0
    %1555 = vmatpush1.msra.mxu0 %v1533
    %1556 = vmatprep.subr.mxu0 0.0
    %1557 = vmatpush1.msra.mxu0 %v1542
    %1558 = vmatprep.subr.mxu0 0.0
    %1559 = vmatpush1.msra.mxu0 0.0
    %1560 = vmatprep.subr.mxu0 0.0
    %1561 = vmatpush1.msra.mxu0 0.0
    %1562 = vmatprep.subr.mxu0 0.0
    %1563 = vmatpush1.msra.mxu0 0.0
    %1564 = vmatprep.subr.mxu0 0.0
    %1565 = vmatpush1.msra.mxu0 0.0
    %1566 = vmatprep.subr.mxu0 0.0
    %1567 = vmatpush1.msra.mxu0 0.0
    %1568 = vmatprep.subr.mxu0 0.0
    %1569 = vmatpush1.msra.mxu0 0.0
    %1570 = vmatprep.subr.mxu0 0.0
    %1571 = vmatpush1.msra.mxu0 0.0
    %1572 = vmatprep.subr.mxu0 0.0
    %1573 = vmatpush1.msra.mxu0 0.0
    %1574 = vmatprep.subr.mxu0 0.0
    %1575 = vmatpush1.msra.mxu0 0.0
    %1576 = vmatprep.subr.mxu0 0.0
    %1577 = vmatpush1.msra.mxu0 0.0
    %1578 = vmatprep.subr.mxu0 0.0
    %1579 = vmatpush1.msra.mxu0 0.0
    %1580 = vmatprep.subr.mxu0 0.0
    %1581 = vmatpush1.msra.mxu0 0.0
    %1582 = vmatprep.subr.mxu0 0.0
    %1583 = vmatpush1.msra.mxu0 0.0
    %1584 = vmatprep.subr.mxu0 0.0
    %1585 = vmatpush1.msra.mxu0 0.0
    %1586 = vmatprep.subr.mxu0 0.0
    %1587 = vmatpush1.msra.mxu0 0.0
    %1588 = vmatprep.subr.mxu0 0.0
    %1589 = vmatpush1.msra.mxu0 0.0
    %1590 = vmatprep.subr.mxu0 0.0
    %1591 = vmatpush1.msra.mxu0 0.0
    %1592 = vmatprep.subr.mxu0 0.0
    %1593 = vmatpush1.msra.mxu0 0.0
    %1594 = vmatprep.subr.mxu0 0.0
    %1595 = vmatpush1.msra.mxu0 0.0
    %1596 = vmatprep.subr.mxu0 0.0
    %1597 = vmatpush1.msra.mxu0 0.0
    %1598 = vmatprep.subr.mxu0 0.0
    %1599 = vmatpush1.msra.mxu0 0.0
    %1600 = vmatprep.subr.mxu0 0.0
    %1601 = vmatpush1.msra.mxu0 0.0
    %1602 = vmatprep.subr.mxu0 0.0
    %1603 = vmatpush1.msra.mxu0 0.0
    %1604 = vmatprep.subr.mxu0 0.0
    %1605 = vmatpush1.msra.mxu0 0.0
    %1606 = vmatprep.subr.mxu0 0.0
    %1607 = vmatpush1.msra.mxu0 0.0
    %1608 = vmatprep.mubr.f32.mxu0 0.0
    %1609 = vmatmul.mubr.f32.gmra.mrb[0].mxu0 %v1536
    %v1610 = vpop.f32.mrb[0].mxu0
    %v1611 = vadd.f32 0.0, %v1610
    %v1612 = vpop.f32.mrb[0].mxu0
    %1613 = vmatprep.mubr.f32.mxu0 0.0
    %1614 = vmatmul.mubr.f32.gmra.mrb[0].mxu0 %v1539
    %v1615 = vpop.f32.mrb[0].mxu0
    %v1616 = vadd.f32 0.0, %v1615
    %v1617 = vpop.f32.mrb[0].mxu0
    %1618 = vdwg.mxu0
    %v1620 = vsel %vm48, %v1517, 0
    %v1623 = vsel %vm48, %v1518, 0
    %v1626 = vsel %vm260, %v1525, 0
    %1628 = vmatprep.subr.mxu0 0.0
    %1629 = vmatpush1.msra.mxu0 %v1519
    %1630 = vmatprep.subr.mxu0 0.0
    %1631 = vmatpush1.msra.mxu0 %v1520
    %1632 = vmatprep.subr.mxu0 0.0
    %1633 = vmatpush1.msra.mxu0 %v1521
    %1634 = vmatprep.subr.mxu0 0.0
    %1635 = vmatpush1.msra.mxu0 %v1522
    %1636 = vmatprep.subr.mxu0 0.0
    %1637 = vmatpush1.msra.mxu0 %v1523
    %1638 = vmatprep.subr.mxu0 0.0
    %1639 = vmatpush1.msra.mxu0 %v1524
    %1640 = vmatprep.subr.mxu0 0.0
    %1641 = vmatpush1.msra.mxu0 %v1626
    %1642 = vmatprep.subr.mxu0 0.0
    %1643 = vmatpush1.msra.mxu0 0.0
    %1644 = vmatprep.subr.mxu0 0.0
    %1645 = vmatpush1.msra.mxu0 0.0
    %1646 = vmatprep.subr.mxu0 0.0
    %1647 = vmatpush1.msra.mxu0 0.0
    %1648 = vmatprep.subr.mxu0 0.0
    %1649 = vmatpush1.msra.mxu0 0.0
    %1650 = vmatprep.subr.mxu0 0.0
    %1651 = vmatpush1.msra.mxu0 0.0
    %1652 = vmatprep.subr.mxu0 0.0
    %1653 = vmatpush1.msra.mxu0 0.0
    %1654 = vmatprep.subr.mxu0 0.0
    %1655 = vmatpush1.msra.mxu0 0.0
    %1656 = vmatprep.subr.mxu0 0.0
    %1657 = vmatpush1.msra.mxu0 0.0
    %1658 = vmatprep.subr.mxu0 0.0
    %1659 = vmatpush1.msra.mxu0 0.0
    %1660 = vmatprep.subr.mxu0 0.0
    %1661 = vmatpush1.msra.mxu0 0.0
    %1662 = vmatprep.subr.mxu0 0.0
    %1663 = vmatpush1.msra.mxu0 0.0
    %1664 = vmatprep.subr.mxu0 0.0
    %1665 = vmatpush1.msra.mxu0 0.0
    %1666 = vmatprep.subr.mxu0 0.0
    %1667 = vmatpush1.msra.mxu0 0.0
    %1668 = vmatprep.subr.mxu0 0.0
    %1669 = vmatpush1.msra.mxu0 0.0
    %1670 = vmatprep.subr.mxu0 0.0
    %1671 = vmatpush1.msra.mxu0 0.0
    %1672 = vmatprep.subr.mxu0 0.0
    %1673 = vmatpush1.msra.mxu0 0.0
    %1674 = vmatprep.subr.mxu0 0.0
    %1675 = vmatpush1.msra.mxu0 0.0
    %1676 = vmatprep.subr.mxu0 0.0
    %1677 = vmatpush1.msra.mxu0 0.0
    %1678 = vmatprep.subr.mxu0 0.0
    %1679 = vmatpush1.msra.mxu0 0.0
    %1680 = vmatprep.subr.mxu0 0.0
    %1681 = vmatpush1.msra.mxu0 0.0
    %1682 = vmatprep.subr.mxu0 0.0
    %1683 = vmatpush1.msra.mxu0 0.0
    %1684 = vmatprep.subr.mxu0 0.0
    %1685 = vmatpush1.msra.mxu0 0.0
    %1686 = vmatprep.subr.mxu0 0.0
    %1687 = vmatpush1.msra.mxu0 0.0
    %1688 = vmatprep.subr.mxu0 0.0
    %1689 = vmatpush1.msra.mxu0 0.0
    %1690 = vmatprep.subr.mxu0 0.0
    %1691 = vmatpush1.msra.mxu0 0.0
    %1692 = vmatprep.mubr.f32.mxu0 0.0
    %1693 = vmatmul.mubr.f32.gmra.mrb[0].mxu0 %v1620
    %v1694 = vpop.f32.mrb[0].mxu0
    %v1695 = vadd.f32 %v1611, %v1694
    %v1696 = vpop.f32.mrb[0].mxu0
    %1697 = vmatprep.mubr.f32.mxu0 0.0
    %1698 = vmatmul.mubr.f32.gmra.mrb[0].mxu0 %v1623
    %v1699 = vpop.f32.mrb[0].mxu0
    %v1700 = vadd.f32 %v1616, %v1699
    %v1701 = vpop.f32.mrb[0].mxu0
    %1702 = vdwg.mxu0
    %v1703 = vld [vmem:[%s4] sm:$0x1]
    %v1704 = vlaneseq
    %v1705 = vshrl.u32 %v1704, 7
    %v1706 = vsub.s32 0, %v1705
    %v1707 = vrot.slane %v1703, %v1706
    %v1708 = vadd.f32 %v1695, %v1707
    %v1709 = vadd.f32 %v1700, %v1707
    %vm1710 = vcmp.gt.f32.partialorder %v1708, 0.0
    %vm1711 = vcmp.gt.f32.partialorder %v1709, 0.0
    %v1712 = vmul.f32 %v1708, 1.442695
    %v1713 = vpow.pop %v1712
    %v1714 = vmul.f32 %v1709, 1.442695
    %v1715 = vpow.pop %v1714
    %v1716 = vsub.f32 %v1713, 1.0
    %v1717 = vsub.f32 %v1715, 1.0
    %v1718 = vsel %vm1710, %v1708, %v1716
    %v1719 = vsel %vm1711, %v1709, %v1717
    %v1720 = vld [vmem:[%s4 + $0x1] sm:$0x1]
    %v1721 = vlaneseq
    %v1722 = vshrl.u32 %v1721, 7
    %v1723 = vsub.s32 0, %v1722
    %v1724 = vrot.slane %v1720, %v1723
    %v1725 = vmul.f32 %v1718, %v1724
    %v1726 = vmul.f32 %v1719, %v1724
    %v1727 = vld [vmem:[%s4 + $0x2] sm:$0x1]
    %v1728 = vlaneseq
    %v1729 = vshrl.u32 %v1728, 7
    %v1730 = vsub.s32 0, %v1729
    %v1731 = vrot.slane %v1727, %v1730
    %v1732 = vadd.f32 %v1725, %v1731
    %v1733 = vadd.f32 %v1726, %v1731
    %v1735 = vrot.slane %v1732, 1
    %v1737 = vmax.f32 %v1732, %v1735
    %v1739 = vrot.slane %v1733, 1
    %v1741 = vmax.f32 %v1733, %v1739
    %v1743 = vrot.slane %v1737, 3
    %v1746 = vrot.slane %v1741, 6
    %v1748 = vrot.slane %v1741, 1
    %v1750 = vsel %vm260, %v1737, %v1743
    %v1751 = vsel %vm471, %v1750, %v1746
    %v1752 = vsel %vm473, %v1751, %v1748
    %v1754 = vsel %vm475, %v1752, 0
    %1756 = vmatprep.subr.mxu0 0.0
    %1757 = vmatpush1.msra.mxu0 %v64
    %1758 = vmatprep.subr.mxu0 0.0
    %1759 = vmatpush1.msra.mxu0 %v65
    %1760 = vmatprep.subr.mxu0 0.0
    %1761 = vmatpush1.msra.mxu0 %v66
    %1762 = vmatprep.subr.mxu0 0.0
    %1763 = vmatpush1.msra.mxu0 %v67
    %1764 = vmatprep.subr.mxu0 0.0
    %1765 = vmatpush1.msra.mxu0 %v68
    %1766 = vmatprep.subr.mxu0 0.0
    %1767 = vmatpush1.msra.mxu0 %v69
    %1768 = vmatprep.subr.mxu0 0.0
    %1769 = vmatpush1.msra.mxu0 %v70
    %1770 = vmatprep.subr.mxu0 0.0
    %1771 = vmatpush1.msra.mxu0 %v71
    %1772 = vmatprep.subr.mxu0 0.0
    %1773 = vmatpush1.msra.mxu0 %v72
    %1774 = vmatprep.subr.mxu0 0.0
    %1775 = vmatpush1.msra.mxu0 0.0
    %1776 = vmatprep.subr.mxu0 0.0
    %1777 = vmatpush1.msra.mxu0 0.0
    %1778 = vmatprep.subr.mxu0 0.0
    %1779 = vmatpush1.msra.mxu0 0.0
    %1780 = vmatprep.subr.mxu0 0.0
    %1781 = vmatpush1.msra.mxu0 0.0
    %1782 = vmatprep.subr.mxu0 0.0
    %1783 = vmatpush1.msra.mxu0 0.0
    %1784 = vmatprep.subr.mxu0 0.0
    %1785 = vmatpush1.msra.mxu0 0.0
    %1786 = vmatprep.subr.mxu0 0.0
    %1787 = vmatpush1.msra.mxu0 0.0
    %1788 = vmatprep.subr.mxu0 0.0
    %1789 = vmatpush1.msra.mxu0 0.0
    %1790 = vmatprep.subr.mxu0 0.0
    %1791 = vmatpush1.msra.mxu0 0.0
    %1792 = vmatprep.subr.mxu0 0.0
    %1793 = vmatpush1.msra.mxu0 0.0
    %1794 = vmatprep.subr.mxu0 0.0
    %1795 = vmatpush1.msra.mxu0 0.0
    %1796 = vmatprep.subr.mxu0 0.0
    %1797 = vmatpush1.msra.mxu0 0.0
    %1798 = vmatprep.subr.mxu0 0.0
    %1799 = vmatpush1.msra.mxu0 0.0
    %1800 = vmatprep.subr.mxu0 0.0
    %1801 = vmatpush1.msra.mxu0 0.0
    %1802 = vmatprep.subr.mxu0 0.0
    %1803 = vmatpush1.msra.mxu0 0.0
    %1804 = vmatprep.subr.mxu0 0.0
    %1805 = vmatpush1.msra.mxu0 0.0
    %1806 = vmatprep.subr.mxu0 0.0
    %1807 = vmatpush1.msra.mxu0 0.0
    %1808 = vmatprep.subr.mxu0 0.0
    %1809 = vmatpush1.msra.mxu0 0.0
    %1810 = vmatprep.subr.mxu0 0.0
    %1811 = vmatpush1.msra.mxu0 0.0
    %1812 = vmatprep.subr.mxu0 0.0
    %1813 = vmatpush1.msra.mxu0 0.0
    %1814 = vmatprep.subr.mxu0 0.0
    %1815 = vmatpush1.msra.mxu0 0.0
    %1816 = vmatprep.subr.mxu0 0.0
    %1817 = vmatpush1.msra.mxu0 0.0
    %1818 = vmatprep.subr.mxu0 0.0
    %1819 = vmatpush1.msra.mxu0 0.0
    %1820 = vmatprep.mubr.f32.mxu0 0.0
    %1821 = vmatmul.mubr.f32.gmra.mrb[0].mxu0 %v1754
    %v1822 = vpop.f32.mrb[0].mxu0
    %v1823 = vadd.f32 0.0, %v1822
    %v1824 = vpop.f32.mrb[0].mxu0
    %1825 = vdwg.mxu0
    %1826 = vmatprep.subr.mxu0 0.0
    %1827 = vmatpush1.msra.mxu0 %v73
    %1828 = vmatprep.subr.mxu0 0.0
    %1829 = vmatpush1.msra.mxu0 %v74
    %1830 = vmatprep.subr.mxu0 0.0
    %1831 = vmatpush1.msra.mxu0 %v75
    %1832 = vmatprep.subr.mxu0 0.0
    %1833 = vmatpush1.msra.mxu0 %v76
    %1834 = vmatprep.subr.mxu0 0.0
    %1835 = vmatpush1.msra.mxu0 %v77
    %1836 = vmatprep.subr.mxu0 0.0
    %1837 = vmatpush1.msra.mxu0 %v78
    %1838 = vmatprep.subr.mxu0 0.0
    %1839 = vmatpush1.msra.mxu0 %v79
    %1840 = vmatprep.subr.mxu0 0.0
    %1841 = vmatpush1.msra.mxu0 %v80
    %1842 = vmatprep.subr.mxu0 0.0
    %1843 = vmatpush1.msra.mxu0 %v81
    %1844 = vmatprep.subr.mxu0 0.0
    %1845 = vmatpush1.msra.mxu0 0.0
    %1846 = vmatprep.subr.mxu0 0.0
    %1847 = vmatpush1.msra.mxu0 0.0
    %1848 = vmatprep.subr.mxu0 0.0
    %1849 = vmatpush1.msra.mxu0 0.0
    %1850 = vmatprep.subr.mxu0 0.0
    %1851 = vmatpush1.msra.mxu0 0.0
    %1852 = vmatprep.subr.mxu0 0.0
    %1853 = vmatpush1.msra.mxu0 0.0
    %1854 = vmatprep.subr.mxu0 0.0
    %1855 = vmatpush1.msra.mxu0 0.0
    %1856 = vmatprep.subr.mxu0 0.0
    %1857 = vmatpush1.msra.mxu0 0.0
    %1858 = vmatprep.subr.mxu0 0.0
    %1859 = vmatpush1.msra.mxu0 0.0
    %1860 = vmatprep.subr.mxu0 0.0
    %1861 = vmatpush1.msra.mxu0 0.0
    %1862 = vmatprep.subr.mxu0 0.0
    %1863 = vmatpush1.msra.mxu0 0.0
    %1864 = vmatprep.subr.mxu0 0.0
    %1865 = vmatpush1.msra.mxu0 0.0
    %1866 = vmatprep.subr.mxu0 0.0
    %1867 = vmatpush1.msra.mxu0 0.0
    %1868 = vmatprep.subr.mxu0 0.0
    %1869 = vmatpush1.msra.mxu0 0.0
    %1870 = vmatprep.subr.mxu0 0.0
    %1871 = vmatpush1.msra.mxu0 0.0
    %1872 = vmatprep.subr.mxu0 0.0
    %1873 = vmatpush1.msra.mxu0 0.0
    %1874 = vmatprep.subr.mxu0 0.0
    %1875 = vmatpush1.msra.mxu0 0.0
    %1876 = vmatprep.subr.mxu0 0.0
    %1877 = vmatpush1.msra.mxu0 0.0
    %1878 = vmatprep.subr.mxu0 0.0
    %1879 = vmatpush1.msra.mxu0 0.0
    %1880 = vmatprep.subr.mxu0 0.0
    %1881 = vmatpush1.msra.mxu0 0.0
    %1882 = vmatprep.subr.mxu0 0.0
    %1883 = vmatpush1.msra.mxu0 0.0
    %1884 = vmatprep.subr.mxu0 0.0
    %1885 = vmatpush1.msra.mxu0 0.0
    %1886 = vmatprep.subr.mxu0 0.0
    %1887 = vmatpush1.msra.mxu0 0.0
    %1888 = vmatprep.subr.mxu0 0.0
    %1889 = vmatpush1.msra.mxu0 0.0
    %1890 = vmatprep.mubr.f32.mxu0 0.0
    %1891 = vmatmul.mubr.f32.gmra.mrb[0].mxu0 %v1754
    %v1892 = vpop.f32.mrb[0].mxu0
    %v1893 = vadd.f32 0.0, %v1892
    %v1894 = vpop.f32.mrb[0].mxu0
    %1895 = vdwg.mxu0
    %v1896 = vmax.f32 %v1823, %v1893
    %s1897 = scalar_lea.vmem [#allocation3], 16
    %1898 = vst.msk [vmem:[%s1897 + $0x4] sm:$0xf] %vm620, %v1896
    %v1899 = vld [vmem:[%s1897] sm:$0xf]
    %v1900 = vld [vmem:[%s7] sm:$0xff]
    %v1901 = vld [vmem:[%s7 + $0x8] sm:$0xff]
    %v1902 = vld [vmem:[%s7 + $0x10] sm:$0xff]
    %v1903 = vld [vmem:[%s7 + $0x18] sm:$0xff]
    %v1904 = vld [vmem:[%s1897 + $0x1] sm:$0xf]
    %v1905 = vld [vmem:[%s628] sm:$0xff]
    %v1906 = vld [vmem:[%s628 + $0x8] sm:$0xff]
    %v1907 = vld [vmem:[%s628 + $0x10] sm:$0xff]
    %v1908 = vld [vmem:[%s628 + $0x18] sm:$0xff]
    %v1910 = vsel %vm56, %v1904, 0
    %1912 = vmatprep.subr.mxu0 0.0
    %1913 = vmatpush1.msra.mxu0 %v1905
    %1914 = vmatprep.subr.mxu0 0.0
    %1915 = vmatpush1.msra.mxu0 %v1906
    %1916 = vmatprep.subr.mxu0 0.0
    %1917 = vmatpush1.msra.mxu0 %v1907
    %1918 = vmatprep.subr.mxu0 0.0
    %1919 = vmatpush1.msra.mxu0 %v1908
    %1920 = vmatprep.subr.mxu0 0.0
    %1921 = vmatpush1.msra.mxu0 0.0
    %1922 = vmatprep.subr.mxu0 0.0
    %1923 = vmatpush1.msra.mxu0 0.0
    %1924 = vmatprep.subr.mxu0 0.0
    %1925 = vmatpush1.msra.mxu0 0.0
    %1926 = vmatprep.subr.mxu0 0.0
    %1927 = vmatpush1.msra.mxu0 0.0
    %1928 = vmatprep.subr.mxu0 0.0
    %1929 = vmatpush1.msra.mxu0 0.0
    %1930 = vmatprep.subr.mxu0 0.0
    %1931 = vmatpush1.msra.mxu0 0.0
    %1932 = vmatprep.subr.mxu0 0.0
    %1933 = vmatpush1.msra.mxu0 0.0
    %1934 = vmatprep.subr.mxu0 0.0
    %1935 = vmatpush1.msra.mxu0 0.0
    %1936 = vmatprep.subr.mxu0 0.0
    %1937 = vmatpush1.msra.mxu0 0.0
    %1938 = vmatprep.subr.mxu0 0.0
    %1939 = vmatpush1.msra.mxu0 0.0
    %1940 = vmatprep.subr.mxu0 0.0
    %1941 = vmatpush1.msra.mxu0 0.0
    %1942 = vmatprep.subr.mxu0 0.0
    %1943 = vmatpush1.msra.mxu0 0.0
    %1944 = vmatprep.subr.mxu0 0.0
    %1945 = vmatpush1.msra.mxu0 0.0
    %1946 = vmatprep.subr.mxu0 0.0
    %1947 = vmatpush1.msra.mxu0 0.0
    %1948 = vmatprep.subr.mxu0 0.0
    %1949 = vmatpush1.msra.mxu0 0.0
    %1950 = vmatprep.subr.mxu0 0.0
    %1951 = vmatpush1.msra.mxu0 0.0
    %1952 = vmatprep.subr.mxu0 0.0
    %1953 = vmatpush1.msra.mxu0 0.0
    %1954 = vmatprep.subr.mxu0 0.0
    %1955 = vmatpush1.msra.mxu0 0.0
    %1956 = vmatprep.subr.mxu0 0.0
    %1957 = vmatpush1.msra.mxu0 0.0
    %1958 = vmatprep.subr.mxu0 0.0
    %1959 = vmatpush1.msra.mxu0 0.0
    %1960 = vmatprep.subr.mxu0 0.0
    %1961 = vmatpush1.msra.mxu0 0.0
    %1962 = vmatprep.subr.mxu0 0.0
    %1963 = vmatpush1.msra.mxu0 0.0
    %1964 = vmatprep.subr.mxu0 0.0
    %1965 = vmatpush1.msra.mxu0 0.0
    %1966 = vmatprep.subr.mxu0 0.0
    %1967 = vmatpush1.msra.mxu0 0.0
    %1968 = vmatprep.subr.mxu0 0.0
    %1969 = vmatpush1.msra.mxu0 0.0
    %1970 = vmatprep.subr.mxu0 0.0
    %1971 = vmatpush1.msra.mxu0 0.0
    %1972 = vmatprep.subr.mxu0 0.0
    %1973 = vmatpush1.msra.mxu0 0.0
    %1974 = vmatprep.subr.mxu0 0.0
    %1975 = vmatpush1.msra.mxu0 0.0
    %1976 = vmatprep.mubr.f32.mxu0 0.0
    %1977 = vmatmul.mubr.f32.gmra.mrb[0].mxu0 %v1910
    %v1978 = vpop.f32.mrb[0].mxu0
    %v1979 = vadd.f32 0.0, %v1978
    %v1980 = vpop.f32.mrb[0].mxu0
    %1981 = vdwg.mxu0
    %v1983 = vsel %vm56, %v1899, 0
    %1985 = vmatprep.subr.mxu0 0.0
    %1986 = vmatpush1.msra.mxu0 %v1900
    %1987 = vmatprep.subr.mxu0 0.0
    %1988 = vmatpush1.msra.mxu0 %v1901
    %1989 = vmatprep.subr.mxu0 0.0
    %1990 = vmatpush1.msra.mxu0 %v1902
    %1991 = vmatprep.subr.mxu0 0.0
    %1992 = vmatpush1.msra.mxu0 %v1903
    %1993 = vmatprep.subr.mxu0 0.0
    %1994 = vmatpush1.msra.mxu0 0.0
    %1995 = vmatprep.subr.mxu0 0.0
    %1996 = vmatpush1.msra.mxu0 0.0
    %1997 = vmatprep.subr.mxu0 0.0
    %1998 = vmatpush1.msra.mxu0 0.0
    %1999 = vmatprep.subr.mxu0 0.0
    %2000 = vmatpush1.msra.mxu0 0.0
    %2001 = vmatprep.subr.mxu0 0.0
    %2002 = vmatpush1.msra.mxu0 0.0
    %2003 = vmatprep.subr.mxu0 0.0
    %2004 = vmatpush1.msra.mxu0 0.0
    %2005 = vmatprep.subr.mxu0 0.0
    %2006 = vmatpush1.msra.mxu0 0.0
    %2007 = vmatprep.subr.mxu0 0.0
    %2008 = vmatpush1.msra.mxu0 0.0
    %2009 = vmatprep.subr.mxu0 0.0
    %2010 = vmatpush1.msra.mxu0 0.0
    %2011 = vmatprep.subr.mxu0 0.0
    %2012 = vmatpush1.msra.mxu0 0.0
    %2013 = vmatprep.subr.mxu0 0.0
    %2014 = vmatpush1.msra.mxu0 0.0
    %2015 = vmatprep.subr.mxu0 0.0
    %2016 = vmatpush1.msra.mxu0 0.0
    %2017 = vmatprep.subr.mxu0 0.0
    %2018 = vmatpush1.msra.mxu0 0.0
    %2019 = vmatprep.subr.mxu0 0.0
    %2020 = vmatpush1.msra.mxu0 0.0
    %2021 = vmatprep.subr.mxu0 0.0
    %2022 = vmatpush1.msra.mxu0 0.0
    %2023 = vmatprep.subr.mxu0 0.0
    %2024 = vmatpush1.msra.mxu0 0.0
    %2025 = vmatprep.subr.mxu0 0.0
    %2026 = vmatpush1.msra.mxu0 0.0
    %2027 = vmatprep.subr.mxu0 0.0
    %2028 = vmatpush1.msra.mxu0 0.0
    %2029 = vmatprep.subr.mxu0 0.0
    %2030 = vmatpush1.msra.mxu0 0.0
    %2031 = vmatprep.subr.mxu0 0.0
    %2032 = vmatpush1.msra.mxu0 0.0
    %2033 = vmatprep.subr.mxu0 0.0
    %2034 = vmatpush1.msra.mxu0 0.0
    %2035 = vmatprep.subr.mxu0 0.0
    %2036 = vmatpush1.msra.mxu0 0.0
    %2037 = vmatprep.subr.mxu0 0.0
    %2038 = vmatpush1.msra.mxu0 0.0
    %2039 = vmatprep.subr.mxu0 0.0
    %2040 = vmatpush1.msra.mxu0 0.0
    %2041 = vmatprep.subr.mxu0 0.0
    %2042 = vmatpush1.msra.mxu0 0.0
    %2043 = vmatprep.subr.mxu0 0.0
    %2044 = vmatpush1.msra.mxu0 0.0
    %2045 = vmatprep.subr.mxu0 0.0
    %2046 = vmatpush1.msra.mxu0 0.0
    %2047 = vmatprep.subr.mxu0 0.0
    %2048 = vmatpush1.msra.mxu0 0.0
    %2049 = vmatprep.mubr.f32.mxu0 0.0
    %2050 = vmatmul.mubr.f32.gmra.mrb[0].mxu0 %v1983
    %v2051 = vpop.f32.mrb[0].mxu0
    %v2052 = vadd.f32 %v1979, %v2051
    %v2053 = vpop.f32.mrb[0].mxu0
    %2054 = vdwg.mxu0
    %v2055 = vld [vmem:[%s1897 + $0x2] sm:$0xf]
    %v2056 = vld [vmem:[%s780] sm:$0xff]
    %v2057 = vld [vmem:[%s780 + $0x8] sm:$0xff]
    %v2058 = vld [vmem:[%s780 + $0x10] sm:$0xff]
    %v2059 = vld [vmem:[%s780 + $0x18] sm:$0xff]
    %v2061 = vsel %vm56, %v2055, 0
    %2063 = vmatprep.subr.mxu0 0.0
    %2064 = vmatpush1.msra.mxu0 %v2056
    %2065 = vmatprep.subr.mxu0 0.0
    %2066 = vmatpush1.msra.mxu0 %v2057
    %2067 = vmatprep.subr.mxu0 0.0
    %2068 = vmatpush1.msra.mxu0 %v2058
    %2069 = vmatprep.subr.mxu0 0.0
    %2070 = vmatpush1.msra.mxu0 %v2059
    %2071 = vmatprep.subr.mxu0 0.0
    %2072 = vmatpush1.msra.mxu0 0.0
    %2073 = vmatprep.subr.mxu0 0.0
    %2074 = vmatpush1.msra.mxu0 0.0
    %2075 = vmatprep.subr.mxu0 0.0
    %2076 = vmatpush1.msra.mxu0 0.0
    %2077 = vmatprep.subr.mxu0 0.0
    %2078 = vmatpush1.msra.mxu0 0.0
    %2079 = vmatprep.subr.mxu0 0.0
    %2080 = vmatpush1.msra.mxu0 0.0
    %2081 = vmatprep.subr.mxu0 0.0
    %2082 = vmatpush1.msra.mxu0 0.0
    %2083 = vmatprep.subr.mxu0 0.0
    %2084 = vmatpush1.msra.mxu0 0.0
    %2085 = vmatprep.subr.mxu0 0.0
    %2086 = vmatpush1.msra.mxu0 0.0
    %2087 = vmatprep.subr.mxu0 0.0
    %2088 = vmatpush1.msra.mxu0 0.0
    %2089 = vmatprep.subr.mxu0 0.0
    %2090 = vmatpush1.msra.mxu0 0.0
    %2091 = vmatprep.subr.mxu0 0.0
    %2092 = vmatpush1.msra.mxu0 0.0
    %2093 = vmatprep.subr.mxu0 0.0
    %2094 = vmatpush1.msra.mxu0 0.0
    %2095 = vmatprep.subr.mxu0 0.0
    %2096 = vmatpush1.msra.mxu0 0.0
    %2097 = vmatprep.subr.mxu0 0.0
    %2098 = vmatpush1.msra.mxu0 0.0
    %2099 = vmatprep.subr.mxu0 0.0
    %2100 = vmatpush1.msra.mxu0 0.0
    %2101 = vmatprep.subr.mxu0 0.0
    %2102 = vmatpush1.msra.mxu0 0.0
    %2103 = vmatprep.subr.mxu0 0.0
    %2104 = vmatpush1.msra.mxu0 0.0
    %2105 = vmatprep.subr.mxu0 0.0
    %2106 = vmatpush1.msra.mxu0 0.0
    %2107 = vmatprep.subr.mxu0 0.0
    %2108 = vmatpush1.msra.mxu0 0.0
    %2109 = vmatprep.subr.mxu0 0.0
    %2110 = vmatpush1.msra.mxu0 0.0
    %2111 = vmatprep.subr.mxu0 0.0
    %2112 = vmatpush1.msra.mxu0 0.0
    %2113 = vmatprep.subr.mxu0 0.0
    %2114 = vmatpush1.msra.mxu0 0.0
    %2115 = vmatprep.subr.mxu0 0.0
    %2116 = vmatpush1.msra.mxu0 0.0
    %2117 = vmatprep.subr.mxu0 0.0
    %2118 = vmatpush1.msra.mxu0 0.0
    %2119 = vmatprep.subr.mxu0 0.0
    %2120 = vmatpush1.msra.mxu0 0.0
    %2121 = vmatprep.subr.mxu0 0.0
    %2122 = vmatpush1.msra.mxu0 0.0
    %2123 = vmatprep.subr.mxu0 0.0
    %2124 = vmatpush1.msra.mxu0 0.0
    %2125 = vmatprep.subr.mxu0 0.0
    %2126 = vmatpush1.msra.mxu0 0.0
    %2127 = vmatprep.mubr.f32.mxu0 0.0
    %2128 = vmatmul.mubr.f32.gmra.mrb[0].mxu0 %v2061
    %v2129 = vpop.f32.mrb[0].mxu0
    %v2130 = vadd.f32 0.0, %v2129
    %v2131 = vpop.f32.mrb[0].mxu0
    %2132 = vdwg.mxu0
    %v2133 = vadd.f32 %v2052, %v2130
    %v2134 = vld [vmem:[%s1897 + $0x3] sm:$0xf]
    %v2135 = vld [vmem:[%s860] sm:$0xff]
    %v2136 = vld [vmem:[%s860 + $0x8] sm:$0xff]
    %v2137 = vld [vmem:[%s860 + $0x10] sm:$0xff]
    %v2138 = vld [vmem:[%s860 + $0x18] sm:$0xff]
    %v2140 = vsel %vm56, %v2134, 0
    %2142 = vmatprep.subr.mxu0 0.0
    %2143 = vmatpush1.msra.mxu0 %v2135
    %2144 = vmatprep.subr.mxu0 0.0
    %2145 = vmatpush1.msra.mxu0 %v2136
    %2146 = vmatprep.subr.mxu0 0.0
    %2147 = vmatpush1.msra.mxu0 %v2137
    %2148 = vmatprep.subr.mxu0 0.0
    %2149 = vmatpush1.msra.mxu0 %v2138
    %2150 = vmatprep.subr.mxu0 0.0
    %2151 = vmatpush1.msra.mxu0 0.0
    %2152 = vmatprep.subr.mxu0 0.0
    %2153 = vmatpush1.msra.mxu0 0.0
    %2154 = vmatprep.subr.mxu0 0.0
    %2155 = vmatpush1.msra.mxu0 0.0
    %2156 = vmatprep.subr.mxu0 0.0
    %2157 = vmatpush1.msra.mxu0 0.0
    %2158 = vmatprep.subr.mxu0 0.0
    %2159 = vmatpush1.msra.mxu0 0.0
    %2160 = vmatprep.subr.mxu0 0.0
    %2161 = vmatpush1.msra.mxu0 0.0
    %2162 = vmatprep.subr.mxu0 0.0
    %2163 = vmatpush1.msra.mxu0 0.0
    %2164 = vmatprep.subr.mxu0 0.0
    %2165 = vmatpush1.msra.mxu0 0.0
    %2166 = vmatprep.subr.mxu0 0.0
    %2167 = vmatpush1.msra.mxu0 0.0
    %2168 = vmatprep.subr.mxu0 0.0
    %2169 = vmatpush1.msra.mxu0 0.0
    %2170 = vmatprep.subr.mxu0 0.0
    %2171 = vmatpush1.msra.mxu0 0.0
    %2172 = vmatprep.subr.mxu0 0.0
    %2173 = vmatpush1.msra.mxu0 0.0
    %2174 = vmatprep.subr.mxu0 0.0
    %2175 = vmatpush1.msra.mxu0 0.0
    %2176 = vmatprep.subr.mxu0 0.0
    %2177 = vmatpush1.msra.mxu0 0.0
    %2178 = vmatprep.subr.mxu0 0.0
    %2179 = vmatpush1.msra.mxu0 0.0
    %2180 = vmatprep.subr.mxu0 0.0
    %2181 = vmatpush1.msra.mxu0 0.0
    %2182 = vmatprep.subr.mxu0 0.0
    %2183 = vmatpush1.msra.mxu0 0.0
    %2184 = vmatprep.subr.mxu0 0.0
    %2185 = vmatpush1.msra.mxu0 0.0
    %2186 = vmatprep.subr.mxu0 0.0
    %2187 = vmatpush1.msra.mxu0 0.0
    %2188 = vmatprep.subr.mxu0 0.0
    %2189 = vmatpush1.msra.mxu0 0.0
    %2190 = vmatprep.subr.mxu0 0.0
    %2191 = vmatpush1.msra.mxu0 0.0
    %2192 = vmatprep.subr.mxu0 0.0
    %2193 = vmatpush1.msra.mxu0 0.0
    %2194 = vmatprep.subr.mxu0 0.0
    %2195 = vmatpush1.msra.mxu0 0.0
    %2196 = vmatprep.subr.mxu0 0.0
    %2197 = vmatpush1.msra.mxu0 0.0
    %2198 = vmatprep.subr.mxu0 0.0
    %2199 = vmatpush1.msra.mxu0 0.0
    %2200 = vmatprep.subr.mxu0 0.0
    %2201 = vmatpush1.msra.mxu0 0.0
    %2202 = vmatprep.subr.mxu0 0.0
    %2203 = vmatpush1.msra.mxu0 0.0
    %2204 = vmatprep.subr.mxu0 0.0
    %2205 = vmatpush1.msra.mxu0 0.0
    %2206 = vmatprep.mubr.f32.mxu0 0.0
    %2207 = vmatmul.mubr.f32.gmra.mrb[0].mxu0 %v2140
    %v2208 = vpop.f32.mrb[0].mxu0
    %v2209 = vadd.f32 0.0, %v2208
    %v2210 = vpop.f32.mrb[0].mxu0
    %2211 = vdwg.mxu0
    %v2212 = vadd.f32 %v2133, %v2209
    %v2213 = vld [vmem:[%s1897 + $0x4] sm:$0xf]
    %v2214 = vld [vmem:[%s940] sm:$0xff]
    %v2215 = vld [vmem:[%s940 + $0x8] sm:$0xff]
    %v2216 = vld [vmem:[%s940 + $0x10] sm:$0xff]
    %v2217 = vld [vmem:[%s940 + $0x18] sm:$0xff]
    %v2219 = vsel %vm56, %v2213, 0
    %2221 = vmatprep.subr.mxu0 0.0
    %2222 = vmatpush1.msra.mxu0 %v2214
    %2223 = vmatprep.subr.mxu0 0.0
    %2224 = vmatpush1.msra.mxu0 %v2215
    %2225 = vmatprep.subr.mxu0 0.0
    %2226 = vmatpush1.msra.mxu0 %v2216
    %2227 = vmatprep.subr.mxu0 0.0
    %2228 = vmatpush1.msra.mxu0 %v2217
    %2229 = vmatprep.subr.mxu0 0.0
    %2230 = vmatpush1.msra.mxu0 0.0
    %2231 = vmatprep.subr.mxu0 0.0
    %2232 = vmatpush1.msra.mxu0 0.0
    %2233 = vmatprep.subr.mxu0 0.0
    %2234 = vmatpush1.msra.mxu0 0.0
    %2235 = vmatprep.subr.mxu0 0.0
    %2236 = vmatpush1.msra.mxu0 0.0
    %2237 = vmatprep.subr.mxu0 0.0
    %2238 = vmatpush1.msra.mxu0 0.0
    %2239 = vmatprep.subr.mxu0 0.0
    %2240 = vmatpush1.msra.mxu0 0.0
    %2241 = vmatprep.subr.mxu0 0.0
    %2242 = vmatpush1.msra.mxu0 0.0
    %2243 = vmatprep.subr.mxu0 0.0
    %2244 = vmatpush1.msra.mxu0 0.0
    %2245 = vmatprep.subr.mxu0 0.0
    %2246 = vmatpush1.msra.mxu0 0.0
    %2247 = vmatprep.subr.mxu0 0.0
    %2248 = vmatpush1.msra.mxu0 0.0
    %2249 = vmatprep.subr.mxu0 0.0
    %2250 = vmatpush1.msra.mxu0 0.0
    %2251 = vmatprep.subr.mxu0 0.0
    %2252 = vmatpush1.msra.mxu0 0.0
    %2253 = vmatprep.subr.mxu0 0.0
    %2254 = vmatpush1.msra.mxu0 0.0
    %2255 = vmatprep.subr.mxu0 0.0
    %2256 = vmatpush1.msra.mxu0 0.0
    %2257 = vmatprep.subr.mxu0 0.0
    %2258 = vmatpush1.msra.mxu0 0.0
    %2259 = vmatprep.subr.mxu0 0.0
    %2260 = vmatpush1.msra.mxu0 0.0
    %2261 = vmatprep.subr.mxu0 0.0
    %2262 = vmatpush1.msra.mxu0 0.0
    %2263 = vmatprep.subr.mxu0 0.0
    %2264 = vmatpush1.msra.mxu0 0.0
    %2265 = vmatprep.subr.mxu0 0.0
    %2266 = vmatpush1.msra.mxu0 0.0
    %2267 = vmatprep.subr.mxu0 0.0
    %2268 = vmatpush1.msra.mxu0 0.0
    %2269 = vmatprep.subr.mxu0 0.0
    %2270 = vmatpush1.msra.mxu0 0.0
    %2271 = vmatprep.subr.mxu0 0.0
    %2272 = vmatpush1.msra.mxu0 0.0
    %2273 = vmatprep.subr.mxu0 0.0
    %2274 = vmatpush1.msra.mxu0 0.0
    %2275 = vmatprep.subr.mxu0 0.0
    %2276 = vmatpush1.msra.mxu0 0.0
    %2277 = vmatprep.subr.mxu0 0.0
    %2278 = vmatpush1.msra.mxu0 0.0
    %2279 = vmatprep.subr.mxu0 0.0
    %2280 = vmatpush1.msra.mxu0 0.0
    %2281 = vmatprep.subr.mxu0 0.0
    %2282 = vmatpush1.msra.mxu0 0.0
    %2283 = vmatprep.subr.mxu0 0.0
    %2284 = vmatpush1.msra.mxu0 0.0
    %2285 = vmatprep.mubr.f32.mxu0 0.0
    %2286 = vmatmul.mubr.f32.gmra.mrb[0].mxu0 %v2219
    %v2287 = vpop.f32.mrb[0].mxu0
    %v2288 = vadd.f32 0.0, %v2287
    %v2289 = vpop.f32.mrb[0].mxu0
    %2290 = vdwg.mxu0
    %v2291 = vadd.f32 %v2212, %v2288
    %v2292 = vld [vmem:[%s1897 + $0x5] sm:$0xf]
    %v2293 = vld [vmem:[%s1020] sm:$0xff]
    %v2294 = vld [vmem:[%s1020 + $0x8] sm:$0xff]
    %v2295 = vld [vmem:[%s1020 + $0x10] sm:$0xff]
    %v2296 = vld [vmem:[%s1020 + $0x18] sm:$0xff]
    %v2298 = vsel %vm56, %v2292, 0
    %2300 = vmatprep.subr.mxu0 0.0
    %2301 = vmatpush1.msra.mxu0 %v2293
    %2302 = vmatprep.subr.mxu0 0.0
    %2303 = vmatpush1.msra.mxu0 %v2294
    %2304 = vmatprep.subr.mxu0 0.0
    %2305 = vmatpush1.msra.mxu0 %v2295
    %2306 = vmatprep.subr.mxu0 0.0
    %2307 = vmatpush1.msra.mxu0 %v2296
    %2308 = vmatprep.subr.mxu0 0.0
    %2309 = vmatpush1.msra.mxu0 0.0
    %2310 = vmatprep.subr.mxu0 0.0
    %2311 = vmatpush1.msra.mxu0 0.0
    %2312 = vmatprep.subr.mxu0 0.0
    %2313 = vmatpush1.msra.mxu0 0.0
    %2314 = vmatprep.subr.mxu0 0.0
    %2315 = vmatpush1.msra.mxu0 0.0
    %2316 = vmatprep.subr.mxu0 0.0
    %2317 = vmatpush1.msra.mxu0 0.0
    %2318 = vmatprep.subr.mxu0 0.0
    %2319 = vmatpush1.msra.mxu0 0.0
    %2320 = vmatprep.subr.mxu0 0.0
    %2321 = vmatpush1.msra.mxu0 0.0
    %2322 = vmatprep.subr.mxu0 0.0
    %2323 = vmatpush1.msra.mxu0 0.0
    %2324 = vmatprep.subr.mxu0 0.0
    %2325 = vmatpush1.msra.mxu0 0.0
    %2326 = vmatprep.subr.mxu0 0.0
    %2327 = vmatpush1.msra.mxu0 0.0
    %2328 = vmatprep.subr.mxu0 0.0
    %2329 = vmatpush1.msra.mxu0 0.0
    %2330 = vmatprep.subr.mxu0 0.0
    %2331 = vmatpush1.msra.mxu0 0.0
    %2332 = vmatprep.subr.mxu0 0.0
    %2333 = vmatpush1.msra.mxu0 0.0
    %2334 = vmatprep.subr.mxu0 0.0
    %2335 = vmatpush1.msra.mxu0 0.0
    %2336 = vmatprep.subr.mxu0 0.0
    %2337 = vmatpush1.msra.mxu0 0.0
    %2338 = vmatprep.subr.mxu0 0.0
    %2339 = vmatpush1.msra.mxu0 0.0
    %2340 = vmatprep.subr.mxu0 0.0
    %2341 = vmatpush1.msra.mxu0 0.0
    %2342 = vmatprep.subr.mxu0 0.0
    %2343 = vmatpush1.msra.mxu0 0.0
    %2344 = vmatprep.subr.mxu0 0.0
    %2345 = vmatpush1.msra.mxu0 0.0
    %2346 = vmatprep.subr.mxu0 0.0
    %2347 = vmatpush1.msra.mxu0 0.0
    %2348 = vmatprep.subr.mxu0 0.0
    %2349 = vmatpush1.msra.mxu0 0.0
    %2350 = vmatprep.subr.mxu0 0.0
    %2351 = vmatpush1.msra.mxu0 0.0
    %2352 = vmatprep.subr.mxu0 0.0
    %2353 = vmatpush1.msra.mxu0 0.0
    %2354 = vmatprep.subr.mxu0 0.0
    %2355 = vmatpush1.msra.mxu0 0.0
    %2356 = vmatprep.subr.mxu0 0.0
    %2357 = vmatpush1.msra.mxu0 0.0
    %2358 = vmatprep.subr.mxu0 0.0
    %2359 = vmatpush1.msra.mxu0 0.0
    %2360 = vmatprep.subr.mxu0 0.0
    %2361 = vmatpush1.msra.mxu0 0.0
    %2362 = vmatprep.subr.mxu0 0.0
    %2363 = vmatpush1.msra.mxu0 0.0
    %2364 = vmatprep.mubr.f32.mxu0 0.0
    %2365 = vmatmul.mubr.f32.gmra.mrb[0].mxu0 %v2298
    %v2366 = vpop.f32.mrb[0].mxu0
    %v2367 = vadd.f32 0.0, %v2366
    %v2368 = vpop.f32.mrb[0].mxu0
    %2369 = vdwg.mxu0
    %v2370 = vadd.f32 %v2291, %v2367
    %v2371 = vld [vmem:[%s1897 + $0x6] sm:$0xf]
    %v2372 = vld [vmem:[%s1100] sm:$0xff]
    %v2373 = vld [vmem:[%s1100 + $0x8] sm:$0xff]
    %v2374 = vld [vmem:[%s1100 + $0x10] sm:$0xff]
    %v2375 = vld [vmem:[%s1100 + $0x18] sm:$0xff]
    %v2377 = vsel %vm56, %v2371, 0
    %2379 = vmatprep.subr.mxu0 0.0
    %2380 = vmatpush1.msra.mxu0 %v2372
    %2381 = vmatprep.subr.mxu0 0.0
    %2382 = vmatpush1.msra.mxu0 %v2373
    %2383 = vmatprep.subr.mxu0 0.0
    %2384 = vmatpush1.msra.mxu0 %v2374
    %2385 = vmatprep.subr.mxu0 0.0
    %2386 = vmatpush1.msra.mxu0 %v2375
    %2387 = vmatprep.subr.mxu0 0.0
    %2388 = vmatpush1.msra.mxu0 0.0
    %2389 = vmatprep.subr.mxu0 0.0
    %2390 = vmatpush1.msra.mxu0 0.0
    %2391 = vmatprep.subr.mxu0 0.0
    %2392 = vmatpush1.msra.mxu0 0.0
    %2393 = vmatprep.subr.mxu0 0.0
    %2394 = vmatpush1.msra.mxu0 0.0
    %2395 = vmatprep.subr.mxu0 0.0
    %2396 = vmatpush1.msra.mxu0 0.0
    %2397 = vmatprep.subr.mxu0 0.0
    %2398 = vmatpush1.msra.mxu0 0.0
    %2399 = vmatprep.subr.mxu0 0.0
    %2400 = vmatpush1.msra.mxu0 0.0
    %2401 = vmatprep.subr.mxu0 0.0
    %2402 = vmatpush1.msra.mxu0 0.0
    %2403 = vmatprep.subr.mxu0 0.0
    %2404 = vmatpush1.msra.mxu0 0.0
    %2405 = vmatprep.subr.mxu0 0.0
    %2406 = vmatpush1.msra.mxu0 0.0
    %2407 = vmatprep.subr.mxu0 0.0
    %2408 = vmatpush1.msra.mxu0 0.0
    %2409 = vmatprep.subr.mxu0 0.0
    %2410 = vmatpush1.msra.mxu0 0.0
    %2411 = vmatprep.subr.mxu0 0.0
    %2412 = vmatpush1.msra.mxu0 0.0
    %2413 = vmatprep.subr.mxu0 0.0
    %2414 = vmatpush1.msra.mxu0 0.0
    %2415 = vmatprep.subr.mxu0 0.0
    %2416 = vmatpush1.msra.mxu0 0.0
    %2417 = vmatprep.subr.mxu0 0.0
    %2418 = vmatpush1.msra.mxu0 0.0
    %2419 = vmatprep.subr.mxu0 0.0
    %2420 = vmatpush1.msra.mxu0 0.0
    %2421 = vmatprep.subr.mxu0 0.0
    %2422 = vmatpush1.msra.mxu0 0.0
    %2423 = vmatprep.subr.mxu0 0.0
    %2424 = vmatpush1.msra.mxu0 0.0
    %2425 = vmatprep.subr.mxu0 0.0
    %2426 = vmatpush1.msra.mxu0 0.0
    %2427 = vmatprep.subr.mxu0 0.0
    %2428 = vmatpush1.msra.mxu0 0.0
    %2429 = vmatprep.subr.mxu0 0.0
    %2430 = vmatpush1.msra.mxu0 0.0
    %2431 = vmatprep.subr.mxu0 0.0
    %2432 = vmatpush1.msra.mxu0 0.0
    %2433 = vmatprep.subr.mxu0 0.0
    %2434 = vmatpush1.msra.mxu0 0.0
    %2435 = vmatprep.subr.mxu0 0.0
    %2436 = vmatpush1.msra.mxu0 0.0
    %2437 = vmatprep.subr.mxu0 0.0
    %2438 = vmatpush1.msra.mxu0 0.0
    %2439 = vmatprep.subr.mxu0 0.0
    %2440 = vmatpush1.msra.mxu0 0.0
    %2441 = vmatprep.subr.mxu0 0.0
    %2442 = vmatpush1.msra.mxu0 0.0
    %2443 = vmatprep.mubr.f32.mxu0 0.0
    %2444 = vmatmul.mubr.f32.gmra.mrb[0].mxu0 %v2377
    %v2445 = vpop.f32.mrb[0].mxu0
    %v2446 = vadd.f32 0.0, %v2445
    %v2447 = vpop.f32.mrb[0].mxu0
    %2448 = vdwg.mxu0
    %v2449 = vadd.f32 %v2370, %v2446
    %v2450 = vld [vmem:[%s1897 + $0x7] sm:$0xf]
    %v2451 = vld [vmem:[%s1180] sm:$0xff]
    %v2452 = vld [vmem:[%s1180 + $0x8] sm:$0xff]
    %v2453 = vld [vmem:[%s1180 + $0x10] sm:$0xff]
    %v2454 = vld [vmem:[%s1180 + $0x18] sm:$0xff]
    %v2456 = vsel %vm56, %v2450, 0
    %2458 = vmatprep.subr.mxu0 0.0
    %2459 = vmatpush1.msra.mxu0 %v2451
    %2460 = vmatprep.subr.mxu0 0.0
    %2461 = vmatpush1.msra.mxu0 %v2452
    %2462 = vmatprep.subr.mxu0 0.0
    %2463 = vmatpush1.msra.mxu0 %v2453
    %2464 = vmatprep.subr.mxu0 0.0
    %2465 = vmatpush1.msra.mxu0 %v2454
    %2466 = vmatprep.subr.mxu0 0.0
    %2467 = vmatpush1.msra.mxu0 0.0
    %2468 = vmatprep.subr.mxu0 0.0
    %2469 = vmatpush1.msra.mxu0 0.0
    %2470 = vmatprep.subr.mxu0 0.0
    %2471 = vmatpush1.msra.mxu0 0.0
    %2472 = vmatprep.subr.mxu0 0.0
    %2473 = vmatpush1.msra.mxu0 0.0
    %2474 = vmatprep.subr.mxu0 0.0
    %2475 = vmatpush1.msra.mxu0 0.0
    %2476 = vmatprep.subr.mxu0 0.0
    %2477 = vmatpush1.msra.mxu0 0.0
    %2478 = vmatprep.subr.mxu0 0.0
    %2479 = vmatpush1.msra.mxu0 0.0
    %2480 = vmatprep.subr.mxu0 0.0
    %2481 = vmatpush1.msra.mxu0 0.0
    %2482 = vmatprep.subr.mxu0 0.0
    %2483 = vmatpush1.msra.mxu0 0.0
    %2484 = vmatprep.subr.mxu0 0.0
    %2485 = vmatpush1.msra.mxu0 0.0
    %2486 = vmatprep.subr.mxu0 0.0
    %2487 = vmatpush1.msra.mxu0 0.0
    %2488 = vmatprep.subr.mxu0 0.0
    %2489 = vmatpush1.msra.mxu0 0.0
    %2490 = vmatprep.subr.mxu0 0.0
    %2491 = vmatpush1.msra.mxu0 0.0
    %2492 = vmatprep.subr.mxu0 0.0
    %2493 = vmatpush1.msra.mxu0 0.0
    %2494 = vmatprep.subr.mxu0 0.0
    %2495 = vmatpush1.msra.mxu0 0.0
    %2496 = vmatprep.subr.mxu0 0.0
    %2497 = vmatpush1.msra.mxu0 0.0
    %2498 = vmatprep.subr.mxu0 0.0
    %2499 = vmatpush1.msra.mxu0 0.0
    %2500 = vmatprep.subr.mxu0 0.0
    %2501 = vmatpush1.msra.mxu0 0.0
    %2502 = vmatprep.subr.mxu0 0.0
    %2503 = vmatpush1.msra.mxu0 0.0
    %2504 = vmatprep.subr.mxu0 0.0
    %2505 = vmatpush1.msra.mxu0 0.0
    %2506 = vmatprep.subr.mxu0 0.0
    %2507 = vmatpush1.msra.mxu0 0.0
    %2508 = vmatprep.subr.mxu0 0.0
    %2509 = vmatpush1.msra.mxu0 0.0
    %2510 = vmatprep.subr.mxu0 0.0
    %2511 = vmatpush1.msra.mxu0 0.0
    %2512 = vmatprep.subr.mxu0 0.0
    %2513 = vmatpush1.msra.mxu0 0.0
    %2514 = vmatprep.subr.mxu0 0.0
    %2515 = vmatpush1.msra.mxu0 0.0
    %2516 = vmatprep.subr.mxu0 0.0
    %2517 = vmatpush1.msra.mxu0 0.0
    %2518 = vmatprep.subr.mxu0 0.0
    %2519 = vmatpush1.msra.mxu0 0.0
    %2520 = vmatprep.subr.mxu0 0.0
    %2521 = vmatpush1.msra.mxu0 0.0
    %2522 = vmatprep.mubr.f32.mxu0 0.0
    %2523 = vmatmul.mubr.f32.gmra.mrb[0].mxu0 %v2456
    %v2524 = vpop.f32.mrb[0].mxu0
    %v2525 = vadd.f32 0.0, %v2524
    %v2526 = vpop.f32.mrb[0].mxu0
    %2527 = vdwg.mxu0
    %v2528 = vadd.f32 %v2449, %v2525
    %v2529 = vld [vmem:[%s8] sm:$0x1]
    %v2530 = vlaneseq
    %v2531 = vshrl.u32 %v2530, 7
    %v2532 = vsub.s32 0, %v2531
    %v2533 = vrot.slane %v2529, %v2532
    %v2534 = vadd.f32 %v2528, %v2533
    %vm2535 = vcmp.gt.f32.partialorder %v2534, 0.0
    %v2536 = vmul.f32 %v2534, 1.442695
    %v2537 = vpow.pop %v2536
    %v2538 = vsub.f32 %v2537, 1.0
    %v2539 = vsel %vm2535, %v2534, %v2538
    %v2540 = vld [vmem:[%s8 + $0x1] sm:$0x1]
    %v2541 = vlaneseq
    %v2542 = vshrl.u32 %v2541, 7
    %v2543 = vsub.s32 0, %v2542
    %v2544 = vrot.slane %v2540, %v2543
    %v2545 = vmul.f32 %v2539, %v2544
    %v2546 = vld [vmem:[%s8 + $0x2] sm:$0x1]
    %v2547 = vlaneseq
    %v2548 = vshrl.u32 %v2547, 7
    %v2549 = vsub.s32 0, %v2548
    %v2550 = vrot.slane %v2546, %v2549
    %v2551 = vadd.f32 %v2545, %v2550
    %s2552 = sld [smem:[#allocation4 + $0x8]]
    %v2553 = vstv %s2552
    %v2554 = vadd.f32 %v2553, 0.0
    %v2556 = vrot.slane %v2551, 1
    %v2558 = vmax.f32 %v2551, %v2556
    %v2559 = vsel %vm1289, %v2558, -inf
    %2560 = vmax.xlane.f32.xlu0 %v2559
    %v2561 = vpop.xlane.xlu0 %2560
    %s2562 = sld [smem:[#allocation4]]
    %v2563 = vstv %s2562
    %v2564 = vmul.f32 %v2561, %v2563
    %v2565 = vadd.f32 %v2554, %v2564
    %v2566 = vsel %vm1297, %v2558, -inf
    %2567 = vmax.xlane.f32.xlu0 %v2566
    %v2568 = vpop.xlane.xlu0 %2567
    %s2569 = sld [smem:[#allocation4 + $0x1]]
    %v2570 = vstv %s2569
    %v2571 = vmul.f32 %v2568, %v2570
    %v2573 = vrot.slane %v2571, 2
    %v2575 = vadd.f32 %v2565, %v2573
    %v2576 = vsel %vm1308, %v2558, -inf
    %2577 = vmax.xlane.f32.xlu0 %v2576
    %v2578 = vpop.xlane.xlu0 %2577
    %s2579 = sld [smem:[#allocation4 + $0x2]]
    %v2580 = vstv %s2579
    %v2581 = vmul.f32 %v2578, %v2580
    %v2582 = vadd.f32 %v2575, %v2581
    %v2583 = vsel %vm1316, %v2558, -inf
    %2584 = vmax.xlane.f32.xlu0 %v2583
    %v2585 = vpop.xlane.xlu0 %2584
    %s2586 = sld [smem:[#allocation4 + $0x3]]
    %v2587 = vstv %s2586
    %v2588 = vmul.f32 %v2585, %v2587
    %v2590 = vrot.slane %v2588, 2
    %v2592 = vadd.f32 %v2582, %v2590
    %v2593 = vsel %vm1327, %v2558, -inf
    %2594 = vmax.xlane.f32.xlu0 %v2593
    %v2595 = vpop.xlane.xlu0 %2594
    %s2596 = sld [smem:[#allocation4 + $0x4]]
    %v2597 = vstv %s2596
    %v2598 = vmul.f32 %v2595, %v2597
    %v2599 = vadd.f32 %v2592, %v2598
    %v2600 = vsel %vm1335, %v2558, -inf
    %2601 = vmax.xlane.f32.xlu0 %v2600
    %v2602 = vpop.xlane.xlu0 %2601
    %s2603 = sld [smem:[#allocation4 + $0x5]]
    %v2604 = vstv %s2603
    %v2605 = vmul.f32 %v2602, %v2604
    %v2607 = vrot.slane %v2605, 2
    %v2609 = vadd.f32 %v2599, %v2607
    %v2610 = vsel %vm1346, %v2558, -inf
    %2611 = vmax.xlane.f32.xlu0 %v2610
    %v2612 = vpop.xlane.xlu0 %2611
    %s2613 = sld [smem:[#allocation4 + $0x6]]
    %v2614 = vstv %s2613
    %v2615 = vmul.f32 %v2612, %v2614
    %v2616 = vadd.f32 %v2609, %v2615
    %v2617 = vsel %vm1354, %v2558, -inf
    %2618 = vmax.xlane.f32.xlu0 %v2617
    %v2619 = vpop.xlane.xlu0 %2618
    %s2620 = sld [smem:[#allocation4 + $0x7]]
    %v2621 = vstv %s2620
    %v2622 = vmul.f32 %v2619, %v2621
    %v2624 = vrot.slane %v2622, 2
    %v2626 = vadd.f32 %v2616, %v2624
    %v2627 = vsub.f32 0.0, %v2626
    %v2628 = vmul.f32 %v2627, 1.442695
    %v2629 = vpow.pop %v2628
    %v2630 = vadd.f32 %v2629, 1.0
    %v2631 = vrcp.pop %v2630
    %v2632 = vmul.f32 1.0, %v2631
    %2633 = vst.msk [vmem:[%s10 + $0x1] sm:$0x1] %vm1371, %v2632
    // Predicated region
    $region46: #{eegnet_forward.1} parent=1 // pred_check
      _
    $region47: #{eegnet_forward.1} parent=1 // pred_check_branch
      %2635 = sbr.rel (0) target = $region49
    $region48: #{eegnet_forward.1} parent=1 // pred_region
      _
    $region49: #{eegnet_forward.1} parent=1 // pred_fallthru
      _
    // Predicated region
    $region50: #{eegnet_forward.1} parent=1 // pred_check
      _
    $region51: #{eegnet_forward.1} parent=1 // pred_check_branch
      %2637 = sbr.rel (0) target = $region53
    $region52: #{eegnet_forward.1} parent=1 // pred_region
      _
    $region53: #{eegnet_forward.1} parent=1 // pred_fallthru
      _
    %2638 = vsyncpa [#allocation5], 1

</llo_original>
